<compile_context>
chip_gen: v7x
topology: tpu7x:2x2x1
jax: 0.10.0
libtpu: 0.0.40
codegen_flags: <defaults>
</compile_context>

<pallas_src>
import jax
import jax.numpy as jnp
from jax.experimental import pallas as pl
from jax.experimental.pallas import tpu as pltpu


# ----------------------------------------------------------------------------
# Glue: ball query + grouping (equivalent of QueryAndGroupPyramidAttention)
# TODO(synk): exact CUDA ball_query tie-breaking (first-nsample-in-scan-order)
# is approximated by first-nsample-by-index, padded with the first hit.
# ----------------------------------------------------------------------------
def ball_query_and_group(xyz, features, new_xyz, radius, nsample):
    # xyz: (N, 3), features: (N, C), new_xyz: (Mq, 3)
    N = xyz.shape[0]
    d2 = jnp.sum((new_xyz[:, None, :] - xyz[None, :, :]) ** 2, axis=-1)  # (Mq, N)
    in_r = d2 < radius * radius
    keys = jnp.where(in_r, jnp.arange(N, dtype=jnp.int32)[None, :], N)
    sorted_idx = jnp.sort(keys, axis=1)[:, :nsample]                     # (Mq, ns)
    cnt = jnp.sum(in_r.astype(jnp.int32), axis=1)                        # (Mq,)
    first = sorted_idx[:, 0]
    slot = jnp.arange(nsample, dtype=jnp.int32)[None, :]
    valid = slot < cnt[:, None]
    idx = jnp.where(valid, sorted_idx, first[:, None])
    empty = cnt == 0
    idx = jnp.where(empty[:, None], 0, idx)                              # (Mq, ns)
    gxyz = xyz[idx] - new_xyz[:, None, :]                                # (Mq, ns, 3)
    gfeat = jnp.concatenate([gxyz, features[idx]], axis=-1)              # (Mq, ns, 3+C)
    return gxyz, gfeat, empty


# ----------------------------------------------------------------------------
# Fused kernel: P/K/V projections + gates + attention pooling + Transformer
# (Residual) on one (tm, D) tile of grouped points.
# ----------------------------------------------------------------------------
def fused_pyramid_kernel(gf_ref, w_pkv_ref, bv1_ref, wv2_ref, bv2_ref,
                         w_gate_ref, watt_ref,
                         ln1g_ref, ln1b_ref, w_attn_ref, b_attn_ref,
                         ln2g_ref, ln2b_ref, w1_ref, b1_ref, w2_ref, b2_ref,
                         out_ref):
    TM, NS, Cin = gf_ref.shape
    D = wv2_ref.shape[0]
    f32 = jnp.float32

    gf = gf_ref[...].reshape(TM * NS, Cin)

    # Fused pos/key/value1 projections: one (TM*NS, Cin) @ (Cin, 3D) MXU push.
    pkv = jnp.dot(gf, w_pkv_ref[...], preferred_element_type=f32)
    P = jax.nn.relu(pkv[:, :D])
    K = jax.nn.relu(pkv[:, D:2 * D])
    V = jax.nn.relu(pkv[:, 2 * D:] + bv1_ref[...])           # BN1 folded into W + bias
    V = jnp.dot(V.astype(wv2_ref.dtype), wv2_ref[...], preferred_element_type=f32)
    V = jax.nn.relu(V + bv2_ref[...])                        # BN2 folded
    PK = P * K

    P3 = P.reshape(TM, NS, D)
    K3 = K.reshape(TM, NS, D)
    PK3 = PK.reshape(TM, NS, D)
    V3 = V.reshape(TM, NS, D)

    # Four sigmoid gates via one padded (TM, 3D) @ (3D, 4D) matmul.
    means = jnp.concatenate([jnp.mean(P3, axis=1), jnp.mean(K3, axis=1),
                             jnp.mean(PK3, axis=1)], axis=-1)
    gates = jax.nn.sigmoid(jnp.dot(means, w_gate_ref[...],
                                   preferred_element_type=f32))
    v_coef, q_coef = gates[:, :D], gates[:, D:2 * D]
    k_coef, qk_coef = gates[:, 2 * D:3 * D], gates[:, 3 * D:4 * D]

    V3 = V3 + P3 * v_coef[:, None, :]
    A = (P3 * q_coef[:, None, :] + K3 * k_coef[:, None, :]
         + PK3 * qk_coef[:, None, :]).reshape(TM * NS, D)

    # attention_proj with head-repeated weights -> per-channel softmax over NS
    # (identical to torch's repeat(head_dims) of the (M, H, ns) softmax).
    logits = jnp.dot(A.astype(watt_ref.dtype), watt_ref[...],
                     preferred_element_type=f32).reshape(TM, NS, D)
    logits = logits - jnp.max(logits, axis=1, keepdims=True)
    expl = jnp.exp(logits)
    attn = expl * pl.reciprocal(jnp.sum(expl, axis=1, keepdims=True), approx=True)
    attend = jnp.sum(attn * V3, axis=1)                      # (TM, D)

    # TransformerEncoder: 1 layer, normalize_before=True, seq_len=1, Residual.
    def layer_norm(x, g, b):
        mu = jnp.mean(x, axis=-1, keepdims=True)
        var = jnp.mean((x - mu) ** 2, axis=-1, keepdims=True)
        return (x - mu) * jax.lax.rsqrt(var + 1e-5) * g + b

    src = attend
    h = layer_norm(src, ln1g_ref[...], ln1b_ref[...])
    # self-attention for seq_len==1: out_proj(v_proj(h)) pre-composed to one matmul
    src = src + jnp.dot(h, w_attn_ref[...], preferred_element_type=f32) + b_attn_ref[...]
    h2 = layer_norm(src, ln2g_ref[...], ln2b_ref[...])
    ff = jax.nn.relu(jnp.dot(h2, w1_ref[...], preferred_element_type=f32) + b1_ref[...])
    src = src + jnp.dot(ff, w2_ref[...], preferred_element_type=f32) + b2_ref[...]
    out_ref[...] = (attend + src).astype(out_ref.dtype)      # Residual tr_mode


# ----------------------------------------------------------------------------
# Trace-time parameter packing (BN fold, weight concat, head repeat, W_v @ W_o)
# ----------------------------------------------------------------------------
FUSED_PARAM_ORDER = ('w_pkv', 'bv1', 'wv2', 'bv2', 'w_gate', 'watt_rep',
                     'ln1g', 'ln1b', 'w_attn', 'b_attn',
                     'ln2g', 'ln2b', 'w1', 'b1', 'w2', 'b2')


def pack_params(p, mxu_dtype=None):
    D = p['wpos'].shape[1]
    Cin = p['wkey'].shape[0]
    H = p['watt'].shape[1]
    HD = D // H
    wpos_pad = jnp.zeros((Cin, D), jnp.float32).at[:3, :].set(p['wpos'])
    w_pkv = jnp.concatenate([wpos_pad, p['wkey'], p['wv1'] * p['bn1s']], axis=1)
    w_gate = jnp.zeros((3 * D, 4 * D), jnp.float32)
    w_gate = w_gate.at[:D, :D].set(p['wvc'])
    w_gate = w_gate.at[:D, D:2 * D].set(p['wqc'])
    w_gate = w_gate.at[D:2 * D, 2 * D:3 * D].set(p['wkc'])
    w_gate = w_gate.at[2 * D:, 3 * D:].set(p['wqkc'])
    packed = {
        'w_pkv': w_pkv,
        'bv1': p['bn1b'],
        'wv2': p['wv2'] * p['bn2s'],
        'bv2': p['bn2b'],
        'w_gate': w_gate,
        'watt_rep': jnp.repeat(p['watt'], HD, axis=1),       # (D, D)
        'ln1g': p['ln1g'], 'ln1b': p['ln1b'],
        'w_attn': p['wv_in'] @ p['wo'],                      # seq_len==1 compose
        'b_attn': p['bv'] @ p['wo'] + p['bo'],
        'ln2g': p['ln2g'], 'ln2b': p['ln2b'],
        'w1': p['w1'], 'b1': p['b1'],
        'w2': p['w2'], 'b2': p['b2'],
    }
    if mxu_dtype is not None:
        for k in ('w_pkv', 'wv2', 'watt_rep'):
            packed[k] = packed[k].astype(mxu_dtype)
    return packed


def _pick_tm(M):
    # Whole-M tiles (launch-overhead-bound regime); use >=2 grid steps when it
    # is cheap so v7x's 2 TensorCores both get work (dimension_semantics is
    # "parallel"). Cap at 256 rows per step for VMEM headroom when M scales.
    if M >= 16 and M % 16 == 0:
        return min(M // 2, 256)
    return M


def pyramid_fused_pallas(gf, packed, tm=None, mxu_dtype=None):
    M, NS, Cin = gf.shape
    D = packed['wv2'].shape[0]
    if tm is None:
        tm = _pick_tm(M)
    n_blocks = pl.cdiv(M, tm)
    Mpad = n_blocks * tm
    if Mpad != M:                                            # never drop rows
        gf = jnp.pad(gf, ((0, Mpad - M), (0, 0), (0, 0)))
    if mxu_dtype is not None:
        gf = gf.astype(mxu_dtype)

    weights = [packed[k] for k in FUSED_PARAM_ORDER]
    weight_specs = [pl.BlockSpec(w.shape, lambda i, nd=w.ndim: (0,) * nd)
                    for w in weights]

    rows = Mpad * NS
    flops = (2 * rows * Cin * 3 * D        # fused P/K/V1 projection
             + 2 * rows * D * D            # value layer 2
             + 2 * Mpad * 3 * D * 4 * D    # packed gates
             + 2 * rows * D * D            # attention logits
             + 3 * 2 * Mpad * D * D)       # transformer matmuls
    transcendentals = rows * D + 4 * Mpad * D + 2 * Mpad + Mpad * D
    bytes_accessed = (gf.size * gf.dtype.itemsize
                      + n_blocks * sum(w.size * w.dtype.itemsize for w in weights)
                      + Mpad * D * 4)

    out = pl.pallas_call(
        fused_pyramid_kernel,
        out_shape=jax.ShapeDtypeStruct((Mpad, D), jnp.float32),
        grid=(n_blocks,),
        in_specs=[pl.BlockSpec((tm, NS, Cin), lambda i: (i, 0, 0))] + weight_specs,
        out_specs=pl.BlockSpec((tm, D), lambda i: (i, 0)),
        compiler_params=pltpu.CompilerParams(dimension_semantics=("parallel",)),
        cost_estimate=pl.CostEstimate(flops=int(flops),
                                      transcendentals=int(transcendentals),
                                      bytes_accessed=int(bytes_accessed)),
    )(gf, *weights)
    return out[:M]


# ----------------------------------------------------------------------------
# Deterministic parameter construction (shapes from PyramidModuleV1.__init__)
# ----------------------------------------------------------------------------
def make_params(key, c_feat, d, num_heads):
    cin = c_feat + 3
    ks = jax.random.split(key, 20)

    def kaiming(k, shape):
        fan_in = shape[0]
        return (jax.random.normal(k, shape, jnp.float32)
                * jnp.sqrt(2.0 / fan_in)).astype(jnp.float32)

    bn_scale = 1.0 / jnp.sqrt(1.0 + 1e-5)  # eval BN: gamma=1, beta=0, mean=0, var=1
    p = {
        'wpos': kaiming(ks[0], (3, d)),
        'wkey': kaiming(ks[1], (cin, d)),
        'wv1': kaiming(ks[2], (cin, d)),
        'bn1s': jnp.full((1, d), bn_scale, jnp.float32),
        'bn1b': jnp.zeros((1, d), jnp.float32),
        'wv2': kaiming(ks[3], (d, d)),
        'bn2s': jnp.full((1, d), bn_scale, jnp.float32),
        'bn2b': jnp.zeros((1, d), jnp.float32),
        'wqc': kaiming(ks[4], (d, d)),
        'wkc': kaiming(ks[5], (d, d)),
        'wqkc': kaiming(ks[6], (d, d)),
        'wvc': kaiming(ks[7], (d, d)),
        'watt': kaiming(ks[8], (d, num_heads)),
        # transformer encoder layer (d_model=d, dim_feedforward=d)
        'ln1g': jnp.ones((1, d), jnp.float32),
        'ln1b': jnp.zeros((1, d), jnp.float32),
        'wv_in': kaiming(ks[9], (d, d)),    # value slice of in_proj_weight
        'bv': 0.01 * jax.random.normal(ks[10], (1, d), jnp.float32),
        'wo': kaiming(ks[11], (d, d)),
        'bo': 0.01 * jax.random.normal(ks[12], (1, d), jnp.float32),
        'ln2g': jnp.ones((1, d), jnp.float32),
        'ln2b': jnp.zeros((1, d), jnp.float32),
        'w1': kaiming(ks[13], (d, d)),
        'b1': 0.01 * jax.random.normal(ks[14], (1, d), jnp.float32),
        'w2': kaiming(ks[15], (d, d)),
        'b2': 0.01 * jax.random.normal(ks[16], (1, d), jnp.float32),
    }
    return p


# ----------------------------------------------------------------------------
# Pure-JAX reference (mirrors the PyTorch forward, unfused params)
# ----------------------------------------------------------------------------
def reference_forward(gx, gf, p, batch_size, num_rois):
    M, NS, _ = gx.shape
    D = p['wpos'].shape[1]
    H = p['watt'].shape[1]
    HD = D // H
    gx2 = gx.reshape(M * NS, 3)
    gf2 = gf.reshape(M * NS, -1)
    P = jax.nn.relu(gx2 @ p['wpos'])
    K = jax.nn.relu(gf2 @ p['wkey'])
    V = jax.nn.relu((gf2 @ p['wv1']) * p['bn1s'] + p['bn1b'])
    V = jax.nn.relu((V @ p['wv2']) * p['bn2s'] + p['bn2b'])
    PK = P * K
    P3 = P.reshape(M, NS, D); K3 = K.reshape(M, NS, D)
    PK3 = PK.reshape(M, NS, D); V3 = V.reshape(M, NS, D)
    v_coef = jax.nn.sigmoid(P3.mean(1) @ p['wvc'])
    q_coef = jax.nn.sigmoid(P3.mean(1) @ p['wqc'])
    k_coef = jax.nn.sigmoid(K3.mean(1) @ p['wkc'])
    qk_coef = jax.nn.sigmoid(PK3.mean(1) @ p['wqkc'])
    V3 = V3 + P3 * v_coef[:, None, :]
    A3 = P3 * q_coef[:, None, :] + K3 * k_coef[:, None, :] + PK3 * qk_coef[:, None, :]
    logits = (A3.reshape(M * NS, D) @ p['watt']).reshape(M, NS, H)
    attn = jax.nn.softmax(logits, axis=1)
    attn_full = jnp.repeat(attn, HD, axis=-1)          # head h repeated HD times
    attend = jnp.sum(attn_full * V3, axis=1)           # (M, D)

    def ln(x, g, b):
        mu = x.mean(-1, keepdims=True)
        var = ((x - mu) ** 2).mean(-1, keepdims=True)
        return (x - mu) / jnp.sqrt(var + 1e-5) * g + b

    src = attend
    h = ln(src, p['ln1g'], p['ln1b'])
    a = (h @ p['wv_in'] + p['bv']) @ p['wo'] + p['bo']
    src = src + a
    h2 = ln(src, p['ln2g'], p['ln2b'])
    ff = jax.nn.relu(h2 @ p['w1'] + p['b1']) @ p['w2'] + p['b2']
    src = src + ff
    new_features = attend + src                        # Residual mode
    return new_features.reshape(batch_size, num_rois, D).transpose(0, 2, 1)


# ----------------------------------------------------------------------------
# End-to-end module
# ----------------------------------------------------------------------------
def pyramid_module_v1_forward(xyz, new_xyz, features, params, radius, nsample,
                              tm=None, mxu_dtype=None):
    # xyz:      (B, Nper, 3)
    # new_xyz:  (B, num_rois, 3)
    # features: (B, C, Nper)   (channels-first, matching the PyTorch caller)
    B, num_rois, _ = new_xyz.shape
    C = features.shape[1]
    xyz_flat = xyz.reshape(-1, 3)
    feat_flat = jnp.transpose(features, (0, 2, 1)).reshape(-1, C)
    new_xyz_flat = new_xyz.reshape(-1, 3)
    gx, gf, _empty = ball_query_and_group(xyz_flat, feat_flat, new_xyz_flat,
                                          radius, nsample)
    packed = pack_params(params, mxu_dtype=mxu_dtype)
    new_feat = pyramid_fused_pallas(gf, packed, tm=tm, mxu_dtype=mxu_dtype)  # (M, D)
    D = new_feat.shape[-1]
    reg = new_feat.reshape(B, num_rois, D).transpose(0, 2, 1)      # (B, D, num_rois)
    return reg, gx, gf


if __name__ == "__main__":
    key = jax.random.PRNGKey(0)
    B, Nper, C = 2, 64, 13          # input_channels=13 -> grouper channels = 16
    num_rois = 8                    # grid_size = 1 -> M = B * num_rois = 16
    D, H = 32, 4                    # output_channels[-1] = 32, num_heads = 4
    NS = 16                         # nsamples
    radius = 0.4

    k1, k2, k3, k4 = jax.random.split(key, 4)
    xyz = jax.random.uniform(k1, (B, Nper, 3), jnp.float32)
    features = jax.random.normal(k2, (B, C, Nper), jnp.float32)
    new_xyz = jax.random.uniform(k3, (B, num_rois, 3), jnp.float32)
    params = make_params(k4, C, D, H)

    # mxu_dtype=jnp.bfloat16 is the recommended setting on v6e/v7x (f32 on v5e).
    out, gx, gf = pyramid_module_v1_forward(xyz, new_xyz, features, params,
                                            radius, NS, tm=None, mxu_dtype=None)
    out = jax.block_until_ready(out)

    assert out.shape == (B, D, num_rois), out.shape
    assert bool(jnp.all(jnp.isfinite(out)))

    ref = reference_forward(gx, gf, params, B, num_rois)
    max_err = float(jnp.max(jnp.abs(out - ref)))
    # approx-reciprocal softmax + pre-composed weights -> slightly relaxed tol
    assert jnp.allclose(out, ref, atol=2e-2, rtol=2e-2), f"max_err={max_err}"

    print("KERNEL_OK")
</pallas_src>

<mosaic_0001>
module attributes {stable_mosaic.version = 11 : i64} {
  func.func @fused_pyramid_kernel(%arg0: i32, %arg1: memref<8x16x16xf32, #tpu.memory_space<vmem>>, %arg2: memref<16x96xf32, #tpu.memory_space<vmem>>, %arg3: memref<1x32xf32, #tpu.memory_space<vmem>>, %arg4: memref<32x32xf32, #tpu.memory_space<vmem>>, %arg5: memref<1x32xf32, #tpu.memory_space<vmem>>, %arg6: memref<96x128xf32, #tpu.memory_space<vmem>>, %arg7: memref<32x32xf32, #tpu.memory_space<vmem>>, %arg8: memref<1x32xf32, #tpu.memory_space<vmem>>, %arg9: memref<1x32xf32, #tpu.memory_space<vmem>>, %arg10: memref<32x32xf32, #tpu.memory_space<vmem>>, %arg11: memref<1x32xf32, #tpu.memory_space<vmem>>, %arg12: memref<1x32xf32, #tpu.memory_space<vmem>>, %arg13: memref<1x32xf32, #tpu.memory_space<vmem>>, %arg14: memref<32x32xf32, #tpu.memory_space<vmem>>, %arg15: memref<1x32xf32, #tpu.memory_space<vmem>>, %arg16: memref<32x32xf32, #tpu.memory_space<vmem>>, %arg17: memref<1x32xf32, #tpu.memory_space<vmem>>, %arg18: memref<8x32xf32, #tpu.memory_space<vmem>>) attributes {dimension_semantics = [#tpu.dimension_semantics<parallel>], iteration_bounds = array<i64: 2>, scalar_prefetch = 0 : i64, scratch_operands = 0 : i64, tpu.core_type = #tpu.core_type<tc>, window_params = [{transform_indices = @transform_0, window_bounds = array<i64: 8, 16, 16>}, {pipeline_mode = #tpu.pipeline_mode<synchronous>, transform_indices = @transform_1, window_bounds = array<i64: 16, 96>}, {pipeline_mode = #tpu.pipeline_mode<synchronous>, transform_indices = @transform_2, window_bounds = array<i64: 1, 32>}, {pipeline_mode = #tpu.pipeline_mode<synchronous>, transform_indices = @transform_3, window_bounds = array<i64: 32, 32>}, {pipeline_mode = #tpu.pipeline_mode<synchronous>, transform_indices = @transform_4, window_bounds = array<i64: 1, 32>}, {pipeline_mode = #tpu.pipeline_mode<synchronous>, transform_indices = @transform_5, window_bounds = array<i64: 96, 128>}, {pipeline_mode = #tpu.pipeline_mode<synchronous>, transform_indices = @transform_6, window_bounds = array<i64: 32, 32>}, {pipeline_mode = #tpu.pipeline_mode<synchronous>, transform_indices = @transform_7, window_bounds = array<i64: 1, 32>}, {pipeline_mode = #tpu.pipeline_mode<synchronous>, transform_indices = @transform_8, window_bounds = array<i64: 1, 32>}, {pipeline_mode = #tpu.pipeline_mode<synchronous>, transform_indices = @transform_9, window_bounds = array<i64: 32, 32>}, {pipeline_mode = #tpu.pipeline_mode<synchronous>, transform_indices = @transform_10, window_bounds = array<i64: 1, 32>}, {pipeline_mode = #tpu.pipeline_mode<synchronous>, transform_indices = @transform_11, window_bounds = array<i64: 1, 32>}, {pipeline_mode = #tpu.pipeline_mode<synchronous>, transform_indices = @transform_12, window_bounds = array<i64: 1, 32>}, {pipeline_mode = #tpu.pipeline_mode<synchronous>, transform_indices = @transform_13, window_bounds = array<i64: 32, 32>}, {pipeline_mode = #tpu.pipeline_mode<synchronous>, transform_indices = @transform_14, window_bounds = array<i64: 1, 32>}, {pipeline_mode = #tpu.pipeline_mode<synchronous>, transform_indices = @transform_15, window_bounds = array<i64: 32, 32>}, {pipeline_mode = #tpu.pipeline_mode<synchronous>, transform_indices = @transform_16, window_bounds = array<i64: 1, 32>}, {transform_indices = @transform_17, window_bounds = array<i64: 8, 32>}]} {
    %c0 = arith.constant 0 : index
    %c0_0 = arith.constant 0 : index
    %c0_1 = arith.constant 0 : index
    %0 = vector.load %arg1[%c0, %c0_0, %c0_1] : memref<8x16x16xf32, #tpu.memory_space<vmem>>, vector<8x16x16xf32>
    %1 = vector.shape_cast %0 : vector<8x16x16xf32> to vector<128x16xf32>
    %c0_2 = arith.constant 0 : index
    %c0_3 = arith.constant 0 : index
    %2 = vector.load %arg2[%c0_2, %c0_3] : memref<16x96xf32, #tpu.memory_space<vmem>>, vector<16x96xf32>
    %cst = arith.constant dense<0.000000e+00> : vector<128x96xf32>
    %3 = tpu.matmul %1, %2, %cst {dimension_numbers = #tpu.dot_dimension_numbers<[1], [0], [0], [1], [0, 0, 1, 1], [], []>} : vector<128x16xf32>, vector<16x96xf32>, vector<128x96xf32> -> vector<128x96xf32>
    %4 = vector.extract_strided_slice %3 {offsets = [0, 0], sizes = [128, 32], strides = [1, 1]} : vector<128x96xf32> to vector<128x32xf32>
    %cst_4 = arith.constant 0.000000e+00 : f32
    %5 = vector.broadcast %cst_4 : f32 to vector<128x32xf32>
    %6 = arith.maximumf %4, %5 : vector<128x32xf32>
    %7 = vector.extract_strided_slice %3 {offsets = [0, 32], sizes = [128, 32], strides = [1, 1]} : vector<128x96xf32> to vector<128x32xf32>
    %cst_5 = arith.constant 0.000000e+00 : f32
    %8 = vector.broadcast %cst_5 : f32 to vector<128x32xf32>
    %9 = arith.maximumf %7, %8 : vector<128x32xf32>
    %10 = vector.extract_strided_slice %3 {offsets = [0, 64], sizes = [128, 32], strides = [1, 1]} : vector<128x96xf32> to vector<128x32xf32>
    %c0_6 = arith.constant 0 : index
    %c0_7 = arith.constant 0 : index
    %11 = vector.load %arg3[%c0_6, %c0_7] : memref<1x32xf32, #tpu.memory_space<vmem>>, vector<1x32xf32>
    %12 = vector.broadcast %11 : vector<1x32xf32> to vector<128x32xf32>
    %13 = arith.addf %10, %12 : vector<128x32xf32>
    %cst_8 = arith.constant 0.000000e+00 : f32
    %14 = vector.broadcast %cst_8 : f32 to vector<128x32xf32>
    %15 = arith.maximumf %13, %14 : vector<128x32xf32>
    %c0_9 = arith.constant 0 : index
    %c0_10 = arith.constant 0 : index
    %16 = vector.load %arg4[%c0_9, %c0_10] : memref<32x32xf32, #tpu.memory_space<vmem>>, vector<32x32xf32>
    %cst_11 = arith.constant dense<0.000000e+00> : vector<128x32xf32>
    %17 = tpu.matmul %15, %16, %cst_11 {dimension_numbers = #tpu.dot_dimension_numbers<[1], [0], [0], [1], [0, 0, 1, 1], [], []>} : vector<128x32xf32>, vector<32x32xf32>, vector<128x32xf32> -> vector<128x32xf32>
    %c0_12 = arith.constant 0 : index
    %c0_13 = arith.constant 0 : index
    %18 = vector.load %arg5[%c0_12, %c0_13] : memref<1x32xf32, #tpu.memory_space<vmem>>, vector<1x32xf32>
    %19 = vector.broadcast %18 : vector<1x32xf32> to vector<128x32xf32>
    %20 = arith.addf %17, %19 : vector<128x32xf32>
    %cst_14 = arith.constant 0.000000e+00 : f32
    %21 = vector.broadcast %cst_14 : f32 to vector<128x32xf32>
    %22 = arith.maximumf %20, %21 : vector<128x32xf32>
    %23 = arith.mulf %6, %9 : vector<128x32xf32>
    %24 = vector.shape_cast %6 : vector<128x32xf32> to vector<8x16x32xf32>
    %25 = vector.shape_cast %9 : vector<128x32xf32> to vector<8x16x32xf32>
    %26 = vector.shape_cast %23 : vector<128x32xf32> to vector<8x16x32xf32>
    %27 = vector.shape_cast %22 : vector<128x32xf32> to vector<8x16x32xf32>
    %cst_15 = arith.constant dense<0.000000e+00> : vector<8x32xf32>
    %28 = vector.multi_reduction <add>, %24, %cst_15 [1] : vector<8x16x32xf32> to vector<8x32xf32>
    %cst_16 = arith.constant 1.600000e+01 : f32
    %29 = vector.broadcast %cst_16 : f32 to vector<8x32xf32>
    %30 = arith.divf %28, %29 : vector<8x32xf32>
    %cst_17 = arith.constant dense<0.000000e+00> : vector<8x32xf32>
    %31 = vector.multi_reduction <add>, %25, %cst_17 [1] : vector<8x16x32xf32> to vector<8x32xf32>
    %cst_18 = arith.constant 1.600000e+01 : f32
    %32 = vector.broadcast %cst_18 : f32 to vector<8x32xf32>
    %33 = arith.divf %31, %32 : vector<8x32xf32>
    %cst_19 = arith.constant dense<0.000000e+00> : vector<8x32xf32>
    %34 = vector.multi_reduction <add>, %26, %cst_19 [1] : vector<8x16x32xf32> to vector<8x32xf32>
    %cst_20 = arith.constant 1.600000e+01 : f32
    %35 = vector.broadcast %cst_20 : f32 to vector<8x32xf32>
    %36 = arith.divf %34, %35 : vector<8x32xf32>
    %37 = tpu.concatenate %30, %33, %36 in 1 : vector<8x32xf32>, vector<8x32xf32>, vector<8x32xf32> -> vector<8x96xf32>
    %c0_21 = arith.constant 0 : index
    %c0_22 = arith.constant 0 : index
    %38 = vector.load %arg6[%c0_21, %c0_22] : memref<96x128xf32, #tpu.memory_space<vmem>>, vector<96x128xf32>
    %cst_23 = arith.constant dense<0.000000e+00> : vector<8x128xf32>
    %39 = tpu.matmul %37, %38, %cst_23 {dimension_numbers = #tpu.dot_dimension_numbers<[1], [0], [0], [1], [0, 0, 1, 1], [], []>} : vector<8x96xf32>, vector<96x128xf32>, vector<8x128xf32> -> vector<8x128xf32>
    %40 = arith.negf %39 : vector<8x128xf32>
    %41 = math.exp %40 : vector<8x128xf32>
    %cst_24 = arith.constant 1.000000e+00 : f32
    %42 = vector.broadcast %cst_24 : f32 to vector<8x128xf32>
    %43 = arith.addf %42, %41 : vector<8x128xf32>
    %44 = arith.divf %42, %43 : vector<8x128xf32>
    %45 = vector.extract_strided_slice %44 {offsets = [0, 0], sizes = [8, 32], strides = [1, 1]} : vector<8x128xf32> to vector<8x32xf32>
    %46 = vector.extract_strided_slice %44 {offsets = [0, 32], sizes = [8, 32], strides = [1, 1]} : vector<8x128xf32> to vector<8x32xf32>
    %47 = vector.extract_strided_slice %44 {offsets = [0, 64], sizes = [8, 32], strides = [1, 1]} : vector<8x128xf32> to vector<8x32xf32>
    %48 = vector.extract_strided_slice %44 {offsets = [0, 96], sizes = [8, 32], strides = [1, 1]} : vector<8x128xf32> to vector<8x32xf32>
    %49 = vector.shape_cast %45 : vector<8x32xf32> to vector<8x1x32xf32>
    %50 = vector.broadcast %49 : vector<8x1x32xf32> to vector<8x16x32xf32>
    %51 = arith.mulf %24, %50 : vector<8x16x32xf32>
    %52 = arith.addf %27, %51 : vector<8x16x32xf32>
    %53 = vector.shape_cast %46 : vector<8x32xf32> to vector<8x1x32xf32>
    %54 = vector.broadcast %53 : vector<8x1x32xf32> to vector<8x16x32xf32>
    %55 = arith.mulf %24, %54 : vector<8x16x32xf32>
    %56 = vector.shape_cast %47 : vector<8x32xf32> to vector<8x1x32xf32>
    %57 = vector.broadcast %56 : vector<8x1x32xf32> to vector<8x16x32xf32>
    %58 = arith.mulf %25, %57 : vector<8x16x32xf32>
    %59 = arith.addf %55, %58 : vector<8x16x32xf32>
    %60 = vector.shape_cast %48 : vector<8x32xf32> to vector<8x1x32xf32>
    %61 = vector.broadcast %60 : vector<8x1x32xf32> to vector<8x16x32xf32>
    %62 = arith.mulf %26, %61 : vector<8x16x32xf32>
    %63 = arith.addf %59, %62 : vector<8x16x32xf32>
    %64 = vector.shape_cast %63 : vector<8x16x32xf32> to vector<128x32xf32>
    %c0_25 = arith.constant 0 : index
    %c0_26 = arith.constant 0 : index
    %65 = vector.load %arg7[%c0_25, %c0_26] : memref<32x32xf32, #tpu.memory_space<vmem>>, vector<32x32xf32>
    %cst_27 = arith.constant dense<0.000000e+00> : vector<128x32xf32>
    %66 = tpu.matmul %64, %65, %cst_27 {dimension_numbers = #tpu.dot_dimension_numbers<[1], [0], [0], [1], [0, 0, 1, 1], [], []>} : vector<128x32xf32>, vector<32x32xf32>, vector<128x32xf32> -> vector<128x32xf32>
    %67 = vector.shape_cast %66 : vector<128x32xf32> to vector<8x16x32xf32>
    %cst_28 = arith.constant dense<0xFF800000> : vector<8x32xf32>
    %68 = vector.multi_reduction <maximumf>, %67, %cst_28 [1] : vector<8x16x32xf32> to vector<8x32xf32>
    %69 = vector.shape_cast %68 : vector<8x32xf32> to vector<8x1x32xf32>
    %70 = vector.broadcast %69 : vector<8x1x32xf32> to vector<8x16x32xf32>
    %71 = arith.subf %67, %70 : vector<8x16x32xf32>
    %72 = math.exp %71 : vector<8x16x32xf32>
    %cst_29 = arith.constant dense<0.000000e+00> : vector<8x32xf32>
    %73 = vector.multi_reduction <add>, %72, %cst_29 [1] : vector<8x16x32xf32> to vector<8x32xf32>
    %74 = vector.shape_cast %73 : vector<8x32xf32> to vector<8x1x32xf32>
    %75 = tpu.reciprocal %74 {approx = true} : vector<8x1x32xf32> -> vector<8x1x32xf32>
    %76 = vector.broadcast %75 : vector<8x1x32xf32> to vector<8x16x32xf32>
    %77 = arith.mulf %72, %76 : vector<8x16x32xf32>
    %78 = arith.mulf %77, %52 : vector<8x16x32xf32>
    %cst_30 = arith.constant dense<0.000000e+00> : vector<8x32xf32>
    %79 = vector.multi_reduction <add>, %78, %cst_30 [1] : vector<8x16x32xf32> to vector<8x32xf32>
    %c0_31 = arith.constant 0 : index
    %c0_32 = arith.constant 0 : index
    %80 = vector.load %arg8[%c0_31, %c0_32] : memref<1x32xf32, #tpu.memory_space<vmem>>, vector<1x32xf32>
    %c0_33 = arith.constant 0 : index
    %c0_34 = arith.constant 0 : index
    %81 = vector.load %arg9[%c0_33, %c0_34] : memref<1x32xf32, #tpu.memory_space<vmem>>, vector<1x32xf32>
    %cst_35 = arith.constant dense<0.000000e+00> : vector<8xf32>
    %82 = vector.multi_reduction <add>, %79, %cst_35 [1] : vector<8x32xf32> to vector<8xf32>
    %83 = vector.shape_cast %82 : vector<8xf32> to vector<8x1xf32>
    %cst_36 = arith.constant 3.200000e+01 : f32
    %84 = vector.broadcast %cst_36 : f32 to vector<8x1xf32>
    %85 = arith.divf %83, %84 : vector<8x1xf32>
    %86 = vector.broadcast %85 : vector<8x1xf32> to vector<8x32xf32>
    %87 = arith.subf %79, %86 : vector<8x32xf32>
    %88 = arith.mulf %87, %87 : vector<8x32xf32>
    %cst_37 = arith.constant dense<0.000000e+00> : vector<8xf32>
    %89 = vector.multi_reduction <add>, %88, %cst_37 [1] : vector<8x32xf32> to vector<8xf32>
    %90 = vector.shape_cast %89 : vector<8xf32> to vector<8x1xf32>
    %cst_38 = arith.constant 3.200000e+01 : f32
    %91 = vector.broadcast %cst_38 : f32 to vector<8x1xf32>
    %92 = arith.divf %90, %91 : vector<8x1xf32>
    %93 = vector.broadcast %85 : vector<8x1xf32> to vector<8x32xf32>
    %94 = arith.subf %79, %93 : vector<8x32xf32>
    %cst_39 = arith.constant 9.99999974E-6 : f32
    %95 = vector.broadcast %cst_39 : f32 to vector<8x1xf32>
    %96 = arith.addf %92, %95 : vector<8x1xf32>
    %97 = math.rsqrt %96 : vector<8x1xf32>
    %98 = vector.broadcast %97 : vector<8x1xf32> to vector<8x32xf32>
    %99 = arith.mulf %94, %98 : vector<8x32xf32>
    %100 = vector.broadcast %80 : vector<1x32xf32> to vector<8x32xf32>
    %101 = arith.mulf %99, %100 : vector<8x32xf32>
    %102 = vector.broadcast %81 : vector<1x32xf32> to vector<8x32xf32>
    %103 = arith.addf %101, %102 : vector<8x32xf32>
    %c0_40 = arith.constant 0 : index
    %c0_41 = arith.constant 0 : index
    %104 = vector.load %arg10[%c0_40, %c0_41] : memref<32x32xf32, #tpu.memory_space<vmem>>, vector<32x32xf32>
    %cst_42 = arith.constant dense<0.000000e+00> : vector<8x32xf32>
    %105 = tpu.matmul %103, %104, %cst_42 {dimension_numbers = #tpu.dot_dimension_numbers<[1], [0], [0], [1], [0, 0, 1, 1], [], []>} : vector<8x32xf32>, vector<32x32xf32>, vector<8x32xf32> -> vector<8x32xf32>
    %106 = arith.addf %79, %105 : vector<8x32xf32>
    %c0_43 = arith.constant 0 : index
    %c0_44 = arith.constant 0 : index
    %107 = vector.load %arg11[%c0_43, %c0_44] : memref<1x32xf32, #tpu.memory_space<vmem>>, vector<1x32xf32>
    %108 = vector.broadcast %107 : vector<1x32xf32> to vector<8x32xf32>
    %109 = arith.addf %106, %108 : vector<8x32xf32>
    %c0_45 = arith.constant 0 : index
    %c0_46 = arith.constant 0 : index
    %110 = vector.load %arg12[%c0_45, %c0_46] : memref<1x32xf32, #tpu.memory_space<vmem>>, vector<1x32xf32>
    %c0_47 = arith.constant 0 : index
    %c0_48 = arith.constant 0 : index
    %111 = vector.load %arg13[%c0_47, %c0_48] : memref<1x32xf32, #tpu.memory_space<vmem>>, vector<1x32xf32>
    %cst_49 = arith.constant dense<0.000000e+00> : vector<8xf32>
    %112 = vector.multi_reduction <add>, %109, %cst_49 [1] : vector<8x32xf32> to vector<8xf32>
    %113 = vector.shape_cast %112 : vector<8xf32> to vector<8x1xf32>
    %cst_50 = arith.constant 3.200000e+01 : f32
    %114 = vector.broadcast %cst_50 : f32 to vector<8x1xf32>
    %115 = arith.divf %113, %114 : vector<8x1xf32>
    %116 = vector.broadcast %115 : vector<8x1xf32> to vector<8x32xf32>
    %117 = arith.subf %109, %116 : vector<8x32xf32>
    %118 = arith.mulf %117, %117 : vector<8x32xf32>
    %cst_51 = arith.constant dense<0.000000e+00> : vector<8xf32>
    %119 = vector.multi_reduction <add>, %118, %cst_51 [1] : vector<8x32xf32> to vector<8xf32>
    %120 = vector.shape_cast %119 : vector<8xf32> to vector<8x1xf32>
    %cst_52 = arith.constant 3.200000e+01 : f32
    %121 = vector.broadcast %cst_52 : f32 to vector<8x1xf32>
    %122 = arith.divf %120, %121 : vector<8x1xf32>
    %123 = vector.broadcast %115 : vector<8x1xf32> to vector<8x32xf32>
    %124 = arith.subf %109, %123 : vector<8x32xf32>
    %cst_53 = arith.constant 9.99999974E-6 : f32
    %125 = vector.broadcast %cst_53 : f32 to vector<8x1xf32>
    %126 = arith.addf %122, %125 : vector<8x1xf32>
    %127 = math.rsqrt %126 : vector<8x1xf32>
    %128 = vector.broadcast %127 : vector<8x1xf32> to vector<8x32xf32>
    %129 = arith.mulf %124, %128 : vector<8x32xf32>
    %130 = vector.broadcast %110 : vector<1x32xf32> to vector<8x32xf32>
    %131 = arith.mulf %129, %130 : vector<8x32xf32>
    %132 = vector.broadcast %111 : vector<1x32xf32> to vector<8x32xf32>
    %133 = arith.addf %131, %132 : vector<8x32xf32>
    %c0_54 = arith.constant 0 : index
    %c0_55 = arith.constant 0 : index
    %134 = vector.load %arg14[%c0_54, %c0_55] : memref<32x32xf32, #tpu.memory_space<vmem>>, vector<32x32xf32>
    %cst_56 = arith.constant dense<0.000000e+00> : vector<8x32xf32>
    %135 = tpu.matmul %133, %134, %cst_56 {dimension_numbers = #tpu.dot_dimension_numbers<[1], [0], [0], [1], [0, 0, 1, 1], [], []>} : vector<8x32xf32>, vector<32x32xf32>, vector<8x32xf32> -> vector<8x32xf32>
    %c0_57 = arith.constant 0 : index
    %c0_58 = arith.constant 0 : index
    %136 = vector.load %arg15[%c0_57, %c0_58] : memref<1x32xf32, #tpu.memory_space<vmem>>, vector<1x32xf32>
    %137 = vector.broadcast %136 : vector<1x32xf32> to vector<8x32xf32>
    %138 = arith.addf %135, %137 : vector<8x32xf32>
    %cst_59 = arith.constant 0.000000e+00 : f32
    %139 = vector.broadcast %cst_59 : f32 to vector<8x32xf32>
    %140 = arith.maximumf %138, %139 : vector<8x32xf32>
    %c0_60 = arith.constant 0 : index
    %c0_61 = arith.constant 0 : index
    %141 = vector.load %arg16[%c0_60, %c0_61] : memref<32x32xf32, #tpu.memory_space<vmem>>, vector<32x32xf32>
    %cst_62 = arith.constant dense<0.000000e+00> : vector<8x32xf32>
    %142 = tpu.matmul %140, %141, %cst_62 {dimension_numbers = #tpu.dot_dimension_numbers<[1], [0], [0], [1], [0, 0, 1, 1], [], []>} : vector<8x32xf32>, vector<32x32xf32>, vector<8x32xf32> -> vector<8x32xf32>
    %143 = arith.addf %109, %142 : vector<8x32xf32>
    %c0_63 = arith.constant 0 : index
    %c0_64 = arith.constant 0 : index
    %144 = vector.load %arg17[%c0_63, %c0_64] : memref<1x32xf32, #tpu.memory_space<vmem>>, vector<1x32xf32>
    %145 = vector.broadcast %144 : vector<1x32xf32> to vector<8x32xf32>
    %146 = arith.addf %143, %145 : vector<8x32xf32>
    %147 = arith.addf %79, %146 : vector<8x32xf32>
    %c0_65 = arith.constant 0 : index
    %c0_66 = arith.constant 0 : index
    %148 = vector.load %arg18[%c0_65, %c0_66] : memref<8x32xf32, #tpu.memory_space<vmem>>, vector<8x32xf32>
    tpu.vector_store %arg18[%c0_65, %c0_66], %147 {strides = array<i32>} : memref<8x32xf32, #tpu.memory_space<vmem>>, vector<8x32xf32>,
    return
  }
  func.func @transform_0(%arg0: i32) -> (i32, i32, i32) {
    %c0_i32 = arith.constant 0 : i32
    %c0_i32_0 = arith.constant 0 : i32
    %c0_i32_1 = arith.constant 0 : i32
    return %arg0, %c0_i32, %c0_i32_0 : i32, i32, i32
  }
  func.func @transform_1(%arg0: i32) -> (i32, i32) {
    %c0_i32 = arith.constant 0 : i32
    %c0_i32_0 = arith.constant 0 : i32
    %c0_i32_1 = arith.constant 0 : i32
    return %c0_i32, %c0_i32_0 : i32, i32
  }
  func.func @transform_2(%arg0: i32) -> (i32, i32) {
    %c0_i32 = arith.constant 0 : i32
    %c0_i32_0 = arith.constant 0 : i32
    %c0_i32_1 = arith.constant 0 : i32
    return %c0_i32, %c0_i32_0 : i32, i32
  }
  func.func @transform_3(%arg0: i32) -> (i32, i32) {
    %c0_i32 = arith.constant 0 : i32
    %c0_i32_0 = arith.constant 0 : i32
    %c0_i32_1 = arith.constant 0 : i32
    return %c0_i32, %c0_i32_0 : i32, i32
  }
  func.func @transform_4(%arg0: i32) -> (i32, i32) {
    %c0_i32 = arith.constant 0 : i32
    %c0_i32_0 = arith.constant 0 : i32
    %c0_i32_1 = arith.constant 0 : i32
    return %c0_i32, %c0_i32_0 : i32, i32
  }
  func.func @transform_5(%arg0: i32) -> (i32, i32) {
    %c0_i32 = arith.constant 0 : i32
    %c0_i32_0 = arith.constant 0 : i32
    %c0_i32_1 = arith.constant 0 : i32
    return %c0_i32, %c0_i32_0 : i32, i32
  }
  func.func @transform_6(%arg0: i32) -> (i32, i32) {
    %c0_i32 = arith.constant 0 : i32
    %c0_i32_0 = arith.constant 0 : i32
    %c0_i32_1 = arith.constant 0 : i32
    return %c0_i32, %c0_i32_0 : i32, i32
  }
  func.func @transform_7(%arg0: i32) -> (i32, i32) {
    %c0_i32 = arith.constant 0 : i32
    %c0_i32_0 = arith.constant 0 : i32
    %c0_i32_1 = arith.constant 0 : i32
    return %c0_i32, %c0_i32_0 : i32, i32
  }
  func.func @transform_8(%arg0: i32) -> (i32, i32) {
    %c0_i32 = arith.constant 0 : i32
    %c0_i32_0 = arith.constant 0 : i32
    %c0_i32_1 = arith.constant 0 : i32
    return %c0_i32, %c0_i32_0 : i32, i32
  }
  func.func @transform_9(%arg0: i32) -> (i32, i32) {
    %c0_i32 = arith.constant 0 : i32
    %c0_i32_0 = arith.constant 0 : i32
    %c0_i32_1 = arith.constant 0 : i32
    return %c0_i32, %c0_i32_0 : i32, i32
  }
  func.func @transform_10(%arg0: i32) -> (i32, i32) {
    %c0_i32 = arith.constant 0 : i32
    %c0_i32_0 = arith.constant 0 : i32
    %c0_i32_1 = arith.constant 0 : i32
    return %c0_i32, %c0_i32_0 : i32, i32
  }
  func.func @transform_11(%arg0: i32) -> (i32, i32) {
    %c0_i32 = arith.constant 0 : i32
    %c0_i32_0 = arith.constant 0 : i32
    %c0_i32_1 = arith.constant 0 : i32
    return %c0_i32, %c0_i32_0 : i32, i32
  }
  func.func @transform_12(%arg0: i32) -> (i32, i32) {
    %c0_i32 = arith.constant 0 : i32
    %c0_i32_0 = arith.constant 0 : i32
    %c0_i32_1 = arith.constant 0 : i32
    return %c0_i32, %c0_i32_0 : i32, i32
  }
  func.func @transform_13(%arg0: i32) -> (i32, i32) {
    %c0_i32 = arith.constant 0 : i32
    %c0_i32_0 = arith.constant 0 : i32
    %c0_i32_1 = arith.constant 0 : i32
    return %c0_i32, %c0_i32_0 : i32, i32
  }
  func.func @transform_14(%arg0: i32) -> (i32, i32) {
    %c0_i32 = arith.constant 0 : i32
    %c0_i32_0 = arith.constant 0 : i32
    %c0_i32_1 = arith.constant 0 : i32
    return %c0_i32, %c0_i32_0 : i32, i32
  }
  func.func @transform_15(%arg0: i32) -> (i32, i32) {
    %c0_i32 = arith.constant 0 : i32
    %c0_i32_0 = arith.constant 0 : i32
    %c0_i32_1 = arith.constant 0 : i32
    return %c0_i32, %c0_i32_0 : i32, i32
  }
  func.func @transform_16(%arg0: i32) -> (i32, i32) {
    %c0_i32 = arith.constant 0 : i32
    %c0_i32_0 = arith.constant 0 : i32
    %c0_i32_1 = arith.constant 0 : i32
    return %c0_i32, %c0_i32_0 : i32, i32
  }
  func.func @transform_17(%arg0: i32) -> (i32, i32) {
    %c0_i32 = arith.constant 0 : i32
    %c0_i32_0 = arith.constant 0 : i32
    return %arg0, %c0_i32 : i32, i32
  }
}

</mosaic_0001>

<llo_original>
// kernel: tpu_custom_call.1
$region0: #{tpu_custom_call.1}
  #allocation0 [shape = 'u32[]', space=smem, size = 0x4, offset = 0x4, fixed_abs, tag = 'smem constant byte address 0x4 - core index']
  #allocation1 [shape = 'u32[144,128]{1,0:T(1,128)}', space=vmem, size = 0x12000, scoped, tag = 'internal scratch']
  %s0 = inlined_call_operand.hbm [shape: f32[16,16,16], index: 0, kind: input, shape index: {}]
  %s1 = inlined_call_operand.hbm [shape: f32[16,96], index: 1, kind: input, shape index: {}]
  %s2 = inlined_call_operand.vmem [shape: f32[1,32], index: 2, kind: input, shape index: {}]
  %s3 = inlined_call_operand.hbm [shape: f32[32,32], index: 3, kind: input, shape index: {}]
  %s4 = inlined_call_operand.vmem [shape: f32[1,32], index: 4, kind: input, shape index: {}]
  %s5 = inlined_call_operand.hbm [shape: f32[96,128], index: 5, kind: input, shape index: {}]
  %s6 = inlined_call_operand.hbm [shape: f32[32,32], index: 6, kind: input, shape index: {}]
  %s7 = inlined_call_operand.hbm [shape: f32[1,32], index: 7, kind: input, shape index: {}]
  %s8 = inlined_call_operand.hbm [shape: f32[1,32], index: 8, kind: input, shape index: {}]
  %s9 = inlined_call_operand.vmem [shape: f32[32,32], index: 9, kind: input, shape index: {}]
  %s10 = inlined_call_operand.vmem [shape: f32[1,32], index: 10, kind: input, shape index: {}]
  %s11 = inlined_call_operand.vmem [shape: f32[1,32], index: 11, kind: input, shape index: {}]
  %s12 = inlined_call_operand.vmem [shape: f32[1,32], index: 12, kind: input, shape index: {}]
  %s13 = inlined_call_operand.hbm [shape: f32[32,32], index: 13, kind: input, shape index: {}]
  %s14 = inlined_call_operand.vmem [shape: f32[1,32], index: 14, kind: input, shape index: {}]
  %s15 = inlined_call_operand.hbm [shape: f32[32,32], index: 15, kind: input, shape index: {}]
  %s16 = inlined_call_operand.vmem [shape: f32[1,32], index: 16, kind: input, shape index: {}]
  %s17 = inlined_call_operand.hbm [shape: f32[16,32], index: 17, kind: output, shape index: {}]
  %s18 = sld [smem:[#allocation0]]
  $region137: #{tpu_custom_call.1} parent=0
    _
  %s20 = ssub.s32 1, %s18
  %s21 = scalar_select 0, %s20, %s18
  $region1: #{tpu_custom_call.1} parent=0
    #allocation2 [shape = 'u8[131072]{0}', space=vmem, size = 0x20000, scoped, tag = 'input window, operand 0']
    #allocation3 [shape = 's32[2]{0}', space=sflag, size = 0x8, scoped, tag = 'scoped memory for tpu_custom_call.1']
    #allocation4 [shape = 's32[2]{0}', space=sflag, size = 0x8, scoped, tag = 'scoped memory for tpu_custom_call.1']
    #allocation5 [shape = 'u8[8192]{0}', space=vmem, size = 0x2000, scoped, tag = 'input window, operand 1, single buffered']
    #allocation6 [shape = 's32[1]{0}', space=sflag, size = 0x4, scoped, tag = 'scoped memory for tpu_custom_call.1']
    #allocation7 [shape = 'u8[16384]{0}', space=vmem, size = 0x4000, scoped, tag = 'input window, operand 3, single buffered']
    #allocation8 [shape = 'u8[49152]{0}', space=vmem, size = 0xc000, scoped, tag = 'input window, operand 5, single buffered']
    #allocation9 [shape = 's32[1]{0}', space=sflag, size = 0x4, scoped, tag = 'scoped memory for tpu_custom_call.1']
    #allocation10 [shape = 'u8[16384]{0}', space=vmem, size = 0x4000, scoped, tag = 'input window, operand 6, single buffered']
    #allocation11 [shape = 'u8[512]{0}', space=vmem, size = 0x400, scoped, tag = 'input window, operand 7, single buffered']
    #allocation12 [shape = 's32[1]{0}', space=sflag, size = 0x4, scoped, tag = 'scoped memory for tpu_custom_call.1']
    #allocation13 [shape = 'u8[512]{0}', space=vmem, size = 0x400, scoped, tag = 'input window, operand 8, single buffered']
    #allocation14 [shape = 'u8[16384]{0}', space=vmem, size = 0x4000, scoped, tag = 'input window, operand 13, single buffered']
    #allocation15 [shape = 's32[1]{0}', space=sflag, size = 0x4, scoped, tag = 'scoped memory for tpu_custom_call.1']
    #allocation16 [shape = 'u8[16384]{0}', space=vmem, size = 0x4000, scoped, tag = 'input window, operand 15, single buffered']
    #allocation17 [shape = 'u8[8192]{0}', space=vmem, size = 0x2000, scoped, tag = 'output window, operand 0']
    %22 = vsyncpa [#allocation3], 0
    %s23 = scalar_lea.sflag [#allocation3], 1
    %24 = vsyncpa %s23, 0
    %25 = vsyncpa [#allocation6], 0
    %26 = vsyncpa [#allocation9], 0
    %27 = vsyncpa [#allocation12], 0
    %28 = vsyncpa [#allocation15], 0
    %29 = vsyncpa [#allocation4], 0
    %s30 = scalar_lea.sflag [#allocation4], 1
    %31 = vsyncpa %s30, 0
    loop: start=0, step=1, limit=4
    $region2: #{tpu_custom_call.1} parent=1 // loop_pre_header
      _
    $region3: #{tpu_custom_call.1} parent=1 // loop_header
      %s33 = sphi 0, %s37
      %p34 = scmp.ge.s32.totalorder %s33, 4
      %s43 = sphi 0, %s45
      %s46 = sphi 0, %s43
      %s47 = sphi 0, %s46
      %s63 = sphi 0, %s47
      %s67 = sphi 0, %s67
      %s69 = sphi 0, %s67
      %s70 = sphi 0, %s69
      %s84 = sphi 0, %s70
      %s88 = sphi 0, %s88
      %s90 = sphi 0, %s88
      %s91 = sphi 0, %s90
      %s105 = sphi 0, %s91
      %s109 = sphi 0, %s109
      %s111 = sphi 0, %s109
      %s112 = sphi 0, %s111
      %s126 = sphi 0, %s112
      %s130 = sphi 0, %s130
      %s132 = sphi 0, %s130
      %s133 = sphi 0, %s132
      %s147 = sphi 0, %s133
      %s151 = sphi 0, %s151
      %s153 = sphi 0, %s151
      %s154 = sphi 0, %s153
      %s168 = sphi 0, %s154
      %s172 = sphi 0, %s172
      %s174 = sphi 0, %s172
      %s175 = sphi 0, %s174
      %s189 = sphi 0, %s175
      %s193 = sphi 0, %s193
      %s195 = sphi 0, %s193
      %s196 = sphi 0, %s195
      %s210 = sphi 0, %s196
      %s214 = sphi 0, %s214
      %s216 = sphi 0, %s214
      %s217 = sphi 0, %s216
      %s231 = sphi 0, %s217
      %s235 = sphi 0, %s235
      %s237 = sphi 0, %s235
      %s238 = sphi 0, %s237
      %s252 = sphi 0, %s238
      %s256 = sphi 0, %s256
      %s258 = sphi 0, %s256
      %s259 = sphi 0, %s258
      %s273 = sphi 0, %s259
      %s277 = sphi 0, %s277
      %s279 = sphi 0, %s277
      %s280 = sphi 0, %s279
      %s294 = sphi 0, %s280
      %s298 = sphi 0, %s298
      %s300 = sphi 0, %s298
      %s301 = sphi 0, %s300
      %s315 = sphi 0, %s301
      %s319 = sphi 0, %s319
      %s321 = sphi 0, %s319
      %s322 = sphi 0, %s321
      %s336 = sphi 0, %s322
      %s340 = sphi 0, %s340
      %s342 = sphi 0, %s340
      %s343 = sphi 0, %s342
      %s357 = sphi 0, %s343
      %s361 = sphi 0, %s361
      %s363 = sphi 0, %s361
      %s364 = sphi 0, %s363
      %s378 = sphi 0, %s364
      %s382 = sphi 0, %s382
      %s384 = sphi 0, %s382
      %s385 = sphi 0, %s384
      %s399 = sphi 0, %s385
      %s405 = sphi 0, %s407
      %s408 = sphi 0, %s405
      %s409 = sphi 0, %s408
      %s425 = sphi 0, %s409
    $region4: #{tpu_custom_call.1} parent=1 // loop_header_branch
      %36 = sbr.rel (%p34) target = $region8
    $region5: #{tpu_custom_call.1} parent=1 // loop_body
      %s38 = ssub.s32 %s33, 1
      %s39 = ssub.s32 %s33, 2
      %s40 = sadd.s32 %s33, 1
      %s41 = ssub.s32 %s33, %s40
      %p42 = scmp.eq.s32.totalorder %s41, 0
      %s44 = sadd.s32 %s43, 1
      %s45 = scalar_select %p42, %s43, %s44
      %p48 = pneg %p42
      %p49 = scmp.eq.s32.totalorder %s33, 1
      %p50 = por %p48, %p49
      %p51 = scmp.ne.s32.totalorder %s43, %s46
      %p52 = scmp.eq.s32.totalorder %s33, 0
      %p53 = por %p51, %p52
      %p54 = scmp.ne.s32.totalorder %s43, %s46
      %p55 = scmp.eq.s32.totalorder %s38, 1
      %p56 = por %p54, %p55
      %p57 = scmp.ne.s32.totalorder %s46, %s47
      %p58 = scmp.eq.s32.totalorder %s38, 0
      %p59 = por %p57, %p58
      %p60 = scmp.ne.s32.totalorder %s46, %s47
      %p61 = scmp.eq.s32.totalorder %s39, 1
      %p62 = por %p60, %p61
      %p64 = scmp.ne.s32.totalorder %s47, %s63
      %p65 = scmp.eq.s32.totalorder %s39, 0
      %p66 = por %p64, %p65
      %s68 = sadd.s32 %s67, 1
      %p71 = scmp.eq.s32.totalorder %s33, 1
      %p72 = scmp.ne.s32.totalorder %s67, %s69
      %p73 = scmp.eq.s32.totalorder %s33, 0
      %p74 = por %p72, %p73
      %p75 = scmp.ne.s32.totalorder %s67, %s69
      %p76 = scmp.eq.s32.totalorder %s38, 1
      %p77 = por %p75, %p76
      %p78 = scmp.ne.s32.totalorder %s69, %s70
      %p79 = scmp.eq.s32.totalorder %s38, 0
      %p80 = por %p78, %p79
      %p81 = scmp.ne.s32.totalorder %s69, %s70
      %p82 = scmp.eq.s32.totalorder %s39, 1
      %p83 = por %p81, %p82
      %p85 = scmp.ne.s32.totalorder %s70, %s84
      %p86 = scmp.eq.s32.totalorder %s39, 0
      %p87 = por %p85, %p86
      %s89 = sadd.s32 %s88, 1
      %p92 = scmp.eq.s32.totalorder %s33, 1
      %p93 = scmp.ne.s32.totalorder %s88, %s90
      %p94 = scmp.eq.s32.totalorder %s33, 0
      %p95 = por %p93, %p94
      %p96 = scmp.ne.s32.totalorder %s88, %s90
      %p97 = scmp.eq.s32.totalorder %s38, 1
      %p98 = por %p96, %p97
      %p99 = scmp.ne.s32.totalorder %s90, %s91
      %p100 = scmp.eq.s32.totalorder %s38, 0
      %p101 = por %p99, %p100
      %p102 = scmp.ne.s32.totalorder %s90, %s91
      %p103 = scmp.eq.s32.totalorder %s39, 1
      %p104 = por %p102, %p103
      %p106 = scmp.ne.s32.totalorder %s91, %s105
      %p107 = scmp.eq.s32.totalorder %s39, 0
      %p108 = por %p106, %p107
      %s110 = sadd.s32 %s109, 1
      %p113 = scmp.eq.s32.totalorder %s33, 1
      %p114 = scmp.ne.s32.totalorder %s109, %s111
      %p115 = scmp.eq.s32.totalorder %s33, 0
      %p116 = por %p114, %p115
      %p117 = scmp.ne.s32.totalorder %s109, %s111
      %p118 = scmp.eq.s32.totalorder %s38, 1
      %p119 = por %p117, %p118
      %p120 = scmp.ne.s32.totalorder %s111, %s112
      %p121 = scmp.eq.s32.totalorder %s38, 0
      %p122 = por %p120, %p121
      %p123 = scmp.ne.s32.totalorder %s111, %s112
      %p124 = scmp.eq.s32.totalorder %s39, 1
      %p125 = por %p123, %p124
      %p127 = scmp.ne.s32.totalorder %s112, %s126
      %p128 = scmp.eq.s32.totalorder %s39, 0
      %p129 = por %p127, %p128
      %s131 = sadd.s32 %s130, 1
      %p134 = scmp.eq.s32.totalorder %s33, 1
      %p135 = scmp.ne.s32.totalorder %s130, %s132
      %p136 = scmp.eq.s32.totalorder %s33, 0
      %p137 = por %p135, %p136
      %p138 = scmp.ne.s32.totalorder %s130, %s132
      %p139 = scmp.eq.s32.totalorder %s38, 1
      %p140 = por %p138, %p139
      %p141 = scmp.ne.s32.totalorder %s132, %s133
      %p142 = scmp.eq.s32.totalorder %s38, 0
      %p143 = por %p141, %p142
      %p144 = scmp.ne.s32.totalorder %s132, %s133
      %p145 = scmp.eq.s32.totalorder %s39, 1
      %p146 = por %p144, %p145
      %p148 = scmp.ne.s32.totalorder %s133, %s147
      %p149 = scmp.eq.s32.totalorder %s39, 0
      %p150 = por %p148, %p149
      %s152 = sadd.s32 %s151, 1
      %p155 = scmp.eq.s32.totalorder %s33, 1
      %p156 = scmp.ne.s32.totalorder %s151, %s153
      %p157 = scmp.eq.s32.totalorder %s33, 0
      %p158 = por %p156, %p157
      %p159 = scmp.ne.s32.totalorder %s151, %s153
      %p160 = scmp.eq.s32.totalorder %s38, 1
      %p161 = por %p159, %p160
      %p162 = scmp.ne.s32.totalorder %s153, %s154
      %p163 = scmp.eq.s32.totalorder %s38, 0
      %p164 = por %p162, %p163
      %p165 = scmp.ne.s32.totalorder %s153, %s154
      %p166 = scmp.eq.s32.totalorder %s39, 1
      %p167 = por %p165, %p166
      %p169 = scmp.ne.s32.totalorder %s154, %s168
      %p170 = scmp.eq.s32.totalorder %s39, 0
      %p171 = por %p169, %p170
      %s173 = sadd.s32 %s172, 1
      %p176 = scmp.eq.s32.totalorder %s33, 1
      %p177 = scmp.ne.s32.totalorder %s172, %s174
      %p178 = scmp.eq.s32.totalorder %s33, 0
      %p179 = por %p177, %p178
      %p180 = scmp.ne.s32.totalorder %s172, %s174
      %p181 = scmp.eq.s32.totalorder %s38, 1
      %p182 = por %p180, %p181
      %p183 = scmp.ne.s32.totalorder %s174, %s175
      %p184 = scmp.eq.s32.totalorder %s38, 0
      %p185 = por %p183, %p184
      %p186 = scmp.ne.s32.totalorder %s174, %s175
      %p187 = scmp.eq.s32.totalorder %s39, 1
      %p188 = por %p186, %p187
      %p190 = scmp.ne.s32.totalorder %s175, %s189
      %p191 = scmp.eq.s32.totalorder %s39, 0
      %p192 = por %p190, %p191
      %s194 = sadd.s32 %s193, 1
      %p197 = scmp.eq.s32.totalorder %s33, 1
      %p198 = scmp.ne.s32.totalorder %s193, %s195
      %p199 = scmp.eq.s32.totalorder %s33, 0
      %p200 = por %p198, %p199
      %p201 = scmp.ne.s32.totalorder %s193, %s195
      %p202 = scmp.eq.s32.totalorder %s38, 1
      %p203 = por %p201, %p202
      %p204 = scmp.ne.s32.totalorder %s195, %s196
      %p205 = scmp.eq.s32.totalorder %s38, 0
      %p206 = por %p204, %p205
      %p207 = scmp.ne.s32.totalorder %s195, %s196
      %p208 = scmp.eq.s32.totalorder %s39, 1
      %p209 = por %p207, %p208
      %p211 = scmp.ne.s32.totalorder %s196, %s210
      %p212 = scmp.eq.s32.totalorder %s39, 0
      %p213 = por %p211, %p212
      %s215 = sadd.s32 %s214, 1
      %p218 = scmp.eq.s32.totalorder %s33, 1
      %p219 = scmp.ne.s32.totalorder %s214, %s216
      %p220 = scmp.eq.s32.totalorder %s33, 0
      %p221 = por %p219, %p220
      %p222 = scmp.ne.s32.totalorder %s214, %s216
      %p223 = scmp.eq.s32.totalorder %s38, 1
      %p224 = por %p222, %p223
      %p225 = scmp.ne.s32.totalorder %s216, %s217
      %p226 = scmp.eq.s32.totalorder %s38, 0
      %p227 = por %p225, %p226
      %p228 = scmp.ne.s32.totalorder %s216, %s217
      %p229 = scmp.eq.s32.totalorder %s39, 1
      %p230 = por %p228, %p229
      %p232 = scmp.ne.s32.totalorder %s217, %s231
      %p233 = scmp.eq.s32.totalorder %s39, 0
      %p234 = por %p232, %p233
      %s236 = sadd.s32 %s235, 1
      %p239 = scmp.eq.s32.totalorder %s33, 1
      %p240 = scmp.ne.s32.totalorder %s235, %s237
      %p241 = scmp.eq.s32.totalorder %s33, 0
      %p242 = por %p240, %p241
      %p243 = scmp.ne.s32.totalorder %s235, %s237
      %p244 = scmp.eq.s32.totalorder %s38, 1
      %p245 = por %p243, %p244
      %p246 = scmp.ne.s32.totalorder %s237, %s238
      %p247 = scmp.eq.s32.totalorder %s38, 0
      %p248 = por %p246, %p247
      %p249 = scmp.ne.s32.totalorder %s237, %s238
      %p250 = scmp.eq.s32.totalorder %s39, 1
      %p251 = por %p249, %p250
      %p253 = scmp.ne.s32.totalorder %s238, %s252
      %p254 = scmp.eq.s32.totalorder %s39, 0
      %p255 = por %p253, %p254
      %s257 = sadd.s32 %s256, 1
      %p260 = scmp.eq.s32.totalorder %s33, 1
      %p261 = scmp.ne.s32.totalorder %s256, %s258
      %p262 = scmp.eq.s32.totalorder %s33, 0
      %p263 = por %p261, %p262
      %p264 = scmp.ne.s32.totalorder %s256, %s258
      %p265 = scmp.eq.s32.totalorder %s38, 1
      %p266 = por %p264, %p265
      %p267 = scmp.ne.s32.totalorder %s258, %s259
      %p268 = scmp.eq.s32.totalorder %s38, 0
      %p269 = por %p267, %p268
      %p270 = scmp.ne.s32.totalorder %s258, %s259
      %p271 = scmp.eq.s32.totalorder %s39, 1
      %p272 = por %p270, %p271
      %p274 = scmp.ne.s32.totalorder %s259, %s273
      %p275 = scmp.eq.s32.totalorder %s39, 0
      %p276 = por %p274, %p275
      %s278 = sadd.s32 %s277, 1
      %p281 = scmp.eq.s32.totalorder %s33, 1
      %p282 = scmp.ne.s32.totalorder %s277, %s279
      %p283 = scmp.eq.s32.totalorder %s33, 0
      %p284 = por %p282, %p283
      %p285 = scmp.ne.s32.totalorder %s277, %s279
      %p286 = scmp.eq.s32.totalorder %s38, 1
      %p287 = por %p285, %p286
      %p288 = scmp.ne.s32.totalorder %s279, %s280
      %p289 = scmp.eq.s32.totalorder %s38, 0
      %p290 = por %p288, %p289
      %p291 = scmp.ne.s32.totalorder %s279, %s280
      %p292 = scmp.eq.s32.totalorder %s39, 1
      %p293 = por %p291, %p292
      %p295 = scmp.ne.s32.totalorder %s280, %s294
      %p296 = scmp.eq.s32.totalorder %s39, 0
      %p297 = por %p295, %p296
      %s299 = sadd.s32 %s298, 1
      %p302 = scmp.eq.s32.totalorder %s33, 1
      %p303 = scmp.ne.s32.totalorder %s298, %s300
      %p304 = scmp.eq.s32.totalorder %s33, 0
      %p305 = por %p303, %p304
      %p306 = scmp.ne.s32.totalorder %s298, %s300
      %p307 = scmp.eq.s32.totalorder %s38, 1
      %p308 = por %p306, %p307
      %p309 = scmp.ne.s32.totalorder %s300, %s301
      %p310 = scmp.eq.s32.totalorder %s38, 0
      %p311 = por %p309, %p310
      %p312 = scmp.ne.s32.totalorder %s300, %s301
      %p313 = scmp.eq.s32.totalorder %s39, 1
      %p314 = por %p312, %p313
      %p316 = scmp.ne.s32.totalorder %s301, %s315
      %p317 = scmp.eq.s32.totalorder %s39, 0
      %p318 = por %p316, %p317
      %s320 = sadd.s32 %s319, 1
      %p323 = scmp.eq.s32.totalorder %s33, 1
      %p324 = scmp.ne.s32.totalorder %s319, %s321
      %p325 = scmp.eq.s32.totalorder %s33, 0
      %p326 = por %p324, %p325
      %p327 = scmp.ne.s32.totalorder %s319, %s321
      %p328 = scmp.eq.s32.totalorder %s38, 1
      %p329 = por %p327, %p328
      %p330 = scmp.ne.s32.totalorder %s321, %s322
      %p331 = scmp.eq.s32.totalorder %s38, 0
      %p332 = por %p330, %p331
      %p333 = scmp.ne.s32.totalorder %s321, %s322
      %p334 = scmp.eq.s32.totalorder %s39, 1
      %p335 = por %p333, %p334
      %p337 = scmp.ne.s32.totalorder %s322, %s336
      %p338 = scmp.eq.s32.totalorder %s39, 0
      %p339 = por %p337, %p338
      %s341 = sadd.s32 %s340, 1
      %p344 = scmp.eq.s32.totalorder %s33, 1
      %p345 = scmp.ne.s32.totalorder %s340, %s342
      %p346 = scmp.eq.s32.totalorder %s33, 0
      %p347 = por %p345, %p346
      %p348 = scmp.ne.s32.totalorder %s340, %s342
      %p349 = scmp.eq.s32.totalorder %s38, 1
      %p350 = por %p348, %p349
      %p351 = scmp.ne.s32.totalorder %s342, %s343
      %p352 = scmp.eq.s32.totalorder %s38, 0
      %p353 = por %p351, %p352
      %p354 = scmp.ne.s32.totalorder %s342, %s343
      %p355 = scmp.eq.s32.totalorder %s39, 1
      %p356 = por %p354, %p355
      %p358 = scmp.ne.s32.totalorder %s343, %s357
      %p359 = scmp.eq.s32.totalorder %s39, 0
      %p360 = por %p358, %p359
      %s362 = sadd.s32 %s361, 1
      %p365 = scmp.eq.s32.totalorder %s33, 1
      %p366 = scmp.ne.s32.totalorder %s361, %s363
      %p367 = scmp.eq.s32.totalorder %s33, 0
      %p368 = por %p366, %p367
      %p369 = scmp.ne.s32.totalorder %s361, %s363
      %p370 = scmp.eq.s32.totalorder %s38, 1
      %p371 = por %p369, %p370
      %p372 = scmp.ne.s32.totalorder %s363, %s364
      %p373 = scmp.eq.s32.totalorder %s38, 0
      %p374 = por %p372, %p373
      %p375 = scmp.ne.s32.totalorder %s363, %s364
      %p376 = scmp.eq.s32.totalorder %s39, 1
      %p377 = por %p375, %p376
      %p379 = scmp.ne.s32.totalorder %s364, %s378
      %p380 = scmp.eq.s32.totalorder %s39, 0
      %p381 = por %p379, %p380
      %s383 = sadd.s32 %s382, 1
      %p386 = scmp.eq.s32.totalorder %s33, 1
      %p387 = scmp.ne.s32.totalorder %s382, %s384
      %p388 = scmp.eq.s32.totalorder %s33, 0
      %p389 = por %p387, %p388
      %p390 = scmp.ne.s32.totalorder %s382, %s384
      %p391 = scmp.eq.s32.totalorder %s38, 1
      %p392 = por %p390, %p391
      %p393 = scmp.ne.s32.totalorder %s384, %s385
      %p394 = scmp.eq.s32.totalorder %s38, 0
      %p395 = por %p393, %p394
      %p396 = scmp.ne.s32.totalorder %s384, %s385
      %p397 = scmp.eq.s32.totalorder %s39, 1
      %p398 = por %p396, %p397
      %p400 = scmp.ne.s32.totalorder %s385, %s399
      %p401 = scmp.eq.s32.totalorder %s39, 0
      %p402 = por %p400, %p401
      %s403 = ssub.s32 %s33, %s40
      %p404 = scmp.eq.s32.totalorder %s403, 0
      %s406 = sadd.s32 %s405, 1
      %s407 = scalar_select %p404, %s405, %s406
      %p410 = pneg %p404
      %p411 = scmp.eq.s32.totalorder %s33, 1
      %p412 = por %p410, %p411
      %p413 = scmp.ne.s32.totalorder %s405, %s408
      %p414 = scmp.eq.s32.totalorder %s33, 0
      %p415 = por %p413, %p414
      %p416 = scmp.ne.s32.totalorder %s405, %s408
      %p417 = scmp.eq.s32.totalorder %s38, 1
      %p418 = por %p416, %p417
      %p419 = scmp.ne.s32.totalorder %s408, %s409
      %p420 = scmp.eq.s32.totalorder %s38, 0
      %p421 = por %p419, %p420
      %p422 = scmp.ne.s32.totalorder %s408, %s409
      %p423 = scmp.eq.s32.totalorder %s39, 1
      %p424 = por %p422, %p423
      %p426 = scmp.ne.s32.totalorder %s409, %s425
      %p427 = scmp.eq.s32.totalorder %s39, 0
      %p428 = por %p426, %p427
      %p429 = scmp.le.s32.totalorder 1, %s33
      %p430 = scmp.lt.s32.totalorder %s33, 3
      %p431 = pnand %p429, %p430
      %p432 = pneg %p431
      // Predicated region
      $region9: #{tpu_custom_call.1} parent=5 // pred_check
        _
      $region10: #{tpu_custom_call.1} parent=5 // pred_check_branch
        %434 = sbr.rel (%p431) target = $region12
      $region11: #{tpu_custom_call.1} parent=5 // pred_region
        %s435 = ssub.s32 %s33, 1
        // Predicated region
        $region13: #{tpu_custom_call.1} parent=11 // pred_check
          %p436 = pneg %p80
        $region14: #{tpu_custom_call.1} parent=11 // pred_check_branch
          %438 = sbr.rel (%p436) target = $region16
        $region15: #{tpu_custom_call.1} parent=11 // pred_region
          %s440 = ssub.s32 256, 256
          %441 = vsyncadd [#allocation6], %s440
          %s442 = sshll.u32 [#allocation5], 4
          %s443 = int_to_ptr.vmem [resolvable:$true] %s442
          %448 = dma.hbm_to_vmem [thread:$0]  %s1, 256, %s443, [#allocation6], 128, 128, 8
        $region16: #{tpu_custom_call.1} parent=11 // pred_fallthru
          _
        // Predicated region
        $region17: #{tpu_custom_call.1} parent=11 // pred_check
          %p449 = pneg %p101
        $region18: #{tpu_custom_call.1} parent=11 // pred_check_branch
          %451 = sbr.rel (%p449) target = $region20
        $region19: #{tpu_custom_call.1} parent=11 // pred_region
          _
        $region20: #{tpu_custom_call.1} parent=11 // pred_fallthru
          _
        // Predicated region
        $region21: #{tpu_custom_call.1} parent=11 // pred_check
          %p452 = pneg %p122
        $region22: #{tpu_custom_call.1} parent=11 // pred_check_branch
          %454 = sbr.rel (%p452) target = $region24
        $region23: #{tpu_custom_call.1} parent=11 // pred_region
          %s456 = ssub.s32 512, 512
          %457 = vsyncadd [#allocation6], %s456
          %s458 = sshll.u32 [#allocation7], 4
          %s459 = int_to_ptr.vmem [resolvable:$true] %s458
          %464 = dma.hbm_to_vmem [thread:$0]  %s3, 512, %s459, [#allocation6], 128, 128, 8
        $region24: #{tpu_custom_call.1} parent=11 // pred_fallthru
          _
        // Predicated region
        $region25: #{tpu_custom_call.1} parent=11 // pred_check
          %p465 = pneg %p143
        $region26: #{tpu_custom_call.1} parent=11 // pred_check_branch
          %467 = sbr.rel (%p465) target = $region28
        $region27: #{tpu_custom_call.1} parent=11 // pred_region
          _
        $region28: #{tpu_custom_call.1} parent=11 // pred_fallthru
          _
        // Predicated region
        $region29: #{tpu_custom_call.1} parent=11 // pred_check
          %p468 = pneg %p164
        $region30: #{tpu_custom_call.1} parent=11 // pred_check_branch
          %470 = sbr.rel (%p468) target = $region32
        $region31: #{tpu_custom_call.1} parent=11 // pred_region
          %s472 = ssub.s32 1536, 1536
          %473 = vsyncadd [#allocation9], %s472
          %s474 = sshll.u32 [#allocation8], 4
          %s475 = int_to_ptr.vmem [resolvable:$true] %s474
          %480 = dma.hbm_to_vmem [thread:$0]  %s5, 1536, %s475, [#allocation9], 128, 128, 8
        $region32: #{tpu_custom_call.1} parent=11 // pred_fallthru
          _
        // Predicated region
        $region33: #{tpu_custom_call.1} parent=11 // pred_check
          %p481 = pneg %p185
        $region34: #{tpu_custom_call.1} parent=11 // pred_check_branch
          %483 = sbr.rel (%p481) target = $region36
        $region35: #{tpu_custom_call.1} parent=11 // pred_region
          %s485 = ssub.s32 512, 512
          %486 = vsyncadd [#allocation9], %s485
          %s487 = sshll.u32 [#allocation10], 4
          %s488 = int_to_ptr.vmem [resolvable:$true] %s487
          %493 = dma.hbm_to_vmem [thread:$0]  %s6, 512, %s488, [#allocation9], 128, 128, 8
        $region36: #{tpu_custom_call.1} parent=11 // pred_fallthru
          _
        // Predicated region
        $region37: #{tpu_custom_call.1} parent=11 // pred_check
          %p494 = pneg %p206
        $region38: #{tpu_custom_call.1} parent=11 // pred_check_branch
          %496 = sbr.rel (%p494) target = $region40
        $region39: #{tpu_custom_call.1} parent=11 // pred_region
          %s498 = ssub.s32 16, 16
          %499 = vsyncadd [#allocation12], %s498
          %s501 = sshll.u32 [#allocation11], 4
          %s502 = int_to_ptr.vmem [resolvable:$true] %s501
          %504 = dma.hbm_to_vmem [thread:$0]  %s7, 16, %s502, [#allocation12]
        $region40: #{tpu_custom_call.1} parent=11 // pred_fallthru
          _
        // Predicated region
        $region41: #{tpu_custom_call.1} parent=11 // pred_check
          %p505 = pneg %p227
        $region42: #{tpu_custom_call.1} parent=11 // pred_check_branch
          %507 = sbr.rel (%p505) target = $region44
        $region43: #{tpu_custom_call.1} parent=11 // pred_region
          %s509 = ssub.s32 16, 16
          %510 = vsyncadd [#allocation12], %s509
          %s512 = sshll.u32 [#allocation13], 4
          %s513 = int_to_ptr.vmem [resolvable:$true] %s512
          %515 = dma.hbm_to_vmem [thread:$0]  %s8, 16, %s513, [#allocation12]
        $region44: #{tpu_custom_call.1} parent=11 // pred_fallthru
          _
        // Predicated region
        $region45: #{tpu_custom_call.1} parent=11 // pred_check
          %p516 = pneg %p248
        $region46: #{tpu_custom_call.1} parent=11 // pred_check_branch
          %518 = sbr.rel (%p516) target = $region48
        $region47: #{tpu_custom_call.1} parent=11 // pred_region
          _
        $region48: #{tpu_custom_call.1} parent=11 // pred_fallthru
          _
        // Predicated region
        $region49: #{tpu_custom_call.1} parent=11 // pred_check
          %p519 = pneg %p269
        $region50: #{tpu_custom_call.1} parent=11 // pred_check_branch
          %521 = sbr.rel (%p519) target = $region52
        $region51: #{tpu_custom_call.1} parent=11 // pred_region
          _
        $region52: #{tpu_custom_call.1} parent=11 // pred_fallthru
          _
        // Predicated region
        $region53: #{tpu_custom_call.1} parent=11 // pred_check
          %p522 = pneg %p290
        $region54: #{tpu_custom_call.1} parent=11 // pred_check_branch
          %524 = sbr.rel (%p522) target = $region56
        $region55: #{tpu_custom_call.1} parent=11 // pred_region
          _
        $region56: #{tpu_custom_call.1} parent=11 // pred_fallthru
          _
        // Predicated region
        $region57: #{tpu_custom_call.1} parent=11 // pred_check
          %p525 = pneg %p311
        $region58: #{tpu_custom_call.1} parent=11 // pred_check_branch
          %527 = sbr.rel (%p525) target = $region60
        $region59: #{tpu_custom_call.1} parent=11 // pred_region
          _
        $region60: #{tpu_custom_call.1} parent=11 // pred_fallthru
          _
        // Predicated region
        $region61: #{tpu_custom_call.1} parent=11 // pred_check
          %p528 = pneg %p332
        $region62: #{tpu_custom_call.1} parent=11 // pred_check_branch
          %530 = sbr.rel (%p528) target = $region64
        $region63: #{tpu_custom_call.1} parent=11 // pred_region
          %s532 = ssub.s32 512, 512
          %533 = vsyncadd [#allocation15], %s532
          %s534 = sshll.u32 [#allocation14], 4
          %s535 = int_to_ptr.vmem [resolvable:$true] %s534
          %540 = dma.hbm_to_vmem [thread:$0]  %s13, 512, %s535, [#allocation15], 128, 128, 8
        $region64: #{tpu_custom_call.1} parent=11 // pred_fallthru
          _
        // Predicated region
        $region65: #{tpu_custom_call.1} parent=11 // pred_check
          %p541 = pneg %p353
        $region66: #{tpu_custom_call.1} parent=11 // pred_check_branch
          %543 = sbr.rel (%p541) target = $region68
        $region67: #{tpu_custom_call.1} parent=11 // pred_region
          _
        $region68: #{tpu_custom_call.1} parent=11 // pred_fallthru
          _
        // Predicated region
        $region69: #{tpu_custom_call.1} parent=11 // pred_check
          %p544 = pneg %p374
        $region70: #{tpu_custom_call.1} parent=11 // pred_check_branch
          %546 = sbr.rel (%p544) target = $region72
        $region71: #{tpu_custom_call.1} parent=11 // pred_region
          %s548 = ssub.s32 512, 512
          %549 = vsyncadd [#allocation15], %s548
          %s550 = sshll.u32 [#allocation16], 4
          %s551 = int_to_ptr.vmem [resolvable:$true] %s550
          %556 = dma.hbm_to_vmem [thread:$0]  %s15, 512, %s551, [#allocation15], 128, 128, 8
        $region72: #{tpu_custom_call.1} parent=11 // pred_fallthru
          _
        // Predicated region
        $region73: #{tpu_custom_call.1} parent=11 // pred_check
          %p557 = pneg %p395
        $region74: #{tpu_custom_call.1} parent=11 // pred_check_branch
          %559 = sbr.rel (%p557) target = $region76
        $region75: #{tpu_custom_call.1} parent=11 // pred_region
          _
        $region76: #{tpu_custom_call.1} parent=11 // pred_fallthru
          _
      $region12: #{tpu_custom_call.1} parent=5 // pred_fallthru
        _
      %p560 = scmp.lt.s32.totalorder %s33, 2
      // Predicated region
      $region77: #{tpu_custom_call.1} parent=5 // pred_check
        %p561 = pneg %p560
      $region78: #{tpu_custom_call.1} parent=5 // pred_check_branch
        %563 = sbr.rel (%p561) target = $region80
      $region79: #{tpu_custom_call.1} parent=5 // pred_region
        // Predicated region
        $region81: #{tpu_custom_call.1} parent=79 // pred_check
          %p564 = pneg %p53
        $region82: #{tpu_custom_call.1} parent=79 // pred_check_branch
          %566 = sbr.rel (%p564) target = $region84
        $region83: #{tpu_custom_call.1} parent=79 // pred_region
          %s567 = sand.u32 %s43, 1
          %s568 = scalar_lea.sflag [#allocation3], %s567
          %s569 = sand.u32 %s43, 1
          %s570 = smul.addr %s569, 128
          %s571 = scalar_lea.vmem [#allocation2], %s570
          %s572 = smul.u32 8, %s33
          %s574 = ssub.s32 2048, 2048
          %575 = vsyncadd %s568, %s574
          %s576 = smul.addr %s572, 2
          %s577 = smul.addr %s576, 128
          %s578 = scalar_lea.hbm %s0, %s577
          %s579 = sshll.u32 %s571, 4
          %s580 = int_to_ptr.vmem [resolvable:$true] %s579
          %585 = dma.hbm_to_vmem [thread:$0]  %s578, 2048, %s580, %s568, 128, 128, 8
        $region84: #{tpu_custom_call.1} parent=79 // pred_fallthru
          _
      $region80: #{tpu_custom_call.1} parent=5 // pred_fallthru
        _
      %p586 = scmp.le.s32.totalorder 1, %s33
      %p587 = scmp.lt.s32.totalorder %s33, 3
      %p588 = pnand %p586, %p587
      %p589 = pneg %p588
      // Predicated region
      $region85: #{tpu_custom_call.1} parent=5 // pred_check
        _
      $region86: #{tpu_custom_call.1} parent=5 // pred_check_branch
        %591 = sbr.rel (%p588) target = $region88
      $region87: #{tpu_custom_call.1} parent=5 // pred_region
        %s592 = ssub.s32 %s33, 1
        %s593 = sand.u32 %s46, 1
        %s594 = scalar_lea.sflag [#allocation3], %s593
        %s595 = sand.u32 %s46, 1
        %s596 = smul.addr %s595, 128
        %s597 = scalar_lea.vmem [#allocation2], %s596
        // Predicated region
        $region89: #{tpu_custom_call.1} parent=87 // pred_check
          %p598 = pneg %p59
        $region90: #{tpu_custom_call.1} parent=87 // pred_check_branch
          %600 = sbr.rel (%p598) target = $region92
        $region91: #{tpu_custom_call.1} parent=87 // pred_region
          %601 = dma.done %s594, 2048
        $region92: #{tpu_custom_call.1} parent=87 // pred_fallthru
          _
        // Predicated region
        $region93: #{tpu_custom_call.1} parent=87 // pred_check
          %p602 = pneg %p80
        $region94: #{tpu_custom_call.1} parent=87 // pred_check_branch
          %604 = sbr.rel (%p602) target = $region96
        $region95: #{tpu_custom_call.1} parent=87 // pred_region
          %605 = dma.done [#allocation6], 256
        $region96: #{tpu_custom_call.1} parent=87 // pred_fallthru
          _
        // Predicated region
        $region97: #{tpu_custom_call.1} parent=87 // pred_check
          %p606 = pneg %p122
        $region98: #{tpu_custom_call.1} parent=87 // pred_check_branch
          %608 = sbr.rel (%p606) target = $region100
        $region99: #{tpu_custom_call.1} parent=87 // pred_region
          %609 = dma.done [#allocation6], 512
        $region100: #{tpu_custom_call.1} parent=87 // pred_fallthru
          _
        // Predicated region
        $region101: #{tpu_custom_call.1} parent=87 // pred_check
          %p610 = pneg %p164
        $region102: #{tpu_custom_call.1} parent=87 // pred_check_branch
          %612 = sbr.rel (%p610) target = $region104
        $region103: #{tpu_custom_call.1} parent=87 // pred_region
          %613 = dma.done [#allocation9], 1536
        $region104: #{tpu_custom_call.1} parent=87 // pred_fallthru
          _
        // Predicated region
        $region105: #{tpu_custom_call.1} parent=87 // pred_check
          %p614 = pneg %p185
        $region106: #{tpu_custom_call.1} parent=87 // pred_check_branch
          %616 = sbr.rel (%p614) target = $region108
        $region107: #{tpu_custom_call.1} parent=87 // pred_region
          %617 = dma.done [#allocation9], 512
        $region108: #{tpu_custom_call.1} parent=87 // pred_fallthru
          _
        // Predicated region
        $region109: #{tpu_custom_call.1} parent=87 // pred_check
          %p618 = pneg %p206
        $region110: #{tpu_custom_call.1} parent=87 // pred_check_branch
          %620 = sbr.rel (%p618) target = $region112
        $region111: #{tpu_custom_call.1} parent=87 // pred_region
          %621 = dma.done [#allocation12], 16
        $region112: #{tpu_custom_call.1} parent=87 // pred_fallthru
          _
        // Predicated region
        $region113: #{tpu_custom_call.1} parent=87 // pred_check
          %p622 = pneg %p227
        $region114: #{tpu_custom_call.1} parent=87 // pred_check_branch
          %624 = sbr.rel (%p622) target = $region116
        $region115: #{tpu_custom_call.1} parent=87 // pred_region
          %625 = dma.done [#allocation12], 16
        $region116: #{tpu_custom_call.1} parent=87 // pred_fallthru
          _
        // Predicated region
        $region117: #{tpu_custom_call.1} parent=87 // pred_check
          %p626 = pneg %p332
        $region118: #{tpu_custom_call.1} parent=87 // pred_check_branch
          %628 = sbr.rel (%p626) target = $region120
        $region119: #{tpu_custom_call.1} parent=87 // pred_region
          %629 = dma.done [#allocation15], 512
        $region120: #{tpu_custom_call.1} parent=87 // pred_fallthru
          _
        // Predicated region
        $region121: #{tpu_custom_call.1} parent=87 // pred_check
          %p630 = pneg %p374
        $region122: #{tpu_custom_call.1} parent=87 // pred_check_branch
          %632 = sbr.rel (%p630) target = $region124
        $region123: #{tpu_custom_call.1} parent=87 // pred_region
          %633 = dma.done [#allocation15], 512
        $region124: #{tpu_custom_call.1} parent=87 // pred_fallthru
          _
        %s634 = sand.u32 %s46, 1
        %s635 = scalar_lea.sflag [#allocation3], %s634
        %s636 = sand.u32 %s46, 1
        %s637 = smul.addr %s636, 128
        %s638 = scalar_lea.vmem [#allocation2], %s637
        %p639 = pneg %p59
        %p640 = pneg %p56
        %p641 = pneg %p80
        %p642 = pneg %p77
        %p643 = pneg %p101
        %p644 = pneg %p98
        %p645 = pneg %p122
        %p646 = pneg %p119
        %p647 = pneg %p143
        %p648 = pneg %p140
        %p649 = pneg %p164
        %p650 = pneg %p161
        %p651 = pneg %p185
        %p652 = pneg %p182
        %p653 = pneg %p206
        %p654 = pneg %p203
        %p655 = pneg %p227
        %p656 = pneg %p224
        %p657 = pneg %p248
        %p658 = pneg %p245
        %p659 = pneg %p269
        %p660 = pneg %p266
        %p661 = pneg %p290
        %p662 = pneg %p287
        %p663 = pneg %p311
        %p664 = pneg %p308
        %p665 = pneg %p332
        %p666 = pneg %p329
        %p667 = pneg %p353
        %p668 = pneg %p350
        %p669 = pneg %p374
        %p670 = pneg %p371
        %p671 = pneg %p395
        %p672 = pneg %p392
        %p673 = pneg %p421
        %p674 = pneg %p418
        %s675 = sand.u32 %s408, 1
        %s676 = scalar_lea.sflag [#allocation4], %s675
        %s677 = sand.u32 %s408, 1
        %s678 = smul.addr %s677, 8
        %s679 = scalar_lea.vmem [#allocation17], %s678
        %s680 = smul.u32 8, %s38
        %v681 = vld [vmem:[%s597] sm:$0xff]
        %v682 = vld [vmem:[%s597 + $0x8] sm:$0xff]
        %v683 = vld [vmem:[%s597 + $0x10] sm:$0xff]
        %v684 = vld [vmem:[%s597 + $0x18] sm:$0xff]
        %v685 = vld [vmem:[%s597 + $0x20] sm:$0xff]
        %v686 = vld [vmem:[%s597 + $0x28] sm:$0xff]
        %v687 = vld [vmem:[%s597 + $0x30] sm:$0xff]
        %v688 = vld [vmem:[%s597 + $0x38] sm:$0xff]
        %v689 = vld [vmem:[%s597 + $0x40] sm:$0xff]
        %v690 = vld [vmem:[%s597 + $0x48] sm:$0xff]
        %v691 = vld [vmem:[%s597 + $0x50] sm:$0xff]
        %v692 = vld [vmem:[%s597 + $0x58] sm:$0xff]
        %v693 = vld [vmem:[%s597 + $0x60] sm:$0xff]
        %v694 = vld [vmem:[%s597 + $0x68] sm:$0xff]
        %v695 = vld [vmem:[%s597 + $0x70] sm:$0xff]
        %v696 = vld [vmem:[%s597 + $0x78] sm:$0xff]
        %v697 = vld [vmem:[#allocation5] sm:$0xff]
        %v698 = vld [vmem:[#allocation5 + $0x8] sm:$0xff]
        %vm699 = vcmask 130048
        %v701 = vsel %vm699, %v681, 0
        %v704 = vsel %vm699, %v682, 0
        %v707 = vsel %vm699, %v683, 0
        %v710 = vsel %vm699, %v684, 0
        %v713 = vsel %vm699, %v685, 0
        %v716 = vsel %vm699, %v686, 0
        %v719 = vsel %vm699, %v687, 0
        %v722 = vsel %vm699, %v688, 0
        %v725 = vsel %vm699, %v689, 0
        %v728 = vsel %vm699, %v690, 0
        %v731 = vsel %vm699, %v691, 0
        %v734 = vsel %vm699, %v692, 0
        %v737 = vsel %vm699, %v693, 0
        %v740 = vsel %vm699, %v694, 0
        %v743 = vsel %vm699, %v695, 0
        %v746 = vsel %vm699, %v696, 0
        %748 = vmatprep.subr.mxu0 0.0
        %749 = vmatpush1.msra.mxu0 %v697
        %750 = vmatprep.subr.mxu0 0.0
        %751 = vmatpush1.msra.mxu0 %v698
        %752 = vmatprep.subr.mxu0 0.0
        %753 = vmatpush1.msra.mxu0 0.0
        %754 = vmatprep.subr.mxu0 0.0
        %755 = vmatpush1.msra.mxu0 0.0
        %756 = vmatprep.subr.mxu0 0.0
        %757 = vmatpush1.msra.mxu0 0.0
        %758 = vmatprep.subr.mxu0 0.0
        %759 = vmatpush1.msra.mxu0 0.0
        %760 = vmatprep.subr.mxu0 0.0
        %761 = vmatpush1.msra.mxu0 0.0
        %762 = vmatprep.subr.mxu0 0.0
        %763 = vmatpush1.msra.mxu0 0.0
        %764 = vmatprep.subr.mxu0 0.0
        %765 = vmatpush1.msra.mxu0 0.0
        %766 = vmatprep.subr.mxu0 0.0
        %767 = vmatpush1.msra.mxu0 0.0
        %768 = vmatprep.subr.mxu0 0.0
        %769 = vmatpush1.msra.mxu0 0.0
        %770 = vmatprep.subr.mxu0 0.0
        %771 = vmatpush1.msra.mxu0 0.0
        %772 = vmatprep.subr.mxu0 0.0
        %773 = vmatpush1.msra.mxu0 0.0
        %774 = vmatprep.subr.mxu0 0.0
        %775 = vmatpush1.msra.mxu0 0.0
        %776 = vmatprep.subr.mxu0 0.0
        %777 = vmatpush1.msra.mxu0 0.0
        %778 = vmatprep.subr.mxu0 0.0
        %779 = vmatpush1.msra.mxu0 0.0
        %780 = vmatprep.subr.mxu0 0.0
        %781 = vmatpush1.msra.mxu0 0.0
        %782 = vmatprep.subr.mxu0 0.0
        %783 = vmatpush1.msra.mxu0 0.0
        %784 = vmatprep.subr.mxu0 0.0
        %785 = vmatpush1.msra.mxu0 0.0
        %786 = vmatprep.subr.mxu0 0.0
        %787 = vmatpush1.msra.mxu0 0.0
        %788 = vmatprep.subr.mxu0 0.0
        %789 = vmatpush1.msra.mxu0 0.0
        %790 = vmatprep.subr.mxu0 0.0
        %791 = vmatpush1.msra.mxu0 0.0
        %792 = vmatprep.subr.mxu0 0.0
        %793 = vmatpush1.msra.mxu0 0.0
        %794 = vmatprep.subr.mxu0 0.0
        %795 = vmatpush1.msra.mxu0 0.0
        %796 = vmatprep.subr.mxu0 0.0
        %797 = vmatpush1.msra.mxu0 0.0
        %798 = vmatprep.subr.mxu0 0.0
        %799 = vmatpush1.msra.mxu0 0.0
        %800 = vmatprep.subr.mxu0 0.0
        %801 = vmatpush1.msra.mxu0 0.0
        %802 = vmatprep.subr.mxu0 0.0
        %803 = vmatpush1.msra.mxu0 0.0
        %804 = vmatprep.subr.mxu0 0.0
        %805 = vmatpush1.msra.mxu0 0.0
        %806 = vmatprep.subr.mxu0 0.0
        %807 = vmatpush1.msra.mxu0 0.0
        %808 = vmatprep.subr.mxu0 0.0
        %809 = vmatpush1.msra.mxu0 0.0
        %810 = vmatprep.subr.mxu0 0.0
        %811 = vmatpush1.msra.mxu0 0.0
        %812 = vmatprep.mubr.f32.mxu0 0.0
        %813 = vmatmul.mubr.f32.gmra.mrb[0].mxu0 %v701
        %v814 = vpop.f32.mrb[0].mxu0
        %v815 = vadd.f32 0.0, %v814
        %v816 = vpop.f32.mrb[0].mxu0
        %817 = vmatprep.mubr.f32.mxu0 0.0
        %818 = vmatmul.mubr.f32.gmra.mrb[0].mxu0 %v704
        %v819 = vpop.f32.mrb[0].mxu0
        %v820 = vadd.f32 0.0, %v819
        %v821 = vpop.f32.mrb[0].mxu0
        %822 = vmatprep.mubr.f32.mxu0 0.0
        %823 = vmatmul.mubr.f32.gmra.mrb[0].mxu0 %v707
        %v824 = vpop.f32.mrb[0].mxu0
        %v825 = vadd.f32 0.0, %v824
        %v826 = vpop.f32.mrb[0].mxu0
        %827 = vmatprep.mubr.f32.mxu0 0.0
        %828 = vmatmul.mubr.f32.gmra.mrb[0].mxu0 %v710
        %v829 = vpop.f32.mrb[0].mxu0
        %v830 = vadd.f32 0.0, %v829
        %v831 = vpop.f32.mrb[0].mxu0
        %832 = vmatprep.mubr.f32.mxu0 0.0
        %833 = vmatmul.mubr.f32.gmra.mrb[0].mxu0 %v713
        %v834 = vpop.f32.mrb[0].mxu0
        %v835 = vadd.f32 0.0, %v834
        %v836 = vpop.f32.mrb[0].mxu0
        %837 = vmatprep.mubr.f32.mxu0 0.0
        %838 = vmatmul.mubr.f32.gmra.mrb[0].mxu0 %v716
        %v839 = vpop.f32.mrb[0].mxu0
        %v840 = vadd.f32 0.0, %v839
        %v841 = vpop.f32.mrb[0].mxu0
        %842 = vmatprep.mubr.f32.mxu0 0.0
        %843 = vmatmul.mubr.f32.gmra.mrb[0].mxu0 %v719
        %v844 = vpop.f32.mrb[0].mxu0
        %v845 = vadd.f32 0.0, %v844
        %v846 = vpop.f32.mrb[0].mxu0
        %847 = vmatprep.mubr.f32.mxu0 0.0
        %848 = vmatmul.mubr.f32.gmra.mrb[0].mxu0 %v722
        %v849 = vpop.f32.mrb[0].mxu0
        %v850 = vadd.f32 0.0, %v849
        %v851 = vpop.f32.mrb[0].mxu0
        %852 = vmatprep.mubr.f32.mxu0 0.0
        %853 = vmatmul.mubr.f32.gmra.mrb[0].mxu0 %v725
        %v854 = vpop.f32.mrb[0].mxu0
        %v855 = vadd.f32 0.0, %v854
        %v856 = vpop.f32.mrb[0].mxu0
        %857 = vmatprep.mubr.f32.mxu0 0.0
        %858 = vmatmul.mubr.f32.gmra.mrb[0].mxu0 %v728
        %v859 = vpop.f32.mrb[0].mxu0
        %v860 = vadd.f32 0.0, %v859
        %v861 = vpop.f32.mrb[0].mxu0
        %862 = vmatprep.mubr.f32.mxu0 0.0
        %863 = vmatmul.mubr.f32.gmra.mrb[0].mxu0 %v731
        %v864 = vpop.f32.mrb[0].mxu0
        %v865 = vadd.f32 0.0, %v864
        %v866 = vpop.f32.mrb[0].mxu0
        %867 = vmatprep.mubr.f32.mxu0 0.0
        %868 = vmatmul.mubr.f32.gmra.mrb[0].mxu0 %v734
        %v869 = vpop.f32.mrb[0].mxu0
        %v870 = vadd.f32 0.0, %v869
        %v871 = vpop.f32.mrb[0].mxu0
        %872 = vmatprep.mubr.f32.mxu0 0.0
        %873 = vmatmul.mubr.f32.gmra.mrb[0].mxu0 %v737
        %v874 = vpop.f32.mrb[0].mxu0
        %v875 = vadd.f32 0.0, %v874
        %v876 = vpop.f32.mrb[0].mxu0
        %877 = vmatprep.mubr.f32.mxu0 0.0
        %878 = vmatmul.mubr.f32.gmra.mrb[0].mxu0 %v740
        %v879 = vpop.f32.mrb[0].mxu0
        %v880 = vadd.f32 0.0, %v879
        %v881 = vpop.f32.mrb[0].mxu0
        %882 = vmatprep.mubr.f32.mxu0 0.0
        %883 = vmatmul.mubr.f32.gmra.mrb[0].mxu0 %v743
        %v884 = vpop.f32.mrb[0].mxu0
        %v885 = vadd.f32 0.0, %v884
        %v886 = vpop.f32.mrb[0].mxu0
        %887 = vmatprep.mubr.f32.mxu0 0.0
        %888 = vmatmul.mubr.f32.gmra.mrb[0].mxu0 %v746
        %v889 = vpop.f32.mrb[0].mxu0
        %v890 = vadd.f32 0.0, %v889
        %v891 = vpop.f32.mrb[0].mxu0
        %892 = vdwg.mxu0
        %v893 = vmax.f32 %v815, 0.0
        %v894 = vmax.f32 %v820, 0.0
        %v895 = vmax.f32 %v825, 0.0
        %v896 = vmax.f32 %v830, 0.0
        %v897 = vmax.f32 %v835, 0.0
        %v898 = vmax.f32 %v840, 0.0
        %v899 = vmax.f32 %v845, 0.0
        %v900 = vmax.f32 %v850, 0.0
        %v901 = vmax.f32 %v855, 0.0
        %v902 = vmax.f32 %v860, 0.0
        %v903 = vmax.f32 %v865, 0.0
        %v904 = vmax.f32 %v870, 0.0
        %v905 = vmax.f32 %v875, 0.0
        %v906 = vmax.f32 %v880, 0.0
        %v907 = vmax.f32 %v885, 0.0
        %v908 = vmax.f32 %v890, 0.0
        %v909 = vld [vmem:[%s2] sm:$0x1]
        %v911 = vlaneseq
        %v912 = vshrl.u32 %v911, 7
        %v913 = vsub.s32 0, %v912
        %v914 = vrot.slane %v909, %v913
        %915 = vrot.lane.b32.xlu0 %v914, 64
        %v916 = vpop.permute.xlu0 %915
        %v918 = vadd.f32 %v815, %v916
        %v919 = vadd.f32 %v820, %v916
        %v920 = vadd.f32 %v825, %v916
        %v921 = vadd.f32 %v830, %v916
        %v922 = vadd.f32 %v835, %v916
        %v923 = vadd.f32 %v840, %v916
        %v924 = vadd.f32 %v845, %v916
        %v925 = vadd.f32 %v850, %v916
        %v926 = vadd.f32 %v855, %v916
        %v927 = vadd.f32 %v860, %v916
        %v928 = vadd.f32 %v865, %v916
        %v929 = vadd.f32 %v870, %v916
        %v930 = vadd.f32 %v875, %v916
        %v931 = vadd.f32 %v880, %v916
        %v932 = vadd.f32 %v885, %v916
        %v933 = vadd.f32 %v890, %v916
        %v934 = vmax.f32 %v918, 0.0
        %v935 = vmax.f32 %v919, 0.0
        %v936 = vmax.f32 %v920, 0.0
        %v937 = vmax.f32 %v921, 0.0
        %v938 = vmax.f32 %v922, 0.0
        %v939 = vmax.f32 %v923, 0.0
        %v940 = vmax.f32 %v924, 0.0
        %v941 = vmax.f32 %v925, 0.0
        %v942 = vmax.f32 %v926, 0.0
        %v943 = vmax.f32 %v927, 0.0
        %v944 = vmax.f32 %v928, 0.0
        %v945 = vmax.f32 %v929, 0.0
        %v946 = vmax.f32 %v930, 0.0
        %v947 = vmax.f32 %v931, 0.0
        %v948 = vmax.f32 %v932, 0.0
        %v949 = vmax.f32 %v933, 0.0
        %v950 = vld [vmem:[#allocation7] sm:$0xff]
        %v951 = vld [vmem:[#allocation7 + $0x8] sm:$0xff]
        %v952 = vld [vmem:[#allocation7 + $0x10] sm:$0xff]
        %v953 = vld [vmem:[#allocation7 + $0x18] sm:$0xff]
        %v954 = vld [vmem:[%s4] sm:$0x1]
        %v956 = vlaneseq
        %v957 = vshrl.u32 %v956, 7
        %v958 = vsub.s32 0, %v957
        %v959 = vrot.slane %v954, %v958
        %977 = vrot.lane.b32.xlu0 %v934, 64
        %v978 = vpop.permute.xlu0 %977
        %979 = vrot.lane.b32.xlu0 %v935, 64
        %v980 = vpop.permute.xlu0 %979
        %981 = vrot.lane.b32.xlu0 %v936, 64
        %v982 = vpop.permute.xlu0 %981
        %983 = vrot.lane.b32.xlu0 %v937, 64
        %v984 = vpop.permute.xlu0 %983
        %985 = vrot.lane.b32.xlu0 %v938, 64
        %v986 = vpop.permute.xlu0 %985
        %987 = vrot.lane.b32.xlu0 %v939, 64
        %v988 = vpop.permute.xlu0 %987
        %989 = vrot.lane.b32.xlu0 %v940, 64
        %v990 = vpop.permute.xlu0 %989
        %991 = vrot.lane.b32.xlu0 %v941, 64
        %v992 = vpop.permute.xlu0 %991
        %993 = vrot.lane.b32.xlu0 %v942, 64
        %v994 = vpop.permute.xlu0 %993
        %995 = vrot.lane.b32.xlu0 %v943, 64
        %v996 = vpop.permute.xlu0 %995
        %997 = vrot.lane.b32.xlu0 %v944, 64
        %v998 = vpop.permute.xlu0 %997
        %999 = vrot.lane.b32.xlu0 %v945, 64
        %v1000 = vpop.permute.xlu0 %999
        %1001 = vrot.lane.b32.xlu0 %v946, 64
        %v1002 = vpop.permute.xlu0 %1001
        %1003 = vrot.lane.b32.xlu0 %v947, 64
        %v1004 = vpop.permute.xlu0 %1003
        %1005 = vrot.lane.b32.xlu0 %v948, 64
        %v1006 = vpop.permute.xlu0 %1005
        %1007 = vrot.lane.b32.xlu0 %v949, 64
        %v1008 = vpop.permute.xlu0 %1007
        %vm1009 = vcmask 261120
        %v1010 = vsel %vm1009, %v978, 0
        %v1012 = vsel %vm1009, %v980, 0
        %v1014 = vsel %vm1009, %v982, 0
        %v1016 = vsel %vm1009, %v984, 0
        %v1018 = vsel %vm1009, %v986, 0
        %v1020 = vsel %vm1009, %v988, 0
        %v1022 = vsel %vm1009, %v990, 0
        %v1024 = vsel %vm1009, %v992, 0
        %v1026 = vsel %vm1009, %v994, 0
        %v1028 = vsel %vm1009, %v996, 0
        %v1030 = vsel %vm1009, %v998, 0
        %v1032 = vsel %vm1009, %v1000, 0
        %v1034 = vsel %vm1009, %v1002, 0
        %v1036 = vsel %vm1009, %v1004, 0
        %v1038 = vsel %vm1009, %v1006, 0
        %v1040 = vsel %vm1009, %v1008, 0
        %1042 = vmatprep.subr.mxu0 0.0
        %1043 = vmatpush1.msra.mxu0 %v950
        %1044 = vmatprep.subr.mxu0 0.0
        %1045 = vmatpush1.msra.mxu0 %v951
        %1046 = vmatprep.subr.mxu0 0.0
        %1047 = vmatpush1.msra.mxu0 %v952
        %1048 = vmatprep.subr.mxu0 0.0
        %1049 = vmatpush1.msra.mxu0 %v953
        %1050 = vmatprep.subr.mxu0 0.0
        %1051 = vmatpush1.msra.mxu0 0.0
        %1052 = vmatprep.subr.mxu0 0.0
        %1053 = vmatpush1.msra.mxu0 0.0
        %1054 = vmatprep.subr.mxu0 0.0
        %1055 = vmatpush1.msra.mxu0 0.0
        %1056 = vmatprep.subr.mxu0 0.0
        %1057 = vmatpush1.msra.mxu0 0.0
        %1058 = vmatprep.subr.mxu0 0.0
        %1059 = vmatpush1.msra.mxu0 0.0
        %1060 = vmatprep.subr.mxu0 0.0
        %1061 = vmatpush1.msra.mxu0 0.0
        %1062 = vmatprep.subr.mxu0 0.0
        %1063 = vmatpush1.msra.mxu0 0.0
        %1064 = vmatprep.subr.mxu0 0.0
        %1065 = vmatpush1.msra.mxu0 0.0
        %1066 = vmatprep.subr.mxu0 0.0
        %1067 = vmatpush1.msra.mxu0 0.0
        %1068 = vmatprep.subr.mxu0 0.0
        %1069 = vmatpush1.msra.mxu0 0.0
        %1070 = vmatprep.subr.mxu0 0.0
        %1071 = vmatpush1.msra.mxu0 0.0
        %1072 = vmatprep.subr.mxu0 0.0
        %1073 = vmatpush1.msra.mxu0 0.0
        %1074 = vmatprep.subr.mxu0 0.0
        %1075 = vmatpush1.msra.mxu0 0.0
        %1076 = vmatprep.subr.mxu0 0.0
        %1077 = vmatpush1.msra.mxu0 0.0
        %1078 = vmatprep.subr.mxu0 0.0
        %1079 = vmatpush1.msra.mxu0 0.0
        %1080 = vmatprep.subr.mxu0 0.0
        %1081 = vmatpush1.msra.mxu0 0.0
        %1082 = vmatprep.subr.mxu0 0.0
        %1083 = vmatpush1.msra.mxu0 0.0
        %1084 = vmatprep.subr.mxu0 0.0
        %1085 = vmatpush1.msra.mxu0 0.0
        %1086 = vmatprep.subr.mxu0 0.0
        %1087 = vmatpush1.msra.mxu0 0.0
        %1088 = vmatprep.subr.mxu0 0.0
        %1089 = vmatpush1.msra.mxu0 0.0
        %1090 = vmatprep.subr.mxu0 0.0
        %1091 = vmatpush1.msra.mxu0 0.0
        %1092 = vmatprep.subr.mxu0 0.0
        %1093 = vmatpush1.msra.mxu0 0.0
        %1094 = vmatprep.subr.mxu0 0.0
        %1095 = vmatpush1.msra.mxu0 0.0
        %1096 = vmatprep.subr.mxu0 0.0
        %1097 = vmatpush1.msra.mxu0 0.0
        %1098 = vmatprep.subr.mxu0 0.0
        %1099 = vmatpush1.msra.mxu0 0.0
        %1100 = vmatprep.subr.mxu0 0.0
        %1101 = vmatpush1.msra.mxu0 0.0
        %1102 = vmatprep.subr.mxu0 0.0
        %1103 = vmatpush1.msra.mxu0 0.0
        %1104 = vmatprep.subr.mxu0 0.0
        %1105 = vmatpush1.msra.mxu0 0.0
        %1106 = vmatprep.mubr.f32.mxu0 0.0
        %1107 = vmatmul.mubr.f32.gmra.mrb[0].mxu0 %v1010
        %v1108 = vpop.f32.mrb[0].mxu0
        %v1109 = vadd.f32 %v959, %v1108
        %v1110 = vpop.f32.mrb[0].mxu0
        %1111 = vmatprep.mubr.f32.mxu0 0.0
        %1112 = vmatmul.mubr.f32.gmra.mrb[0].mxu0 %v1012
        %v1113 = vpop.f32.mrb[0].mxu0
        %v1114 = vadd.f32 %v959, %v1113
        %v1115 = vpop.f32.mrb[0].mxu0
        %1116 = vmatprep.mubr.f32.mxu0 0.0
        %1117 = vmatmul.mubr.f32.gmra.mrb[0].mxu0 %v1014
        %v1118 = vpop.f32.mrb[0].mxu0
        %v1119 = vadd.f32 %v959, %v1118
        %v1120 = vpop.f32.mrb[0].mxu0
        %1121 = vmatprep.mubr.f32.mxu0 0.0
        %1122 = vmatmul.mubr.f32.gmra.mrb[0].mxu0 %v1016
        %v1123 = vpop.f32.mrb[0].mxu0
        %v1124 = vadd.f32 %v959, %v1123
        %v1125 = vpop.f32.mrb[0].mxu0
        %1126 = vmatprep.mubr.f32.mxu0 0.0
        %1127 = vmatmul.mubr.f32.gmra.mrb[0].mxu0 %v1018
        %v1128 = vpop.f32.mrb[0].mxu0
        %v1129 = vadd.f32 %v959, %v1128
        %v1130 = vpop.f32.mrb[0].mxu0
        %1131 = vmatprep.mubr.f32.mxu0 0.0
        %1132 = vmatmul.mubr.f32.gmra.mrb[0].mxu0 %v1020
        %v1133 = vpop.f32.mrb[0].mxu0
        %v1134 = vadd.f32 %v959, %v1133
        %v1135 = vpop.f32.mrb[0].mxu0
        %1136 = vmatprep.mubr.f32.mxu0 0.0
        %1137 = vmatmul.mubr.f32.gmra.mrb[0].mxu0 %v1022
        %v1138 = vpop.f32.mrb[0].mxu0
        %v1139 = vadd.f32 %v959, %v1138
        %v1140 = vpop.f32.mrb[0].mxu0
        %1141 = vmatprep.mubr.f32.mxu0 0.0
        %1142 = vmatmul.mubr.f32.gmra.mrb[0].mxu0 %v1024
        %v1143 = vpop.f32.mrb[0].mxu0
        %v1144 = vadd.f32 %v959, %v1143
        %v1145 = vpop.f32.mrb[0].mxu0
        %1146 = vmatprep.mubr.f32.mxu0 0.0
        %1147 = vmatmul.mubr.f32.gmra.mrb[0].mxu0 %v1026
        %v1148 = vpop.f32.mrb[0].mxu0
        %v1149 = vadd.f32 %v959, %v1148
        %v1150 = vpop.f32.mrb[0].mxu0
        %1151 = vmatprep.mubr.f32.mxu0 0.0
        %1152 = vmatmul.mubr.f32.gmra.mrb[0].mxu0 %v1028
        %v1153 = vpop.f32.mrb[0].mxu0
        %v1154 = vadd.f32 %v959, %v1153
        %v1155 = vpop.f32.mrb[0].mxu0
        %1156 = vmatprep.mubr.f32.mxu0 0.0
        %1157 = vmatmul.mubr.f32.gmra.mrb[0].mxu0 %v1030
        %v1158 = vpop.f32.mrb[0].mxu0
        %v1159 = vadd.f32 %v959, %v1158
        %v1160 = vpop.f32.mrb[0].mxu0
        %1161 = vmatprep.mubr.f32.mxu0 0.0
        %1162 = vmatmul.mubr.f32.gmra.mrb[0].mxu0 %v1032
        %v1163 = vpop.f32.mrb[0].mxu0
        %v1164 = vadd.f32 %v959, %v1163
        %v1165 = vpop.f32.mrb[0].mxu0
        %1166 = vmatprep.mubr.f32.mxu0 0.0
        %1167 = vmatmul.mubr.f32.gmra.mrb[0].mxu0 %v1034
        %v1168 = vpop.f32.mrb[0].mxu0
        %v1169 = vadd.f32 %v959, %v1168
        %v1170 = vpop.f32.mrb[0].mxu0
        %1171 = vmatprep.mubr.f32.mxu0 0.0
        %1172 = vmatmul.mubr.f32.gmra.mrb[0].mxu0 %v1036
        %v1173 = vpop.f32.mrb[0].mxu0
        %v1174 = vadd.f32 %v959, %v1173
        %v1175 = vpop.f32.mrb[0].mxu0
        %1176 = vmatprep.mubr.f32.mxu0 0.0
        %1177 = vmatmul.mubr.f32.gmra.mrb[0].mxu0 %v1038
        %v1178 = vpop.f32.mrb[0].mxu0
        %v1179 = vadd.f32 %v959, %v1178
        %v1180 = vpop.f32.mrb[0].mxu0
        %1181 = vmatprep.mubr.f32.mxu0 0.0
        %1182 = vmatmul.mubr.f32.gmra.mrb[0].mxu0 %v1040
        %v1183 = vpop.f32.mrb[0].mxu0
        %v1184 = vadd.f32 %v959, %v1183
        %v1185 = vpop.f32.mrb[0].mxu0
        %1186 = vdwg.mxu0
        %v1187 = vmax.f32 %v1109, 0.0
        %v1188 = vmax.f32 %v1114, 0.0
        %v1189 = vmax.f32 %v1119, 0.0
        %v1190 = vmax.f32 %v1124, 0.0
        %v1191 = vmax.f32 %v1129, 0.0
        %v1192 = vmax.f32 %v1134, 0.0
        %v1193 = vmax.f32 %v1139, 0.0
        %v1194 = vmax.f32 %v1144, 0.0
        %v1195 = vmax.f32 %v1149, 0.0
        %v1196 = vmax.f32 %v1154, 0.0
        %v1197 = vmax.f32 %v1159, 0.0
        %v1198 = vmax.f32 %v1164, 0.0
        %v1199 = vmax.f32 %v1169, 0.0
        %v1200 = vmax.f32 %v1174, 0.0
        %v1201 = vmax.f32 %v1179, 0.0
        %v1202 = vmax.f32 %v1184, 0.0
        %1219 = vrot.lane.b32.xlu0 %v893, 96
        %v1220 = vpop.permute.xlu0 %1219
        %1221 = vrot.lane.b32.xlu0 %v894, 96
        %v1222 = vpop.permute.xlu0 %1221
        %1223 = vrot.lane.b32.xlu0 %v895, 96
        %v1224 = vpop.permute.xlu0 %1223
        %1225 = vrot.lane.b32.xlu0 %v896, 96
        %v1226 = vpop.permute.xlu0 %1225
        %1227 = vrot.lane.b32.xlu0 %v897, 96
        %v1228 = vpop.permute.xlu0 %1227
        %1229 = vrot.lane.b32.xlu0 %v898, 96
        %v1230 = vpop.permute.xlu0 %1229
        %1231 = vrot.lane.b32.xlu0 %v899, 96
        %v1232 = vpop.permute.xlu0 %1231
        %1233 = vrot.lane.b32.xlu0 %v900, 96
        %v1234 = vpop.permute.xlu0 %1233
        %1235 = vrot.lane.b32.xlu0 %v901, 96
        %v1236 = vpop.permute.xlu0 %1235
        %1237 = vrot.lane.b32.xlu0 %v902, 96
        %v1238 = vpop.permute.xlu0 %1237
        %1239 = vrot.lane.b32.xlu0 %v903, 96
        %v1240 = vpop.permute.xlu0 %1239
        %1241 = vrot.lane.b32.xlu0 %v904, 96
        %v1242 = vpop.permute.xlu0 %1241
        %1243 = vrot.lane.b32.xlu0 %v905, 96
        %v1244 = vpop.permute.xlu0 %1243
        %1245 = vrot.lane.b32.xlu0 %v906, 96
        %v1246 = vpop.permute.xlu0 %1245
        %1247 = vrot.lane.b32.xlu0 %v907, 96
        %v1248 = vpop.permute.xlu0 %1247
        %1249 = vrot.lane.b32.xlu0 %v908, 96
        %v1250 = vpop.permute.xlu0 %1249
        %v1267 = vmul.f32 %v893, %v1220
        %v1268 = vmul.f32 %v894, %v1222
        %v1269 = vmul.f32 %v895, %v1224
        %v1270 = vmul.f32 %v896, %v1226
        %v1271 = vmul.f32 %v897, %v1228
        %v1272 = vmul.f32 %v898, %v1230
        %v1273 = vmul.f32 %v899, %v1232
        %v1274 = vmul.f32 %v900, %v1234
        %v1275 = vmul.f32 %v901, %v1236
        %v1276 = vmul.f32 %v902, %v1238
        %v1277 = vmul.f32 %v903, %v1240
        %v1278 = vmul.f32 %v904, %v1242
        %v1279 = vmul.f32 %v905, %v1244
        %v1280 = vmul.f32 %v906, %v1246
        %v1281 = vmul.f32 %v907, %v1248
        %v1282 = vmul.f32 %v908, %v1250
        %v1283 = vsel %vm1009, %v893, 0.0
        %v1284 = vsel %vm1009, %v894, 0.0
        %v1285 = vadd.f32 %v1283, %v1284
        %v1286 = vrot.slane %v1285, 4
        %v1287 = vadd.f32 %v1285, %v1286
        %v1288 = vrot.slane %v1287, 2
        %v1289 = vadd.f32 %v1287, %v1288
        %v1290 = vrot.slane %v1289, 1
        %v1291 = vadd.f32 %v1289, %v1290
        %v1292 = vsel %vm1009, %v895, 0.0
        %v1293 = vsel %vm1009, %v896, 0.0
        %v1294 = vadd.f32 %v1292, %v1293
        %v1295 = vrot.slane %v1294, 4
        %v1296 = vadd.f32 %v1294, %v1295
        %v1297 = vrot.slane %v1296, 2
        %v1298 = vadd.f32 %v1296, %v1297
        %v1299 = vrot.slane %v1298, 1
        %v1300 = vadd.f32 %v1298, %v1299
        %v1301 = vsel %vm1009, %v897, 0.0
        %v1302 = vsel %vm1009, %v898, 0.0
        %v1303 = vadd.f32 %v1301, %v1302
        %v1304 = vrot.slane %v1303, 4
        %v1305 = vadd.f32 %v1303, %v1304
        %v1306 = vrot.slane %v1305, 2
        %v1307 = vadd.f32 %v1305, %v1306
        %v1308 = vrot.slane %v1307, 1
        %v1309 = vadd.f32 %v1307, %v1308
        %v1310 = vsel %vm1009, %v899, 0.0
        %v1311 = vsel %vm1009, %v900, 0.0
        %v1312 = vadd.f32 %v1310, %v1311
        %v1313 = vrot.slane %v1312, 4
        %v1314 = vadd.f32 %v1312, %v1313
        %v1315 = vrot.slane %v1314, 2
        %v1316 = vadd.f32 %v1314, %v1315
        %v1317 = vrot.slane %v1316, 1
        %v1318 = vadd.f32 %v1316, %v1317
        %v1319 = vsel %vm1009, %v901, 0.0
        %v1320 = vsel %vm1009, %v902, 0.0
        %v1321 = vadd.f32 %v1319, %v1320
        %v1322 = vrot.slane %v1321, 4
        %v1323 = vadd.f32 %v1321, %v1322
        %v1324 = vrot.slane %v1323, 2
        %v1325 = vadd.f32 %v1323, %v1324
        %v1326 = vrot.slane %v1325, 1
        %v1327 = vadd.f32 %v1325, %v1326
        %v1328 = vsel %vm1009, %v903, 0.0
        %v1329 = vsel %vm1009, %v904, 0.0
        %v1330 = vadd.f32 %v1328, %v1329
        %v1331 = vrot.slane %v1330, 4
        %v1332 = vadd.f32 %v1330, %v1331
        %v1333 = vrot.slane %v1332, 2
        %v1334 = vadd.f32 %v1332, %v1333
        %v1335 = vrot.slane %v1334, 1
        %v1336 = vadd.f32 %v1334, %v1335
        %v1337 = vsel %vm1009, %v905, 0.0
        %v1338 = vsel %vm1009, %v906, 0.0
        %v1339 = vadd.f32 %v1337, %v1338
        %v1340 = vrot.slane %v1339, 4
        %v1341 = vadd.f32 %v1339, %v1340
        %v1342 = vrot.slane %v1341, 2
        %v1343 = vadd.f32 %v1341, %v1342
        %v1344 = vrot.slane %v1343, 1
        %v1345 = vadd.f32 %v1343, %v1344
        %v1346 = vsel %vm1009, %v907, 0.0
        %v1347 = vsel %vm1009, %v908, 0.0
        %v1348 = vadd.f32 %v1346, %v1347
        %v1349 = vrot.slane %v1348, 4
        %v1350 = vadd.f32 %v1348, %v1349
        %v1351 = vrot.slane %v1350, 2
        %v1352 = vadd.f32 %v1350, %v1351
        %v1353 = vrot.slane %v1352, 1
        %v1354 = vadd.f32 %v1352, %v1353
        %v1355 = vrcp.pop 16.0
        %v1356 = vmul.f32 %v1291, %v1355
        %v1357 = vmul.f32 %v1300, %v1355
        %v1358 = vmul.f32 %v1309, %v1355
        %v1359 = vmul.f32 %v1318, %v1355
        %v1360 = vmul.f32 %v1327, %v1355
        %v1361 = vmul.f32 %v1336, %v1355
        %v1362 = vmul.f32 %v1345, %v1355
        %v1363 = vmul.f32 %v1354, %v1355
        %vm1364 = vcmask 523520
        %v1365 = vsel %vm1364, %v893, 0.0
        %v1366 = vsel %vm1364, %v894, 0.0
        %v1367 = vadd.f32 %v1365, %v1366
        %v1368 = vrot.slane %v1367, 4
        %v1369 = vadd.f32 %v1367, %v1368
        %v1370 = vrot.slane %v1369, 2
        %v1371 = vadd.f32 %v1369, %v1370
        %v1372 = vrot.slane %v1371, 1
        %v1373 = vadd.f32 %v1371, %v1372
        %v1374 = vsel %vm1364, %v895, 0.0
        %v1375 = vsel %vm1364, %v896, 0.0
        %v1376 = vadd.f32 %v1374, %v1375
        %v1377 = vrot.slane %v1376, 4
        %v1378 = vadd.f32 %v1376, %v1377
        %v1379 = vrot.slane %v1378, 2
        %v1380 = vadd.f32 %v1378, %v1379
        %v1381 = vrot.slane %v1380, 1
        %v1382 = vadd.f32 %v1380, %v1381
        %v1383 = vsel %vm1364, %v897, 0.0
        %v1384 = vsel %vm1364, %v898, 0.0
        %v1385 = vadd.f32 %v1383, %v1384
        %v1386 = vrot.slane %v1385, 4
        %v1387 = vadd.f32 %v1385, %v1386
        %v1388 = vrot.slane %v1387, 2
        %v1389 = vadd.f32 %v1387, %v1388
        %v1390 = vrot.slane %v1389, 1
        %v1391 = vadd.f32 %v1389, %v1390
        %v1392 = vsel %vm1364, %v899, 0.0
        %v1393 = vsel %vm1364, %v900, 0.0
        %v1394 = vadd.f32 %v1392, %v1393
        %v1395 = vrot.slane %v1394, 4
        %v1396 = vadd.f32 %v1394, %v1395
        %v1397 = vrot.slane %v1396, 2
        %v1398 = vadd.f32 %v1396, %v1397
        %v1399 = vrot.slane %v1398, 1
        %v1400 = vadd.f32 %v1398, %v1399
        %v1401 = vsel %vm1364, %v901, 0.0
        %v1402 = vsel %vm1364, %v902, 0.0
        %v1403 = vadd.f32 %v1401, %v1402
        %v1404 = vrot.slane %v1403, 4
        %v1405 = vadd.f32 %v1403, %v1404
        %v1406 = vrot.slane %v1405, 2
        %v1407 = vadd.f32 %v1405, %v1406
        %v1408 = vrot.slane %v1407, 1
        %v1409 = vadd.f32 %v1407, %v1408
        %v1410 = vsel %vm1364, %v903, 0.0
        %v1411 = vsel %vm1364, %v904, 0.0
        %v1412 = vadd.f32 %v1410, %v1411
        %v1413 = vrot.slane %v1412, 4
        %v1414 = vadd.f32 %v1412, %v1413
        %v1415 = vrot.slane %v1414, 2
        %v1416 = vadd.f32 %v1414, %v1415
        %v1417 = vrot.slane %v1416, 1
        %v1418 = vadd.f32 %v1416, %v1417
        %v1419 = vsel %vm1364, %v905, 0.0
        %v1420 = vsel %vm1364, %v906, 0.0
        %v1421 = vadd.f32 %v1419, %v1420
        %v1422 = vrot.slane %v1421, 4
        %v1423 = vadd.f32 %v1421, %v1422
        %v1424 = vrot.slane %v1423, 2
        %v1425 = vadd.f32 %v1423, %v1424
        %v1426 = vrot.slane %v1425, 1
        %v1427 = vadd.f32 %v1425, %v1426
        %v1428 = vsel %vm1364, %v907, 0.0
        %v1429 = vsel %vm1364, %v908, 0.0
        %v1430 = vadd.f32 %v1428, %v1429
        %v1431 = vrot.slane %v1430, 4
        %v1432 = vadd.f32 %v1430, %v1431
        %v1433 = vrot.slane %v1432, 2
        %v1434 = vadd.f32 %v1432, %v1433
        %v1435 = vrot.slane %v1434, 1
        %v1436 = vadd.f32 %v1434, %v1435
        %v1437 = vmul.f32 %v1373, %v1355
        %v1438 = vmul.f32 %v1382, %v1355
        %v1439 = vmul.f32 %v1391, %v1355
        %v1440 = vmul.f32 %v1400, %v1355
        %v1441 = vmul.f32 %v1409, %v1355
        %v1442 = vmul.f32 %v1418, %v1355
        %v1443 = vmul.f32 %v1427, %v1355
        %v1444 = vmul.f32 %v1436, %v1355
        %v1445 = vsel %vm1009, %v1267, 0.0
        %v1446 = vsel %vm1009, %v1268, 0.0
        %v1447 = vadd.f32 %v1445, %v1446
        %v1448 = vrot.slane %v1447, 4
        %v1449 = vadd.f32 %v1447, %v1448
        %v1450 = vrot.slane %v1449, 2
        %v1451 = vadd.f32 %v1449, %v1450
        %v1452 = vrot.slane %v1451, 1
        %v1453 = vadd.f32 %v1451, %v1452
        %v1454 = vsel %vm1009, %v1269, 0.0
        %v1455 = vsel %vm1009, %v1270, 0.0
        %v1456 = vadd.f32 %v1454, %v1455
        %v1457 = vrot.slane %v1456, 4
        %v1458 = vadd.f32 %v1456, %v1457
        %v1459 = vrot.slane %v1458, 2
        %v1460 = vadd.f32 %v1458, %v1459
        %v1461 = vrot.slane %v1460, 1
        %v1462 = vadd.f32 %v1460, %v1461
        %v1463 = vsel %vm1009, %v1271, 0.0
        %v1464 = vsel %vm1009, %v1272, 0.0
        %v1465 = vadd.f32 %v1463, %v1464
        %v1466 = vrot.slane %v1465, 4
        %v1467 = vadd.f32 %v1465, %v1466
        %v1468 = vrot.slane %v1467, 2
        %v1469 = vadd.f32 %v1467, %v1468
        %v1470 = vrot.slane %v1469, 1
        %v1471 = vadd.f32 %v1469, %v1470
        %v1472 = vsel %vm1009, %v1273, 0.0
        %v1473 = vsel %vm1009, %v1274, 0.0
        %v1474 = vadd.f32 %v1472, %v1473
        %v1475 = vrot.slane %v1474, 4
        %v1476 = vadd.f32 %v1474, %v1475
        %v1477 = vrot.slane %v1476, 2
        %v1478 = vadd.f32 %v1476, %v1477
        %v1479 = vrot.slane %v1478, 1
        %v1480 = vadd.f32 %v1478, %v1479
        %v1481 = vsel %vm1009, %v1275, 0.0
        %v1482 = vsel %vm1009, %v1276, 0.0
        %v1483 = vadd.f32 %v1481, %v1482
        %v1484 = vrot.slane %v1483, 4
        %v1485 = vadd.f32 %v1483, %v1484
        %v1486 = vrot.slane %v1485, 2
        %v1487 = vadd.f32 %v1485, %v1486
        %v1488 = vrot.slane %v1487, 1
        %v1489 = vadd.f32 %v1487, %v1488
        %v1490 = vsel %vm1009, %v1277, 0.0
        %v1491 = vsel %vm1009, %v1278, 0.0
        %v1492 = vadd.f32 %v1490, %v1491
        %v1493 = vrot.slane %v1492, 4
        %v1494 = vadd.f32 %v1492, %v1493
        %v1495 = vrot.slane %v1494, 2
        %v1496 = vadd.f32 %v1494, %v1495
        %v1497 = vrot.slane %v1496, 1
        %v1498 = vadd.f32 %v1496, %v1497
        %v1499 = vsel %vm1009, %v1279, 0.0
        %v1500 = vsel %vm1009, %v1280, 0.0
        %v1501 = vadd.f32 %v1499, %v1500
        %v1502 = vrot.slane %v1501, 4
        %v1503 = vadd.f32 %v1501, %v1502
        %v1504 = vrot.slane %v1503, 2
        %v1505 = vadd.f32 %v1503, %v1504
        %v1506 = vrot.slane %v1505, 1
        %v1507 = vadd.f32 %v1505, %v1506
        %v1508 = vsel %vm1009, %v1281, 0.0
        %v1509 = vsel %vm1009, %v1282, 0.0
        %v1510 = vadd.f32 %v1508, %v1509
        %v1511 = vrot.slane %v1510, 4
        %v1512 = vadd.f32 %v1510, %v1511
        %v1513 = vrot.slane %v1512, 2
        %v1514 = vadd.f32 %v1512, %v1513
        %v1515 = vrot.slane %v1514, 1
        %v1516 = vadd.f32 %v1514, %v1515
        %v1517 = vmul.f32 %v1453, %v1355
        %v1518 = vmul.f32 %v1462, %v1355
        %v1519 = vmul.f32 %v1471, %v1355
        %v1520 = vmul.f32 %v1480, %v1355
        %v1521 = vmul.f32 %v1489, %v1355
        %v1522 = vmul.f32 %v1498, %v1355
        %v1523 = vmul.f32 %v1507, %v1355
        %v1524 = vmul.f32 %v1516, %v1355
        %vm1533 = vcmask 1041409
        %v1534 = vsel %vm1533, %v1357, %v1356
        %vm1535 = vcmask 1042434
        %v1536 = vsel %vm1535, %v1358, %v1534
        %vm1537 = vcmask 1043459
        %v1538 = vsel %vm1537, %v1359, %v1536
        %vm1539 = vcmask 1044484
        %v1540 = vsel %vm1539, %v1360, %v1538
        %vm1541 = vcmask 1045509
        %v1542 = vsel %vm1541, %v1361, %v1540
        %vm1543 = vcmask 1046534
        %v1544 = vsel %vm1543, %v1362, %v1542
        %vm1545 = vcmask 1047559
        %v1546 = vsel %vm1545, %v1363, %v1544
        %v1556 = vsel %vm1533, %v1438, %v1437
        %v1557 = vsel %vm1535, %v1439, %v1556
        %v1558 = vsel %vm1537, %v1440, %v1557
        %v1559 = vsel %vm1539, %v1441, %v1558
        %v1560 = vsel %vm1541, %v1442, %v1559
        %v1561 = vsel %vm1543, %v1443, %v1560
        %v1562 = vsel %vm1545, %v1444, %v1561
        %v1572 = vsel %vm1533, %v1518, %v1517
        %v1573 = vsel %vm1535, %v1519, %v1572
        %v1574 = vsel %vm1537, %v1520, %v1573
        %v1575 = vsel %vm1539, %v1521, %v1574
        %v1576 = vsel %vm1541, %v1522, %v1575
        %v1577 = vsel %vm1543, %v1523, %v1576
        %v1578 = vsel %vm1545, %v1524, %v1577
        %1579 = vrot.lane.b32.xlu0 %v1578, 64
        %v1580 = vpop.permute.xlu0 %1579
        %v1582 = vsel %vm1009, %v1546, %v1562
        %vm1583 = vcmask 523264
        %v1584 = vsel %vm1583, %v1582, %v1580
        %v1585 = vld [vmem:[#allocation8] sm:$0xff]
        %v1586 = vld [vmem:[#allocation8 + $0x8] sm:$0xff]
        %v1587 = vld [vmem:[#allocation8 + $0x10] sm:$0xff]
        %v1588 = vld [vmem:[#allocation8 + $0x18] sm:$0xff]
        %v1589 = vld [vmem:[#allocation8 + $0x20] sm:$0xff]
        %v1590 = vld [vmem:[#allocation8 + $0x28] sm:$0xff]
        %v1591 = vld [vmem:[#allocation8 + $0x30] sm:$0xff]
        %v1592 = vld [vmem:[#allocation8 + $0x38] sm:$0xff]
        %v1593 = vld [vmem:[#allocation8 + $0x40] sm:$0xff]
        %v1594 = vld [vmem:[#allocation8 + $0x48] sm:$0xff]
        %v1595 = vld [vmem:[#allocation8 + $0x50] sm:$0xff]
        %v1596 = vld [vmem:[#allocation8 + $0x58] sm:$0xff]
        %vm1597 = vcmask 785408
        %v1599 = vsel %vm1597, %v1584, 0
        %1601 = vmatprep.subr.mxu0 0.0
        %1602 = vmatpush1.msra.mxu0 %v1585
        %1603 = vmatprep.subr.mxu0 0.0
        %1604 = vmatpush1.msra.mxu0 %v1586
        %1605 = vmatprep.subr.mxu0 0.0
        %1606 = vmatpush1.msra.mxu0 %v1587
        %1607 = vmatprep.subr.mxu0 0.0
        %1608 = vmatpush1.msra.mxu0 %v1588
        %1609 = vmatprep.subr.mxu0 0.0
        %1610 = vmatpush1.msra.mxu0 %v1589
        %1611 = vmatprep.subr.mxu0 0.0
        %1612 = vmatpush1.msra.mxu0 %v1590
        %1613 = vmatprep.subr.mxu0 0.0
        %1614 = vmatpush1.msra.mxu0 %v1591
        %1615 = vmatprep.subr.mxu0 0.0
        %1616 = vmatpush1.msra.mxu0 %v1592
        %1617 = vmatprep.subr.mxu0 0.0
        %1618 = vmatpush1.msra.mxu0 %v1593
        %1619 = vmatprep.subr.mxu0 0.0
        %1620 = vmatpush1.msra.mxu0 %v1594
        %1621 = vmatprep.subr.mxu0 0.0
        %1622 = vmatpush1.msra.mxu0 %v1595
        %1623 = vmatprep.subr.mxu0 0.0
        %1624 = vmatpush1.msra.mxu0 %v1596
        %1625 = vmatprep.subr.mxu0 0.0
        %1626 = vmatpush1.msra.mxu0 0.0
        %1627 = vmatprep.subr.mxu0 0.0
        %1628 = vmatpush1.msra.mxu0 0.0
        %1629 = vmatprep.subr.mxu0 0.0
        %1630 = vmatpush1.msra.mxu0 0.0
        %1631 = vmatprep.subr.mxu0 0.0
        %1632 = vmatpush1.msra.mxu0 0.0
        %1633 = vmatprep.subr.mxu0 0.0
        %1634 = vmatpush1.msra.mxu0 0.0
        %1635 = vmatprep.subr.mxu0 0.0
        %1636 = vmatpush1.msra.mxu0 0.0
        %1637 = vmatprep.subr.mxu0 0.0
        %1638 = vmatpush1.msra.mxu0 0.0
        %1639 = vmatprep.subr.mxu0 0.0
        %1640 = vmatpush1.msra.mxu0 0.0
        %1641 = vmatprep.subr.mxu0 0.0
        %1642 = vmatpush1.msra.mxu0 0.0
        %1643 = vmatprep.subr.mxu0 0.0
        %1644 = vmatpush1.msra.mxu0 0.0
        %1645 = vmatprep.subr.mxu0 0.0
        %1646 = vmatpush1.msra.mxu0 0.0
        %1647 = vmatprep.subr.mxu0 0.0
        %1648 = vmatpush1.msra.mxu0 0.0
        %1649 = vmatprep.subr.mxu0 0.0
        %1650 = vmatpush1.msra.mxu0 0.0
        %1651 = vmatprep.subr.mxu0 0.0
        %1652 = vmatpush1.msra.mxu0 0.0
        %1653 = vmatprep.subr.mxu0 0.0
        %1654 = vmatpush1.msra.mxu0 0.0
        %1655 = vmatprep.subr.mxu0 0.0
        %1656 = vmatpush1.msra.mxu0 0.0
        %1657 = vmatprep.subr.mxu0 0.0
        %1658 = vmatpush1.msra.mxu0 0.0
        %1659 = vmatprep.subr.mxu0 0.0
        %1660 = vmatpush1.msra.mxu0 0.0
        %1661 = vmatprep.subr.mxu0 0.0
        %1662 = vmatpush1.msra.mxu0 0.0
        %1663 = vmatprep.subr.mxu0 0.0
        %1664 = vmatpush1.msra.mxu0 0.0
        %1665 = vmatprep.mubr.f32.mxu0 0.0
        %1666 = vmatmul.mubr.f32.gmra.mrb[0].mxu0 %v1599
        %v1667 = vpop.f32.mrb[0].mxu0
        %v1668 = vadd.f32 0.0, %v1667
        %v1669 = vpop.f32.mrb[0].mxu0
        %1670 = vdwg.mxu0
        %v1671 = vxor.u32 %v1668, 2147483648
        %v1672 = vmul.f32 %v1671, 1.442695
        %v1673 = vpow.pop %v1672
        %v1674 = vadd.f32 %v1673, 1.0
        %v1675 = vrcp.pop %v1674
        %v1676 = vmul.f32 1.0, %v1675
        %v1678 = vcombine.high %v1676, %v1676
        %v1680 = vunpack.c.l.s4 1966171168
        %v1681 = vunpack.c.0.s8 %v1680
        %v1682 = vlaneseq
        %v1683 = vshrl.u32 %v1682, 7
        %v1684 = vsub.s32 %v1681, %v1683
        %v1685 = vrot.slane %v1676, %v1684
        %v1687 = vunpack.c.l.s4 1966171168
        %v1688 = vunpack.c.0.s8 %v1687
        %v1689 = vlaneseq
        %v1690 = vshrl.u32 %v1689, 7
        %v1691 = vsub.s32 %v1688, %v1690
        %v1692 = vrot.slane %v1678, %v1691
        %v1693 = vcombine.high %v1685, %v1685
        %v1694 = vcombine.high %v1692, %v1692
        %v1696 = vunpack.c.l.s4 1966171168
        %v1697 = vunpack.c.0.s8 %v1696
        %v1698 = vlaneseq
        %v1699 = vshrl.u32 %v1698, 7
        %v1700 = vsub.s32 %v1697, %v1699
        %v1701 = vrot.slane %v1685, %v1700
        %v1703 = vunpack.c.l.s4 1966171168
        %v1704 = vunpack.c.0.s8 %v1703
        %v1705 = vlaneseq
        %v1706 = vshrl.u32 %v1705, 7
        %v1707 = vsub.s32 %v1704, %v1706
        %v1708 = vrot.slane %v1692, %v1707
        %v1710 = vunpack.c.l.s4 1966171168
        %v1711 = vunpack.c.0.s8 %v1710
        %v1712 = vlaneseq
        %v1713 = vshrl.u32 %v1712, 7
        %v1714 = vsub.s32 %v1711, %v1713
        %v1715 = vrot.slane %v1693, %v1714
        %v1717 = vunpack.c.l.s4 1966171168
        %v1718 = vunpack.c.0.s8 %v1717
        %v1719 = vlaneseq
        %v1720 = vshrl.u32 %v1719, 7
        %v1721 = vsub.s32 %v1718, %v1720
        %v1722 = vrot.slane %v1694, %v1721
        %v1723 = vcombine.high %v1701, %v1701
        %v1724 = vcombine.high %v1708, %v1708
        %v1725 = vcombine.high %v1715, %v1715
        %v1726 = vcombine.high %v1722, %v1722
        %v1727 = vlaneseq
        %v1728 = vshrl.u32 %v1727, 7
        %v1729 = vsub.s32 0, %v1728
        %v1730 = vrot.slane %v1701, %v1729
        %v1731 = vlaneseq
        %v1732 = vshrl.u32 %v1731, 7
        %v1733 = vsub.s32 0, %v1732
        %v1734 = vrot.slane %v1715, %v1733
        %v1735 = vlaneseq
        %v1736 = vshrl.u32 %v1735, 7
        %v1737 = vsub.s32 0, %v1736
        %v1738 = vrot.slane %v1723, %v1737
        %v1739 = vlaneseq
        %v1740 = vshrl.u32 %v1739, 7
        %v1741 = vsub.s32 0, %v1740
        %v1742 = vrot.slane %v1725, %v1741
        %v1743 = vlaneseq
        %v1744 = vshrl.u32 %v1743, 7
        %v1745 = vsub.s32 0, %v1744
        %v1746 = vrot.slane %v1708, %v1745
        %v1747 = vlaneseq
        %v1748 = vshrl.u32 %v1747, 7
        %v1749 = vsub.s32 0, %v1748
        %v1750 = vrot.slane %v1722, %v1749
        %v1751 = vlaneseq
        %v1752 = vshrl.u32 %v1751, 7
        %v1753 = vsub.s32 0, %v1752
        %v1754 = vrot.slane %v1724, %v1753
        %v1755 = vlaneseq
        %v1756 = vshrl.u32 %v1755, 7
        %v1757 = vsub.s32 0, %v1756
        %v1758 = vrot.slane %v1726, %v1757
        %v1767 = vmul.f32 %v893, %v1730
        %v1768 = vmul.f32 %v894, %v1730
        %v1769 = vmul.f32 %v895, %v1734
        %v1770 = vmul.f32 %v896, %v1734
        %v1771 = vmul.f32 %v897, %v1738
        %v1772 = vmul.f32 %v898, %v1738
        %v1773 = vmul.f32 %v899, %v1742
        %v1774 = vmul.f32 %v900, %v1742
        %v1775 = vmul.f32 %v901, %v1746
        %v1776 = vmul.f32 %v902, %v1746
        %v1777 = vmul.f32 %v903, %v1750
        %v1778 = vmul.f32 %v904, %v1750
        %v1779 = vmul.f32 %v905, %v1754
        %v1780 = vmul.f32 %v906, %v1754
        %v1781 = vmul.f32 %v907, %v1758
        %v1782 = vmul.f32 %v908, %v1758
        %v1783 = vadd.f32 %v1187, %v1767
        %v1784 = vadd.f32 %v1188, %v1768
        %v1785 = vadd.f32 %v1189, %v1769
        %v1786 = vadd.f32 %v1190, %v1770
        %v1787 = vadd.f32 %v1191, %v1771
        %v1788 = vadd.f32 %v1192, %v1772
        %v1789 = vadd.f32 %v1193, %v1773
        %v1790 = vadd.f32 %v1194, %v1774
        %v1791 = vadd.f32 %v1195, %v1775
        %v1792 = vadd.f32 %v1196, %v1776
        %v1793 = vadd.f32 %v1197, %v1777
        %v1794 = vadd.f32 %v1198, %v1778
        %v1795 = vadd.f32 %v1199, %v1779
        %v1796 = vadd.f32 %v1200, %v1780
        %v1797 = vadd.f32 %v1201, %v1781
        %v1798 = vadd.f32 %v1202, %v1782
        %1799 = vrot.lane.b32.xlu0 %v1730, 96
        %v1800 = vpop.permute.xlu0 %1799
        %1801 = vrot.lane.b32.xlu0 %v1734, 96
        %v1802 = vpop.permute.xlu0 %1801
        %1803 = vrot.lane.b32.xlu0 %v1738, 96
        %v1804 = vpop.permute.xlu0 %1803
        %1805 = vrot.lane.b32.xlu0 %v1742, 96
        %v1806 = vpop.permute.xlu0 %1805
        %1807 = vrot.lane.b32.xlu0 %v1746, 96
        %v1808 = vpop.permute.xlu0 %1807
        %1809 = vrot.lane.b32.xlu0 %v1750, 96
        %v1810 = vpop.permute.xlu0 %1809
        %1811 = vrot.lane.b32.xlu0 %v1754, 96
        %v1812 = vpop.permute.xlu0 %1811
        %1813 = vrot.lane.b32.xlu0 %v1758, 96
        %v1814 = vpop.permute.xlu0 %1813
        %v1823 = vmul.f32 %v893, %v1800
        %v1824 = vmul.f32 %v894, %v1800
        %v1825 = vmul.f32 %v895, %v1802
        %v1826 = vmul.f32 %v896, %v1802
        %v1827 = vmul.f32 %v897, %v1804
        %v1828 = vmul.f32 %v898, %v1804
        %v1829 = vmul.f32 %v899, %v1806
        %v1830 = vmul.f32 %v900, %v1806
        %v1831 = vmul.f32 %v901, %v1808
        %v1832 = vmul.f32 %v902, %v1808
        %v1833 = vmul.f32 %v903, %v1810
        %v1834 = vmul.f32 %v904, %v1810
        %v1835 = vmul.f32 %v905, %v1812
        %v1836 = vmul.f32 %v906, %v1812
        %v1837 = vmul.f32 %v907, %v1814
        %v1838 = vmul.f32 %v908, %v1814
        %1855 = vrot.lane.b32.xlu0 %v1823, 96
        %v1856 = vpop.permute.xlu0 %1855
        %1857 = vrot.lane.b32.xlu0 %v1824, 96
        %v1858 = vpop.permute.xlu0 %1857
        %1859 = vrot.lane.b32.xlu0 %v1825, 96
        %v1860 = vpop.permute.xlu0 %1859
        %1861 = vrot.lane.b32.xlu0 %v1826, 96
        %v1862 = vpop.permute.xlu0 %1861
        %1863 = vrot.lane.b32.xlu0 %v1827, 96
        %v1864 = vpop.permute.xlu0 %1863
        %1865 = vrot.lane.b32.xlu0 %v1828, 96
        %v1866 = vpop.permute.xlu0 %1865
        %1867 = vrot.lane.b32.xlu0 %v1829, 96
        %v1868 = vpop.permute.xlu0 %1867
        %1869 = vrot.lane.b32.xlu0 %v1830, 96
        %v1870 = vpop.permute.xlu0 %1869
        %1871 = vrot.lane.b32.xlu0 %v1831, 96
        %v1872 = vpop.permute.xlu0 %1871
        %1873 = vrot.lane.b32.xlu0 %v1832, 96
        %v1874 = vpop.permute.xlu0 %1873
        %1875 = vrot.lane.b32.xlu0 %v1833, 96
        %v1876 = vpop.permute.xlu0 %1875
        %1877 = vrot.lane.b32.xlu0 %v1834, 96
        %v1878 = vpop.permute.xlu0 %1877
        %1879 = vrot.lane.b32.xlu0 %v1835, 96
        %v1880 = vpop.permute.xlu0 %1879
        %1881 = vrot.lane.b32.xlu0 %v1836, 96
        %v1882 = vpop.permute.xlu0 %1881
        %1883 = vrot.lane.b32.xlu0 %v1837, 96
        %v1884 = vpop.permute.xlu0 %1883
        %1885 = vrot.lane.b32.xlu0 %v1838, 96
        %v1886 = vpop.permute.xlu0 %1885
        %v1903 = vadd.f32 %v1823, %v1856
        %v1904 = vadd.f32 %v1824, %v1858
        %v1905 = vadd.f32 %v1825, %v1860
        %v1906 = vadd.f32 %v1826, %v1862
        %v1907 = vadd.f32 %v1827, %v1864
        %v1908 = vadd.f32 %v1828, %v1866
        %v1909 = vadd.f32 %v1829, %v1868
        %v1910 = vadd.f32 %v1830, %v1870
        %v1911 = vadd.f32 %v1831, %v1872
        %v1912 = vadd.f32 %v1832, %v1874
        %v1913 = vadd.f32 %v1833, %v1876
        %v1914 = vadd.f32 %v1834, %v1878
        %v1915 = vadd.f32 %v1835, %v1880
        %v1916 = vadd.f32 %v1836, %v1882
        %v1917 = vadd.f32 %v1837, %v1884
        %v1918 = vadd.f32 %v1838, %v1886
        %1919 = vrot.lane.b32.xlu0 %v1730, 32
        %v1920 = vpop.permute.xlu0 %1919
        %1921 = vrot.lane.b32.xlu0 %v1734, 32
        %v1922 = vpop.permute.xlu0 %1921
        %1923 = vrot.lane.b32.xlu0 %v1738, 32
        %v1924 = vpop.permute.xlu0 %1923
        %1925 = vrot.lane.b32.xlu0 %v1742, 32
        %v1926 = vpop.permute.xlu0 %1925
        %1927 = vrot.lane.b32.xlu0 %v1746, 32
        %v1928 = vpop.permute.xlu0 %1927
        %1929 = vrot.lane.b32.xlu0 %v1750, 32
        %v1930 = vpop.permute.xlu0 %1929
        %1931 = vrot.lane.b32.xlu0 %v1754, 32
        %v1932 = vpop.permute.xlu0 %1931
        %1933 = vrot.lane.b32.xlu0 %v1758, 32
        %v1934 = vpop.permute.xlu0 %1933
        %v1943 = vmul.f32 %v1267, %v1920
        %v1944 = vmul.f32 %v1268, %v1920
        %v1945 = vmul.f32 %v1269, %v1922
        %v1946 = vmul.f32 %v1270, %v1922
        %v1947 = vmul.f32 %v1271, %v1924
        %v1948 = vmul.f32 %v1272, %v1924
        %v1949 = vmul.f32 %v1273, %v1926
        %v1950 = vmul.f32 %v1274, %v1926
        %v1951 = vmul.f32 %v1275, %v1928
        %v1952 = vmul.f32 %v1276, %v1928
        %v1953 = vmul.f32 %v1277, %v1930
        %v1954 = vmul.f32 %v1278, %v1930
        %v1955 = vmul.f32 %v1279, %v1932
        %v1956 = vmul.f32 %v1280, %v1932
        %v1957 = vmul.f32 %v1281, %v1934
        %v1958 = vmul.f32 %v1282, %v1934
        %v1959 = vadd.f32 %v1903, %v1943
        %v1960 = vadd.f32 %v1904, %v1944
        %v1961 = vadd.f32 %v1905, %v1945
        %v1962 = vadd.f32 %v1906, %v1946
        %v1963 = vadd.f32 %v1907, %v1947
        %v1964 = vadd.f32 %v1908, %v1948
        %v1965 = vadd.f32 %v1909, %v1949
        %v1966 = vadd.f32 %v1910, %v1950
        %v1967 = vadd.f32 %v1911, %v1951
        %v1968 = vadd.f32 %v1912, %v1952
        %v1969 = vadd.f32 %v1913, %v1953
        %v1970 = vadd.f32 %v1914, %v1954
        %v1971 = vadd.f32 %v1915, %v1955
        %v1972 = vadd.f32 %v1916, %v1956
        %v1973 = vadd.f32 %v1917, %v1957
        %v1974 = vadd.f32 %v1918, %v1958
        %v1975 = vld [vmem:[#allocation10] sm:$0xff]
        %v1976 = vld [vmem:[#allocation10 + $0x8] sm:$0xff]
        %v1977 = vld [vmem:[#allocation10 + $0x10] sm:$0xff]
        %v1978 = vld [vmem:[#allocation10 + $0x18] sm:$0xff]
        %v1980 = vsel %vm1009, %v1959, 0
        %v1983 = vsel %vm1009, %v1960, 0
        %v1986 = vsel %vm1009, %v1961, 0
        %v1989 = vsel %vm1009, %v1962, 0
        %v1992 = vsel %vm1009, %v1963, 0
        %v1995 = vsel %vm1009, %v1964, 0
        %v1998 = vsel %vm1009, %v1965, 0
        %v2001 = vsel %vm1009, %v1966, 0
        %v2004 = vsel %vm1009, %v1967, 0
        %v2007 = vsel %vm1009, %v1968, 0
        %v2010 = vsel %vm1009, %v1969, 0
        %v2013 = vsel %vm1009, %v1970, 0
        %v2016 = vsel %vm1009, %v1971, 0
        %v2019 = vsel %vm1009, %v1972, 0
        %v2022 = vsel %vm1009, %v1973, 0
        %v2025 = vsel %vm1009, %v1974, 0
        %2027 = vmatprep.subr.mxu0 0.0
        %2028 = vmatpush1.msra.mxu0 %v1975
        %2029 = vmatprep.subr.mxu0 0.0
        %2030 = vmatpush1.msra.mxu0 %v1976
        %2031 = vmatprep.subr.mxu0 0.0
        %2032 = vmatpush1.msra.mxu0 %v1977
        %2033 = vmatprep.subr.mxu0 0.0
        %2034 = vmatpush1.msra.mxu0 %v1978
        %2035 = vmatprep.subr.mxu0 0.0
        %2036 = vmatpush1.msra.mxu0 0.0
        %2037 = vmatprep.subr.mxu0 0.0
        %2038 = vmatpush1.msra.mxu0 0.0
        %2039 = vmatprep.subr.mxu0 0.0
        %2040 = vmatpush1.msra.mxu0 0.0
        %2041 = vmatprep.subr.mxu0 0.0
        %2042 = vmatpush1.msra.mxu0 0.0
        %2043 = vmatprep.subr.mxu0 0.0
        %2044 = vmatpush1.msra.mxu0 0.0
        %2045 = vmatprep.subr.mxu0 0.0
        %2046 = vmatpush1.msra.mxu0 0.0
        %2047 = vmatprep.subr.mxu0 0.0
        %2048 = vmatpush1.msra.mxu0 0.0
        %2049 = vmatprep.subr.mxu0 0.0
        %2050 = vmatpush1.msra.mxu0 0.0
        %2051 = vmatprep.subr.mxu0 0.0
        %2052 = vmatpush1.msra.mxu0 0.0
        %2053 = vmatprep.subr.mxu0 0.0
        %2054 = vmatpush1.msra.mxu0 0.0
        %2055 = vmatprep.subr.mxu0 0.0
        %2056 = vmatpush1.msra.mxu0 0.0
        %2057 = vmatprep.subr.mxu0 0.0
        %2058 = vmatpush1.msra.mxu0 0.0
        %2059 = vmatprep.subr.mxu0 0.0
        %2060 = vmatpush1.msra.mxu0 0.0
        %2061 = vmatprep.subr.mxu0 0.0
        %2062 = vmatpush1.msra.mxu0 0.0
        %2063 = vmatprep.subr.mxu0 0.0
        %2064 = vmatpush1.msra.mxu0 0.0
        %2065 = vmatprep.subr.mxu0 0.0
        %2066 = vmatpush1.msra.mxu0 0.0
        %2067 = vmatprep.subr.mxu0 0.0
        %2068 = vmatpush1.msra.mxu0 0.0
        %2069 = vmatprep.subr.mxu0 0.0
        %2070 = vmatpush1.msra.mxu0 0.0
        %2071 = vmatprep.subr.mxu0 0.0
        %2072 = vmatpush1.msra.mxu0 0.0
        %2073 = vmatprep.subr.mxu0 0.0
        %2074 = vmatpush1.msra.mxu0 0.0
        %2075 = vmatprep.subr.mxu0 0.0
        %2076 = vmatpush1.msra.mxu0 0.0
        %2077 = vmatprep.subr.mxu0 0.0
        %2078 = vmatpush1.msra.mxu0 0.0
        %2079 = vmatprep.subr.mxu0 0.0
        %2080 = vmatpush1.msra.mxu0 0.0
        %2081 = vmatprep.subr.mxu0 0.0
        %2082 = vmatpush1.msra.mxu0 0.0
        %2083 = vmatprep.subr.mxu0 0.0
        %2084 = vmatpush1.msra.mxu0 0.0
        %2085 = vmatprep.subr.mxu0 0.0
        %2086 = vmatpush1.msra.mxu0 0.0
        %2087 = vmatprep.subr.mxu0 0.0
        %2088 = vmatpush1.msra.mxu0 0.0
        %2089 = vmatprep.subr.mxu0 0.0
        %2090 = vmatpush1.msra.mxu0 0.0
        %2091 = vmatprep.mubr.f32.mxu0 0.0
        %2092 = vmatmul.mubr.f32.gmra.mrb[0].mxu0 %v1980
        %v2093 = vpop.f32.mrb[0].mxu0
        %v2094 = vadd.f32 0.0, %v2093
        %v2095 = vpop.f32.mrb[0].mxu0
        %2096 = vmatprep.mubr.f32.mxu0 0.0
        %2097 = vmatmul.mubr.f32.gmra.mrb[0].mxu0 %v1983
        %v2098 = vpop.f32.mrb[0].mxu0
        %v2099 = vadd.f32 0.0, %v2098
        %v2100 = vpop.f32.mrb[0].mxu0
        %2101 = vmatprep.mubr.f32.mxu0 0.0
        %2102 = vmatmul.mubr.f32.gmra.mrb[0].mxu0 %v1986
        %v2103 = vpop.f32.mrb[0].mxu0
        %v2104 = vadd.f32 0.0, %v2103
        %v2105 = vpop.f32.mrb[0].mxu0
        %2106 = vmatprep.mubr.f32.mxu0 0.0
        %2107 = vmatmul.mubr.f32.gmra.mrb[0].mxu0 %v1989
        %v2108 = vpop.f32.mrb[0].mxu0
        %v2109 = vadd.f32 0.0, %v2108
        %v2110 = vpop.f32.mrb[0].mxu0
        %2111 = vmatprep.mubr.f32.mxu0 0.0
        %2112 = vmatmul.mubr.f32.gmra.mrb[0].mxu0 %v1992
        %v2113 = vpop.f32.mrb[0].mxu0
        %v2114 = vadd.f32 0.0, %v2113
        %v2115 = vpop.f32.mrb[0].mxu0
        %2116 = vmatprep.mubr.f32.mxu0 0.0
        %2117 = vmatmul.mubr.f32.gmra.mrb[0].mxu0 %v1995
        %v2118 = vpop.f32.mrb[0].mxu0
        %v2119 = vadd.f32 0.0, %v2118
        %v2120 = vpop.f32.mrb[0].mxu0
        %2121 = vmatprep.mubr.f32.mxu0 0.0
        %2122 = vmatmul.mubr.f32.gmra.mrb[0].mxu0 %v1998
        %v2123 = vpop.f32.mrb[0].mxu0
        %v2124 = vadd.f32 0.0, %v2123
        %v2125 = vpop.f32.mrb[0].mxu0
        %2126 = vmatprep.mubr.f32.mxu0 0.0
        %2127 = vmatmul.mubr.f32.gmra.mrb[0].mxu0 %v2001
        %v2128 = vpop.f32.mrb[0].mxu0
        %v2129 = vadd.f32 0.0, %v2128
        %v2130 = vpop.f32.mrb[0].mxu0
        %2131 = vmatprep.mubr.f32.mxu0 0.0
        %2132 = vmatmul.mubr.f32.gmra.mrb[0].mxu0 %v2004
        %v2133 = vpop.f32.mrb[0].mxu0
        %v2134 = vadd.f32 0.0, %v2133
        %v2135 = vpop.f32.mrb[0].mxu0
        %2136 = vmatprep.mubr.f32.mxu0 0.0
        %2137 = vmatmul.mubr.f32.gmra.mrb[0].mxu0 %v2007
        %v2138 = vpop.f32.mrb[0].mxu0
        %v2139 = vadd.f32 0.0, %v2138
        %v2140 = vpop.f32.mrb[0].mxu0
        %2141 = vmatprep.mubr.f32.mxu0 0.0
        %2142 = vmatmul.mubr.f32.gmra.mrb[0].mxu0 %v2010
        %v2143 = vpop.f32.mrb[0].mxu0
        %v2144 = vadd.f32 0.0, %v2143
        %v2145 = vpop.f32.mrb[0].mxu0
        %2146 = vmatprep.mubr.f32.mxu0 0.0
        %2147 = vmatmul.mubr.f32.gmra.mrb[0].mxu0 %v2013
        %v2148 = vpop.f32.mrb[0].mxu0
        %v2149 = vadd.f32 0.0, %v2148
        %v2150 = vpop.f32.mrb[0].mxu0
        %2151 = vmatprep.mubr.f32.mxu0 0.0
        %2152 = vmatmul.mubr.f32.gmra.mrb[0].mxu0 %v2016
        %v2153 = vpop.f32.mrb[0].mxu0
        %v2154 = vadd.f32 0.0, %v2153
        %v2155 = vpop.f32.mrb[0].mxu0
        %2156 = vmatprep.mubr.f32.mxu0 0.0
        %2157 = vmatmul.mubr.f32.gmra.mrb[0].mxu0 %v2019
        %v2158 = vpop.f32.mrb[0].mxu0
        %v2159 = vadd.f32 0.0, %v2158
        %v2160 = vpop.f32.mrb[0].mxu0
        %2161 = vmatprep.mubr.f32.mxu0 0.0
        %2162 = vmatmul.mubr.f32.gmra.mrb[0].mxu0 %v2022
        %v2163 = vpop.f32.mrb[0].mxu0
        %v2164 = vadd.f32 0.0, %v2163
        %v2165 = vpop.f32.mrb[0].mxu0
        %2166 = vmatprep.mubr.f32.mxu0 0.0
        %2167 = vmatmul.mubr.f32.gmra.mrb[0].mxu0 %v2025
        %v2168 = vpop.f32.mrb[0].mxu0
        %v2169 = vadd.f32 0.0, %v2168
        %v2170 = vpop.f32.mrb[0].mxu0
        %2171 = vdwg.mxu0
        %v2172 = vsel %vm1009, %v2094, -inf
        %v2173 = vsel %vm1009, %v2099, -inf
        %v2174 = vmax.f32 %v2172, %v2173
        %v2175 = vrot.slane %v2174, 4
        %v2176 = vmax.f32 %v2174, %v2175
        %v2177 = vrot.slane %v2176, 2
        %v2178 = vmax.f32 %v2176, %v2177
        %v2179 = vrot.slane %v2178, 1
        %v2180 = vmax.f32 %v2178, %v2179
        %v2181 = vsel %vm1009, %v2104, -inf
        %v2182 = vsel %vm1009, %v2109, -inf
        %v2183 = vmax.f32 %v2181, %v2182
        %v2184 = vrot.slane %v2183, 4
        %v2185 = vmax.f32 %v2183, %v2184
        %v2186 = vrot.slane %v2185, 2
        %v2187 = vmax.f32 %v2185, %v2186
        %v2188 = vrot.slane %v2187, 1
        %v2189 = vmax.f32 %v2187, %v2188
        %v2190 = vsel %vm1009, %v2114, -inf
        %v2191 = vsel %vm1009, %v2119, -inf
        %v2192 = vmax.f32 %v2190, %v2191
        %v2193 = vrot.slane %v2192, 4
        %v2194 = vmax.f32 %v2192, %v2193
        %v2195 = vrot.slane %v2194, 2
        %v2196 = vmax.f32 %v2194, %v2195
        %v2197 = vrot.slane %v2196, 1
        %v2198 = vmax.f32 %v2196, %v2197
        %v2199 = vsel %vm1009, %v2124, -inf
        %v2200 = vsel %vm1009, %v2129, -inf
        %v2201 = vmax.f32 %v2199, %v2200
        %v2202 = vrot.slane %v2201, 4
        %v2203 = vmax.f32 %v2201, %v2202
        %v2204 = vrot.slane %v2203, 2
        %v2205 = vmax.f32 %v2203, %v2204
        %v2206 = vrot.slane %v2205, 1
        %v2207 = vmax.f32 %v2205, %v2206
        %v2208 = vsel %vm1009, %v2134, -inf
        %v2209 = vsel %vm1009, %v2139, -inf
        %v2210 = vmax.f32 %v2208, %v2209
        %v2211 = vrot.slane %v2210, 4
        %v2212 = vmax.f32 %v2210, %v2211
        %v2213 = vrot.slane %v2212, 2
        %v2214 = vmax.f32 %v2212, %v2213
        %v2215 = vrot.slane %v2214, 1
        %v2216 = vmax.f32 %v2214, %v2215
        %v2217 = vsel %vm1009, %v2144, -inf
        %v2218 = vsel %vm1009, %v2149, -inf
        %v2219 = vmax.f32 %v2217, %v2218
        %v2220 = vrot.slane %v2219, 4
        %v2221 = vmax.f32 %v2219, %v2220
        %v2222 = vrot.slane %v2221, 2
        %v2223 = vmax.f32 %v2221, %v2222
        %v2224 = vrot.slane %v2223, 1
        %v2225 = vmax.f32 %v2223, %v2224
        %v2226 = vsel %vm1009, %v2154, -inf
        %v2227 = vsel %vm1009, %v2159, -inf
        %v2228 = vmax.f32 %v2226, %v2227
        %v2229 = vrot.slane %v2228, 4
        %v2230 = vmax.f32 %v2228, %v2229
        %v2231 = vrot.slane %v2230, 2
        %v2232 = vmax.f32 %v2230, %v2231
        %v2233 = vrot.slane %v2232, 1
        %v2234 = vmax.f32 %v2232, %v2233
        %v2235 = vsel %vm1009, %v2164, -inf
        %v2236 = vsel %vm1009, %v2169, -inf
        %v2237 = vmax.f32 %v2235, %v2236
        %v2238 = vrot.slane %v2237, 4
        %v2239 = vmax.f32 %v2237, %v2238
        %v2240 = vrot.slane %v2239, 2
        %v2241 = vmax.f32 %v2239, %v2240
        %v2242 = vrot.slane %v2241, 1
        %v2243 = vmax.f32 %v2241, %v2242
        %v2244 = vsub.f32 %v2094, %v2180
        %v2245 = vsub.f32 %v2099, %v2180
        %v2246 = vsub.f32 %v2104, %v2189
        %v2247 = vsub.f32 %v2109, %v2189
        %v2248 = vsub.f32 %v2114, %v2198
        %v2249 = vsub.f32 %v2119, %v2198
        %v2250 = vsub.f32 %v2124, %v2207
        %v2251 = vsub.f32 %v2129, %v2207
        %v2252 = vsub.f32 %v2134, %v2216
        %v2253 = vsub.f32 %v2139, %v2216
        %v2254 = vsub.f32 %v2144, %v2225
        %v2255 = vsub.f32 %v2149, %v2225
        %v2256 = vsub.f32 %v2154, %v2234
        %v2257 = vsub.f32 %v2159, %v2234
        %v2258 = vsub.f32 %v2164, %v2243
        %v2259 = vsub.f32 %v2169, %v2243
        %v2260 = vmul.f32 %v2244, 1.442695
        %v2261 = vpow.pop %v2260
        %v2262 = vmul.f32 %v2245, 1.442695
        %v2263 = vpow.pop %v2262
        %v2264 = vmul.f32 %v2246, 1.442695
        %v2265 = vpow.pop %v2264
        %v2266 = vmul.f32 %v2247, 1.442695
        %v2267 = vpow.pop %v2266
        %v2268 = vmul.f32 %v2248, 1.442695
        %v2269 = vpow.pop %v2268
        %v2270 = vmul.f32 %v2249, 1.442695
        %v2271 = vpow.pop %v2270
        %v2272 = vmul.f32 %v2250, 1.442695
        %v2273 = vpow.pop %v2272
        %v2274 = vmul.f32 %v2251, 1.442695
        %v2275 = vpow.pop %v2274
        %v2276 = vmul.f32 %v2252, 1.442695
        %v2277 = vpow.pop %v2276
        %v2278 = vmul.f32 %v2253, 1.442695
        %v2279 = vpow.pop %v2278
        %v2280 = vmul.f32 %v2254, 1.442695
        %v2281 = vpow.pop %v2280
        %v2282 = vmul.f32 %v2255, 1.442695
        %v2283 = vpow.pop %v2282
        %v2284 = vmul.f32 %v2256, 1.442695
        %v2285 = vpow.pop %v2284
        %v2286 = vmul.f32 %v2257, 1.442695
        %v2287 = vpow.pop %v2286
        %v2288 = vmul.f32 %v2258, 1.442695
        %v2289 = vpow.pop %v2288
        %v2290 = vmul.f32 %v2259, 1.442695
        %v2291 = vpow.pop %v2290
        %v2292 = vsel %vm1009, %v2261, 0.0
        %v2293 = vsel %vm1009, %v2263, 0.0
        %v2294 = vadd.f32 %v2292, %v2293
        %v2295 = vrot.slane %v2294, 4
        %v2296 = vadd.f32 %v2294, %v2295
        %v2297 = vrot.slane %v2296, 2
        %v2298 = vadd.f32 %v2296, %v2297
        %v2299 = vrot.slane %v2298, 1
        %v2300 = vadd.f32 %v2298, %v2299
        %v2301 = vsel %vm1009, %v2265, 0.0
        %v2302 = vsel %vm1009, %v2267, 0.0
        %v2303 = vadd.f32 %v2301, %v2302
        %v2304 = vrot.slane %v2303, 4
        %v2305 = vadd.f32 %v2303, %v2304
        %v2306 = vrot.slane %v2305, 2
        %v2307 = vadd.f32 %v2305, %v2306
        %v2308 = vrot.slane %v2307, 1
        %v2309 = vadd.f32 %v2307, %v2308
        %v2310 = vsel %vm1009, %v2269, 0.0
        %v2311 = vsel %vm1009, %v2271, 0.0
        %v2312 = vadd.f32 %v2310, %v2311
        %v2313 = vrot.slane %v2312, 4
        %v2314 = vadd.f32 %v2312, %v2313
        %v2315 = vrot.slane %v2314, 2
        %v2316 = vadd.f32 %v2314, %v2315
        %v2317 = vrot.slane %v2316, 1
        %v2318 = vadd.f32 %v2316, %v2317
        %v2319 = vsel %vm1009, %v2273, 0.0
        %v2320 = vsel %vm1009, %v2275, 0.0
        %v2321 = vadd.f32 %v2319, %v2320
        %v2322 = vrot.slane %v2321, 4
        %v2323 = vadd.f32 %v2321, %v2322
        %v2324 = vrot.slane %v2323, 2
        %v2325 = vadd.f32 %v2323, %v2324
        %v2326 = vrot.slane %v2325, 1
        %v2327 = vadd.f32 %v2325, %v2326
        %v2328 = vsel %vm1009, %v2277, 0.0
        %v2329 = vsel %vm1009, %v2279, 0.0
        %v2330 = vadd.f32 %v2328, %v2329
        %v2331 = vrot.slane %v2330, 4
        %v2332 = vadd.f32 %v2330, %v2331
        %v2333 = vrot.slane %v2332, 2
        %v2334 = vadd.f32 %v2332, %v2333
        %v2335 = vrot.slane %v2334, 1
        %v2336 = vadd.f32 %v2334, %v2335
        %v2337 = vsel %vm1009, %v2281, 0.0
        %v2338 = vsel %vm1009, %v2283, 0.0
        %v2339 = vadd.f32 %v2337, %v2338
        %v2340 = vrot.slane %v2339, 4
        %v2341 = vadd.f32 %v2339, %v2340
        %v2342 = vrot.slane %v2341, 2
        %v2343 = vadd.f32 %v2341, %v2342
        %v2344 = vrot.slane %v2343, 1
        %v2345 = vadd.f32 %v2343, %v2344
        %v2346 = vsel %vm1009, %v2285, 0.0
        %v2347 = vsel %vm1009, %v2287, 0.0
        %v2348 = vadd.f32 %v2346, %v2347
        %v2349 = vrot.slane %v2348, 4
        %v2350 = vadd.f32 %v2348, %v2349
        %v2351 = vrot.slane %v2350, 2
        %v2352 = vadd.f32 %v2350, %v2351
        %v2353 = vrot.slane %v2352, 1
        %v2354 = vadd.f32 %v2352, %v2353
        %v2355 = vsel %vm1009, %v2289, 0.0
        %v2356 = vsel %vm1009, %v2291, 0.0
        %v2357 = vadd.f32 %v2355, %v2356
        %v2358 = vrot.slane %v2357, 4
        %v2359 = vadd.f32 %v2357, %v2358
        %v2360 = vrot.slane %v2359, 2
        %v2361 = vadd.f32 %v2359, %v2360
        %v2362 = vrot.slane %v2361, 1
        %v2363 = vadd.f32 %v2361, %v2362
        %v2364 = vrcp.pop %v2300
        %v2365 = vrcp.pop %v2309
        %v2366 = vrcp.pop %v2318
        %v2367 = vrcp.pop %v2327
        %v2368 = vrcp.pop %v2336
        %v2369 = vrcp.pop %v2345
        %v2370 = vrcp.pop %v2354
        %v2371 = vrcp.pop %v2363
        %v2372 = vmul.f32 %v2261, %v2364
        %v2373 = vmul.f32 %v2263, %v2364
        %v2374 = vmul.f32 %v2265, %v2365
        %v2375 = vmul.f32 %v2267, %v2365
        %v2376 = vmul.f32 %v2269, %v2366
        %v2377 = vmul.f32 %v2271, %v2366
        %v2378 = vmul.f32 %v2273, %v2367
        %v2379 = vmul.f32 %v2275, %v2367
        %v2380 = vmul.f32 %v2277, %v2368
        %v2381 = vmul.f32 %v2279, %v2368
        %v2382 = vmul.f32 %v2281, %v2369
        %v2383 = vmul.f32 %v2283, %v2369
        %v2384 = vmul.f32 %v2285, %v2370
        %v2385 = vmul.f32 %v2287, %v2370
        %v2386 = vmul.f32 %v2289, %v2371
        %v2387 = vmul.f32 %v2291, %v2371
        %v2388 = vmul.f32 %v2372, %v1783
        %v2389 = vmul.f32 %v2373, %v1784
        %v2390 = vmul.f32 %v2374, %v1785
        %v2391 = vmul.f32 %v2375, %v1786
        %v2392 = vmul.f32 %v2376, %v1787
        %v2393 = vmul.f32 %v2377, %v1788
        %v2394 = vmul.f32 %v2378, %v1789
        %v2395 = vmul.f32 %v2379, %v1790
        %v2396 = vmul.f32 %v2380, %v1791
        %v2397 = vmul.f32 %v2381, %v1792
        %v2398 = vmul.f32 %v2382, %v1793
        %v2399 = vmul.f32 %v2383, %v1794
        %v2400 = vmul.f32 %v2384, %v1795
        %v2401 = vmul.f32 %v2385, %v1796
        %v2402 = vmul.f32 %v2386, %v1797
        %v2403 = vmul.f32 %v2387, %v1798
        %v2404 = vsel %vm1009, %v2388, 0.0
        %v2405 = vsel %vm1009, %v2389, 0.0
        %v2406 = vadd.f32 %v2404, %v2405
        %v2407 = vrot.slane %v2406, 4
        %v2408 = vadd.f32 %v2406, %v2407
        %v2409 = vrot.slane %v2408, 2
        %v2410 = vadd.f32 %v2408, %v2409
        %v2411 = vrot.slane %v2410, 1
        %v2412 = vadd.f32 %v2410, %v2411
        %v2413 = vsel %vm1009, %v2390, 0.0
        %v2414 = vsel %vm1009, %v2391, 0.0
        %v2415 = vadd.f32 %v2413, %v2414
        %v2416 = vrot.slane %v2415, 4
        %v2417 = vadd.f32 %v2415, %v2416
        %v2418 = vrot.slane %v2417, 2
        %v2419 = vadd.f32 %v2417, %v2418
        %v2420 = vrot.slane %v2419, 1
        %v2421 = vadd.f32 %v2419, %v2420
        %v2422 = vsel %vm1009, %v2392, 0.0
        %v2423 = vsel %vm1009, %v2393, 0.0
        %v2424 = vadd.f32 %v2422, %v2423
        %v2425 = vrot.slane %v2424, 4
        %v2426 = vadd.f32 %v2424, %v2425
        %v2427 = vrot.slane %v2426, 2
        %v2428 = vadd.f32 %v2426, %v2427
        %v2429 = vrot.slane %v2428, 1
        %v2430 = vadd.f32 %v2428, %v2429
        %v2431 = vsel %vm1009, %v2394, 0.0
        %v2432 = vsel %vm1009, %v2395, 0.0
        %v2433 = vadd.f32 %v2431, %v2432
        %v2434 = vrot.slane %v2433, 4
        %v2435 = vadd.f32 %v2433, %v2434
        %v2436 = vrot.slane %v2435, 2
        %v2437 = vadd.f32 %v2435, %v2436
        %v2438 = vrot.slane %v2437, 1
        %v2439 = vadd.f32 %v2437, %v2438
        %v2440 = vsel %vm1009, %v2396, 0.0
        %v2441 = vsel %vm1009, %v2397, 0.0
        %v2442 = vadd.f32 %v2440, %v2441
        %v2443 = vrot.slane %v2442, 4
        %v2444 = vadd.f32 %v2442, %v2443
        %v2445 = vrot.slane %v2444, 2
        %v2446 = vadd.f32 %v2444, %v2445
        %v2447 = vrot.slane %v2446, 1
        %v2448 = vadd.f32 %v2446, %v2447
        %v2449 = vsel %vm1009, %v2398, 0.0
        %v2450 = vsel %vm1009, %v2399, 0.0
        %v2451 = vadd.f32 %v2449, %v2450
        %v2452 = vrot.slane %v2451, 4
        %v2453 = vadd.f32 %v2451, %v2452
        %v2454 = vrot.slane %v2453, 2
        %v2455 = vadd.f32 %v2453, %v2454
        %v2456 = vrot.slane %v2455, 1
        %v2457 = vadd.f32 %v2455, %v2456
        %v2458 = vsel %vm1009, %v2400, 0.0
        %v2459 = vsel %vm1009, %v2401, 0.0
        %v2460 = vadd.f32 %v2458, %v2459
        %v2461 = vrot.slane %v2460, 4
        %v2462 = vadd.f32 %v2460, %v2461
        %v2463 = vrot.slane %v2462, 2
        %v2464 = vadd.f32 %v2462, %v2463
        %v2465 = vrot.slane %v2464, 1
        %v2466 = vadd.f32 %v2464, %v2465
        %v2467 = vsel %vm1009, %v2402, 0.0
        %v2468 = vsel %vm1009, %v2403, 0.0
        %v2469 = vadd.f32 %v2467, %v2468
        %v2470 = vrot.slane %v2469, 4
        %v2471 = vadd.f32 %v2469, %v2470
        %v2472 = vrot.slane %v2471, 2
        %v2473 = vadd.f32 %v2471, %v2472
        %v2474 = vrot.slane %v2473, 1
        %v2475 = vadd.f32 %v2473, %v2474
        %v2476 = vld [vmem:[#allocation11] sm:$0x1]
        %v2477 = vld [vmem:[#allocation13] sm:$0x1]
        %v2486 = vsel %vm1533, %v2421, %v2412
        %v2487 = vsel %vm1535, %v2430, %v2486
        %v2488 = vsel %vm1537, %v2439, %v2487
        %v2489 = vsel %vm1539, %v2448, %v2488
        %v2490 = vsel %vm1541, %v2457, %v2489
        %v2491 = vsel %vm1543, %v2466, %v2490
        %v2492 = vsel %vm1545, %v2475, %v2491
        %v2494 = vsel %vm1009, %v2492, 0.0
        %2495 = vadd.xlane.f32.xlu0 %v2494
        %v2496 = vpop.xlane.xlu0 %2495
        %v2497 = vrcp.pop 32.0
        %v2498 = vmul.f32 %v2496, %v2497
        %v2500 = vrot.slane %v2498, 1
        %v2501 = vrot.slane %v2498, 2
        %v2502 = vrot.slane %v2498, 3
        %v2503 = vrot.slane %v2498, 4
        %v2504 = vrot.slane %v2498, 5
        %v2505 = vrot.slane %v2498, 6
        %v2506 = vrot.slane %v2498, 7
        %v2515 = vsub.f32 %v2412, %v2498
        %v2516 = vsub.f32 %v2421, %v2500
        %v2517 = vsub.f32 %v2430, %v2501
        %v2518 = vsub.f32 %v2439, %v2502
        %v2519 = vsub.f32 %v2448, %v2503
        %v2520 = vsub.f32 %v2457, %v2504
        %v2521 = vsub.f32 %v2466, %v2505
        %v2522 = vsub.f32 %v2475, %v2506
        %v2523 = vmul.f32 %v2515, %v2515
        %v2524 = vmul.f32 %v2516, %v2516
        %v2525 = vmul.f32 %v2517, %v2517
        %v2526 = vmul.f32 %v2518, %v2518
        %v2527 = vmul.f32 %v2519, %v2519
        %v2528 = vmul.f32 %v2520, %v2520
        %v2529 = vmul.f32 %v2521, %v2521
        %v2530 = vmul.f32 %v2522, %v2522
        %v2539 = vrot.slane %v2524, 7
        %v2540 = vsel %vm1533, %v2539, %v2523
        %v2541 = vrot.slane %v2525, 6
        %v2542 = vsel %vm1535, %v2541, %v2540
        %v2543 = vrot.slane %v2526, 5
        %v2544 = vsel %vm1537, %v2543, %v2542
        %v2545 = vrot.slane %v2527, 4
        %v2546 = vsel %vm1539, %v2545, %v2544
        %v2547 = vrot.slane %v2528, 3
        %v2548 = vsel %vm1541, %v2547, %v2546
        %v2549 = vrot.slane %v2529, 2
        %v2550 = vsel %vm1543, %v2549, %v2548
        %v2551 = vrot.slane %v2530, 1
        %v2552 = vsel %vm1545, %v2551, %v2550
        %v2554 = vsel %vm1009, %v2552, 0.0
        %2555 = vadd.xlane.f32.xlu0 %v2554
        %v2556 = vpop.xlane.xlu0 %2555
        %v2557 = vmul.f32 %v2556, %v2497
        %v2558 = vadd.f32 %v2557, 1e-05
        %v2559 = vrsqrt.pop %v2558
        %v2561 = vrot.slane %v2559, 1
        %v2562 = vrot.slane %v2559, 2
        %v2563 = vrot.slane %v2559, 3
        %v2564 = vrot.slane %v2559, 4
        %v2565 = vrot.slane %v2559, 5
        %v2566 = vrot.slane %v2559, 6
        %v2567 = vrot.slane %v2559, 7
        %v2576 = vmul.f32 %v2515, %v2559
        %v2577 = vmul.f32 %v2516, %v2561
        %v2578 = vmul.f32 %v2517, %v2562
        %v2579 = vmul.f32 %v2518, %v2563
        %v2580 = vmul.f32 %v2519, %v2564
        %v2581 = vmul.f32 %v2520, %v2565
        %v2582 = vmul.f32 %v2521, %v2566
        %v2583 = vmul.f32 %v2522, %v2567
        %v2585 = vlaneseq
        %v2586 = vshrl.u32 %v2585, 7
        %v2587 = vsub.s32 0, %v2586
        %v2588 = vrot.slane %v2476, %v2587
        %v2590 = vmul.f32 %v2576, %v2588
        %v2591 = vmul.f32 %v2577, %v2588
        %v2592 = vmul.f32 %v2578, %v2588
        %v2593 = vmul.f32 %v2579, %v2588
        %v2594 = vmul.f32 %v2580, %v2588
        %v2595 = vmul.f32 %v2581, %v2588
        %v2596 = vmul.f32 %v2582, %v2588
        %v2597 = vmul.f32 %v2583, %v2588
        %v2599 = vlaneseq
        %v2600 = vshrl.u32 %v2599, 7
        %v2601 = vsub.s32 0, %v2600
        %v2602 = vrot.slane %v2477, %v2601
        %v2604 = vadd.f32 %v2590, %v2602
        %v2605 = vadd.f32 %v2591, %v2602
        %v2606 = vadd.f32 %v2592, %v2602
        %v2607 = vadd.f32 %v2593, %v2602
        %v2608 = vadd.f32 %v2594, %v2602
        %v2609 = vadd.f32 %v2595, %v2602
        %v2610 = vadd.f32 %v2596, %v2602
        %v2611 = vadd.f32 %v2597, %v2602
        %v2612 = vld [vmem:[%s9] sm:$0xff]
        %v2613 = vld [vmem:[%s9 + $0x8] sm:$0xff]
        %v2614 = vld [vmem:[%s9 + $0x10] sm:$0xff]
        %v2615 = vld [vmem:[%s9 + $0x18] sm:$0xff]
        %v2624 = vrot.slane %v2605, 7
        %v2625 = vsel %vm1533, %v2624, %v2604
        %v2626 = vrot.slane %v2606, 6
        %v2627 = vsel %vm1535, %v2626, %v2625
        %v2628 = vrot.slane %v2607, 5
        %v2629 = vsel %vm1537, %v2628, %v2627
        %v2630 = vrot.slane %v2608, 4
        %v2631 = vsel %vm1539, %v2630, %v2629
        %v2632 = vrot.slane %v2609, 3
        %v2633 = vsel %vm1541, %v2632, %v2631
        %v2634 = vrot.slane %v2610, 2
        %v2635 = vsel %vm1543, %v2634, %v2633
        %v2636 = vrot.slane %v2611, 1
        %v2637 = vsel %vm1545, %v2636, %v2635
        %v2638 = vsel %vm1009, %v2637, 0
        %2640 = vmatprep.subr.mxu0 0.0
        %2641 = vmatpush1.msra.mxu0 %v2612
        %2642 = vmatprep.subr.mxu0 0.0
        %2643 = vmatpush1.msra.mxu0 %v2613
        %2644 = vmatprep.subr.mxu0 0.0
        %2645 = vmatpush1.msra.mxu0 %v2614
        %2646 = vmatprep.subr.mxu0 0.0
        %2647 = vmatpush1.msra.mxu0 %v2615
        %2648 = vmatprep.subr.mxu0 0.0
        %2649 = vmatpush1.msra.mxu0 0.0
        %2650 = vmatprep.subr.mxu0 0.0
        %2651 = vmatpush1.msra.mxu0 0.0
        %2652 = vmatprep.subr.mxu0 0.0
        %2653 = vmatpush1.msra.mxu0 0.0
        %2654 = vmatprep.subr.mxu0 0.0
        %2655 = vmatpush1.msra.mxu0 0.0
        %2656 = vmatprep.subr.mxu0 0.0
        %2657 = vmatpush1.msra.mxu0 0.0
        %2658 = vmatprep.subr.mxu0 0.0
        %2659 = vmatpush1.msra.mxu0 0.0
        %2660 = vmatprep.subr.mxu0 0.0
        %2661 = vmatpush1.msra.mxu0 0.0
        %2662 = vmatprep.subr.mxu0 0.0
        %2663 = vmatpush1.msra.mxu0 0.0
        %2664 = vmatprep.subr.mxu0 0.0
        %2665 = vmatpush1.msra.mxu0 0.0
        %2666 = vmatprep.subr.mxu0 0.0
        %2667 = vmatpush1.msra.mxu0 0.0
        %2668 = vmatprep.subr.mxu0 0.0
        %2669 = vmatpush1.msra.mxu0 0.0
        %2670 = vmatprep.subr.mxu0 0.0
        %2671 = vmatpush1.msra.mxu0 0.0
        %2672 = vmatprep.subr.mxu0 0.0
        %2673 = vmatpush1.msra.mxu0 0.0
        %2674 = vmatprep.subr.mxu0 0.0
        %2675 = vmatpush1.msra.mxu0 0.0
        %2676 = vmatprep.subr.mxu0 0.0
        %2677 = vmatpush1.msra.mxu0 0.0
        %2678 = vmatprep.subr.mxu0 0.0
        %2679 = vmatpush1.msra.mxu0 0.0
        %2680 = vmatprep.subr.mxu0 0.0
        %2681 = vmatpush1.msra.mxu0 0.0
        %2682 = vmatprep.subr.mxu0 0.0
        %2683 = vmatpush1.msra.mxu0 0.0
        %2684 = vmatprep.subr.mxu0 0.0
        %2685 = vmatpush1.msra.mxu0 0.0
        %2686 = vmatprep.subr.mxu0 0.0
        %2687 = vmatpush1.msra.mxu0 0.0
        %2688 = vmatprep.subr.mxu0 0.0
        %2689 = vmatpush1.msra.mxu0 0.0
        %2690 = vmatprep.subr.mxu0 0.0
        %2691 = vmatpush1.msra.mxu0 0.0
        %2692 = vmatprep.subr.mxu0 0.0
        %2693 = vmatpush1.msra.mxu0 0.0
        %2694 = vmatprep.subr.mxu0 0.0
        %2695 = vmatpush1.msra.mxu0 0.0
        %2696 = vmatprep.subr.mxu0 0.0
        %2697 = vmatpush1.msra.mxu0 0.0
        %2698 = vmatprep.subr.mxu0 0.0
        %2699 = vmatpush1.msra.mxu0 0.0
        %2700 = vmatprep.subr.mxu0 0.0
        %2701 = vmatpush1.msra.mxu0 0.0
        %2702 = vmatprep.subr.mxu0 0.0
        %2703 = vmatpush1.msra.mxu0 0.0
        %2704 = vmatprep.mubr.f32.mxu0 0.0
        %2705 = vmatmul.mubr.f32.gmra.mrb[0].mxu0 %v2638
        %v2706 = vpop.f32.mrb[0].mxu0
        %v2707 = vadd.f32 0.0, %v2706
        %v2708 = vpop.f32.mrb[0].mxu0
        %2709 = vdwg.mxu0
        %v2711 = vrot.slane %v2707, 1
        %v2712 = vrot.slane %v2707, 2
        %v2713 = vrot.slane %v2707, 3
        %v2714 = vrot.slane %v2707, 4
        %v2715 = vrot.slane %v2707, 5
        %v2716 = vrot.slane %v2707, 6
        %v2717 = vrot.slane %v2707, 7
        %v2726 = vadd.f32 %v2412, %v2707
        %v2727 = vadd.f32 %v2421, %v2711
        %v2728 = vadd.f32 %v2430, %v2712
        %v2729 = vadd.f32 %v2439, %v2713
        %v2730 = vadd.f32 %v2448, %v2714
        %v2731 = vadd.f32 %v2457, %v2715
        %v2732 = vadd.f32 %v2466, %v2716
        %v2733 = vadd.f32 %v2475, %v2717
        %v2734 = vld [vmem:[%s10] sm:$0x1]
        %v2736 = vlaneseq
        %v2737 = vshrl.u32 %v2736, 7
        %v2738 = vsub.s32 0, %v2737
        %v2739 = vrot.slane %v2734, %v2738
        %v2741 = vadd.f32 %v2726, %v2739
        %v2742 = vadd.f32 %v2727, %v2739
        %v2743 = vadd.f32 %v2728, %v2739
        %v2744 = vadd.f32 %v2729, %v2739
        %v2745 = vadd.f32 %v2730, %v2739
        %v2746 = vadd.f32 %v2731, %v2739
        %v2747 = vadd.f32 %v2732, %v2739
        %v2748 = vadd.f32 %v2733, %v2739
        %v2749 = vld [vmem:[%s11] sm:$0x1]
        %v2750 = vld [vmem:[%s12] sm:$0x1]
        %v2759 = vrot.slane %v2742, 7
        %v2760 = vsel %vm1533, %v2759, %v2741
        %v2761 = vrot.slane %v2743, 6
        %v2762 = vsel %vm1535, %v2761, %v2760
        %v2763 = vrot.slane %v2744, 5
        %v2764 = vsel %vm1537, %v2763, %v2762
        %v2765 = vrot.slane %v2745, 4
        %v2766 = vsel %vm1539, %v2765, %v2764
        %v2767 = vrot.slane %v2746, 3
        %v2768 = vsel %vm1541, %v2767, %v2766
        %v2769 = vrot.slane %v2747, 2
        %v2770 = vsel %vm1543, %v2769, %v2768
        %v2771 = vrot.slane %v2748, 1
        %v2772 = vsel %vm1545, %v2771, %v2770
        %v2774 = vsel %vm1009, %v2772, 0.0
        %2775 = vadd.xlane.f32.xlu0 %v2774
        %v2776 = vpop.xlane.xlu0 %2775
        %v2777 = vmul.f32 %v2776, %v2497
        %v2779 = vrot.slane %v2777, 1
        %v2780 = vrot.slane %v2777, 2
        %v2781 = vrot.slane %v2777, 3
        %v2782 = vrot.slane %v2777, 4
        %v2783 = vrot.slane %v2777, 5
        %v2784 = vrot.slane %v2777, 6
        %v2785 = vrot.slane %v2777, 7
        %v2794 = vsub.f32 %v2741, %v2777
        %v2795 = vsub.f32 %v2742, %v2779
        %v2796 = vsub.f32 %v2743, %v2780
        %v2797 = vsub.f32 %v2744, %v2781
        %v2798 = vsub.f32 %v2745, %v2782
        %v2799 = vsub.f32 %v2746, %v2783
        %v2800 = vsub.f32 %v2747, %v2784
        %v2801 = vsub.f32 %v2748, %v2785
        %v2802 = vmul.f32 %v2794, %v2794
        %v2803 = vmul.f32 %v2795, %v2795
        %v2804 = vmul.f32 %v2796, %v2796
        %v2805 = vmul.f32 %v2797, %v2797
        %v2806 = vmul.f32 %v2798, %v2798
        %v2807 = vmul.f32 %v2799, %v2799
        %v2808 = vmul.f32 %v2800, %v2800
        %v2809 = vmul.f32 %v2801, %v2801
        %v2818 = vrot.slane %v2803, 7
        %v2819 = vsel %vm1533, %v2818, %v2802
        %v2820 = vrot.slane %v2804, 6
        %v2821 = vsel %vm1535, %v2820, %v2819
        %v2822 = vrot.slane %v2805, 5
        %v2823 = vsel %vm1537, %v2822, %v2821
        %v2824 = vrot.slane %v2806, 4
        %v2825 = vsel %vm1539, %v2824, %v2823
        %v2826 = vrot.slane %v2807, 3
        %v2827 = vsel %vm1541, %v2826, %v2825
        %v2828 = vrot.slane %v2808, 2
        %v2829 = vsel %vm1543, %v2828, %v2827
        %v2830 = vrot.slane %v2809, 1
        %v2831 = vsel %vm1545, %v2830, %v2829
        %v2833 = vsel %vm1009, %v2831, 0.0
        %2834 = vadd.xlane.f32.xlu0 %v2833
        %v2835 = vpop.xlane.xlu0 %2834
        %v2836 = vmul.f32 %v2835, %v2497
        %v2837 = vadd.f32 %v2836, 1e-05
        %v2838 = vrsqrt.pop %v2837
        %v2840 = vrot.slane %v2838, 1
        %v2841 = vrot.slane %v2838, 2
        %v2842 = vrot.slane %v2838, 3
        %v2843 = vrot.slane %v2838, 4
        %v2844 = vrot.slane %v2838, 5
        %v2845 = vrot.slane %v2838, 6
        %v2846 = vrot.slane %v2838, 7
        %v2855 = vmul.f32 %v2794, %v2838
        %v2856 = vmul.f32 %v2795, %v2840
        %v2857 = vmul.f32 %v2796, %v2841
        %v2858 = vmul.f32 %v2797, %v2842
        %v2859 = vmul.f32 %v2798, %v2843
        %v2860 = vmul.f32 %v2799, %v2844
        %v2861 = vmul.f32 %v2800, %v2845
        %v2862 = vmul.f32 %v2801, %v2846
        %v2864 = vlaneseq
        %v2865 = vshrl.u32 %v2864, 7
        %v2866 = vsub.s32 0, %v2865
        %v2867 = vrot.slane %v2749, %v2866
        %v2869 = vmul.f32 %v2855, %v2867
        %v2870 = vmul.f32 %v2856, %v2867
        %v2871 = vmul.f32 %v2857, %v2867
        %v2872 = vmul.f32 %v2858, %v2867
        %v2873 = vmul.f32 %v2859, %v2867
        %v2874 = vmul.f32 %v2860, %v2867
        %v2875 = vmul.f32 %v2861, %v2867
        %v2876 = vmul.f32 %v2862, %v2867
        %v2878 = vlaneseq
        %v2879 = vshrl.u32 %v2878, 7
        %v2880 = vsub.s32 0, %v2879
        %v2881 = vrot.slane %v2750, %v2880
        %v2883 = vadd.f32 %v2869, %v2881
        %v2884 = vadd.f32 %v2870, %v2881
        %v2885 = vadd.f32 %v2871, %v2881
        %v2886 = vadd.f32 %v2872, %v2881
        %v2887 = vadd.f32 %v2873, %v2881
        %v2888 = vadd.f32 %v2874, %v2881
        %v2889 = vadd.f32 %v2875, %v2881
        %v2890 = vadd.f32 %v2876, %v2881
        %v2891 = vld [vmem:[#allocation14] sm:$0xff]
        %v2892 = vld [vmem:[#allocation14 + $0x8] sm:$0xff]
        %v2893 = vld [vmem:[#allocation14 + $0x10] sm:$0xff]
        %v2894 = vld [vmem:[#allocation14 + $0x18] sm:$0xff]
        %v2895 = vld [vmem:[%s14] sm:$0x1]
        %v2897 = vlaneseq
        %v2898 = vshrl.u32 %v2897, 7
        %v2899 = vsub.s32 0, %v2898
        %v2900 = vrot.slane %v2895, %v2899
        %v2910 = vrot.slane %v2884, 7
        %v2911 = vsel %vm1533, %v2910, %v2883
        %v2912 = vrot.slane %v2885, 6
        %v2913 = vsel %vm1535, %v2912, %v2911
        %v2914 = vrot.slane %v2886, 5
        %v2915 = vsel %vm1537, %v2914, %v2913
        %v2916 = vrot.slane %v2887, 4
        %v2917 = vsel %vm1539, %v2916, %v2915
        %v2918 = vrot.slane %v2888, 3
        %v2919 = vsel %vm1541, %v2918, %v2917
        %v2920 = vrot.slane %v2889, 2
        %v2921 = vsel %vm1543, %v2920, %v2919
        %v2922 = vrot.slane %v2890, 1
        %v2923 = vsel %vm1545, %v2922, %v2921
        %v2924 = vsel %vm1009, %v2923, 0
        %2926 = vmatprep.subr.mxu0 0.0
        %2927 = vmatpush1.msra.mxu0 %v2891
        %2928 = vmatprep.subr.mxu0 0.0
        %2929 = vmatpush1.msra.mxu0 %v2892
        %2930 = vmatprep.subr.mxu0 0.0
        %2931 = vmatpush1.msra.mxu0 %v2893
        %2932 = vmatprep.subr.mxu0 0.0
        %2933 = vmatpush1.msra.mxu0 %v2894
        %2934 = vmatprep.subr.mxu0 0.0
        %2935 = vmatpush1.msra.mxu0 0.0
        %2936 = vmatprep.subr.mxu0 0.0
        %2937 = vmatpush1.msra.mxu0 0.0
        %2938 = vmatprep.subr.mxu0 0.0
        %2939 = vmatpush1.msra.mxu0 0.0
        %2940 = vmatprep.subr.mxu0 0.0
        %2941 = vmatpush1.msra.mxu0 0.0
        %2942 = vmatprep.subr.mxu0 0.0
        %2943 = vmatpush1.msra.mxu0 0.0
        %2944 = vmatprep.subr.mxu0 0.0
        %2945 = vmatpush1.msra.mxu0 0.0
        %2946 = vmatprep.subr.mxu0 0.0
        %2947 = vmatpush1.msra.mxu0 0.0
        %2948 = vmatprep.subr.mxu0 0.0
        %2949 = vmatpush1.msra.mxu0 0.0
        %2950 = vmatprep.subr.mxu0 0.0
        %2951 = vmatpush1.msra.mxu0 0.0
        %2952 = vmatprep.subr.mxu0 0.0
        %2953 = vmatpush1.msra.mxu0 0.0
        %2954 = vmatprep.subr.mxu0 0.0
        %2955 = vmatpush1.msra.mxu0 0.0
        %2956 = vmatprep.subr.mxu0 0.0
        %2957 = vmatpush1.msra.mxu0 0.0
        %2958 = vmatprep.subr.mxu0 0.0
        %2959 = vmatpush1.msra.mxu0 0.0
        %2960 = vmatprep.subr.mxu0 0.0
        %2961 = vmatpush1.msra.mxu0 0.0
        %2962 = vmatprep.subr.mxu0 0.0
        %2963 = vmatpush1.msra.mxu0 0.0
        %2964 = vmatprep.subr.mxu0 0.0
        %2965 = vmatpush1.msra.mxu0 0.0
        %2966 = vmatprep.subr.mxu0 0.0
        %2967 = vmatpush1.msra.mxu0 0.0
        %2968 = vmatprep.subr.mxu0 0.0
        %2969 = vmatpush1.msra.mxu0 0.0
        %2970 = vmatprep.subr.mxu0 0.0
        %2971 = vmatpush1.msra.mxu0 0.0
        %2972 = vmatprep.subr.mxu0 0.0
        %2973 = vmatpush1.msra.mxu0 0.0
        %2974 = vmatprep.subr.mxu0 0.0
        %2975 = vmatpush1.msra.mxu0 0.0
        %2976 = vmatprep.subr.mxu0 0.0
        %2977 = vmatpush1.msra.mxu0 0.0
        %2978 = vmatprep.subr.mxu0 0.0
        %2979 = vmatpush1.msra.mxu0 0.0
        %2980 = vmatprep.subr.mxu0 0.0
        %2981 = vmatpush1.msra.mxu0 0.0
        %2982 = vmatprep.subr.mxu0 0.0
        %2983 = vmatpush1.msra.mxu0 0.0
        %2984 = vmatprep.subr.mxu0 0.0
        %2985 = vmatpush1.msra.mxu0 0.0
        %2986 = vmatprep.subr.mxu0 0.0
        %2987 = vmatpush1.msra.mxu0 0.0
        %2988 = vmatprep.subr.mxu0 0.0
        %2989 = vmatpush1.msra.mxu0 0.0
        %2990 = vmatprep.mubr.f32.mxu0 0.0
        %2991 = vmatmul.mubr.f32.gmra.mrb[0].mxu0 %v2924
        %v2992 = vpop.f32.mrb[0].mxu0
        %v2993 = vadd.f32 %v2900, %v2992
        %v2994 = vpop.f32.mrb[0].mxu0
        %2995 = vdwg.mxu0
        %v2996 = vmax.f32 %v2993, 0.0
        %v2997 = vld [vmem:[#allocation16] sm:$0xff]
        %v2998 = vld [vmem:[#allocation16 + $0x8] sm:$0xff]
        %v2999 = vld [vmem:[#allocation16 + $0x10] sm:$0xff]
        %v3000 = vld [vmem:[#allocation16 + $0x18] sm:$0xff]
        %v3002 = vsel %vm1009, %v2996, 0
        %3004 = vmatprep.subr.mxu0 0.0
        %3005 = vmatpush1.msra.mxu0 %v2997
        %3006 = vmatprep.subr.mxu0 0.0
        %3007 = vmatpush1.msra.mxu0 %v2998
        %3008 = vmatprep.subr.mxu0 0.0
        %3009 = vmatpush1.msra.mxu0 %v2999
        %3010 = vmatprep.subr.mxu0 0.0
        %3011 = vmatpush1.msra.mxu0 %v3000
        %3012 = vmatprep.subr.mxu0 0.0
        %3013 = vmatpush1.msra.mxu0 0.0
        %3014 = vmatprep.subr.mxu0 0.0
        %3015 = vmatpush1.msra.mxu0 0.0
        %3016 = vmatprep.subr.mxu0 0.0
        %3017 = vmatpush1.msra.mxu0 0.0
        %3018 = vmatprep.subr.mxu0 0.0
        %3019 = vmatpush1.msra.mxu0 0.0
        %3020 = vmatprep.subr.mxu0 0.0
        %3021 = vmatpush1.msra.mxu0 0.0
        %3022 = vmatprep.subr.mxu0 0.0
        %3023 = vmatpush1.msra.mxu0 0.0
        %3024 = vmatprep.subr.mxu0 0.0
        %3025 = vmatpush1.msra.mxu0 0.0
        %3026 = vmatprep.subr.mxu0 0.0
        %3027 = vmatpush1.msra.mxu0 0.0
        %3028 = vmatprep.subr.mxu0 0.0
        %3029 = vmatpush1.msra.mxu0 0.0
        %3030 = vmatprep.subr.mxu0 0.0
        %3031 = vmatpush1.msra.mxu0 0.0
        %3032 = vmatprep.subr.mxu0 0.0
        %3033 = vmatpush1.msra.mxu0 0.0
        %3034 = vmatprep.subr.mxu0 0.0
        %3035 = vmatpush1.msra.mxu0 0.0
        %3036 = vmatprep.subr.mxu0 0.0
        %3037 = vmatpush1.msra.mxu0 0.0
        %3038 = vmatprep.subr.mxu0 0.0
        %3039 = vmatpush1.msra.mxu0 0.0
        %3040 = vmatprep.subr.mxu0 0.0
        %3041 = vmatpush1.msra.mxu0 0.0
        %3042 = vmatprep.subr.mxu0 0.0
        %3043 = vmatpush1.msra.mxu0 0.0
        %3044 = vmatprep.subr.mxu0 0.0
        %3045 = vmatpush1.msra.mxu0 0.0
        %3046 = vmatprep.subr.mxu0 0.0
        %3047 = vmatpush1.msra.mxu0 0.0
        %3048 = vmatprep.subr.mxu0 0.0
        %3049 = vmatpush1.msra.mxu0 0.0
        %3050 = vmatprep.subr.mxu0 0.0
        %3051 = vmatpush1.msra.mxu0 0.0
        %3052 = vmatprep.subr.mxu0 0.0
        %3053 = vmatpush1.msra.mxu0 0.0
        %3054 = vmatprep.subr.mxu0 0.0
        %3055 = vmatpush1.msra.mxu0 0.0
        %3056 = vmatprep.subr.mxu0 0.0
        %3057 = vmatpush1.msra.mxu0 0.0
        %3058 = vmatprep.subr.mxu0 0.0
        %3059 = vmatpush1.msra.mxu0 0.0
        %3060 = vmatprep.subr.mxu0 0.0
        %3061 = vmatpush1.msra.mxu0 0.0
        %3062 = vmatprep.subr.mxu0 0.0
        %3063 = vmatpush1.msra.mxu0 0.0
        %3064 = vmatprep.subr.mxu0 0.0
        %3065 = vmatpush1.msra.mxu0 0.0
        %3066 = vmatprep.subr.mxu0 0.0
        %3067 = vmatpush1.msra.mxu0 0.0
        %3068 = vmatprep.mubr.f32.mxu0 0.0
        %3069 = vmatmul.mubr.f32.gmra.mrb[0].mxu0 %v3002
        %v3070 = vpop.f32.mrb[0].mxu0
        %v3071 = vadd.f32 0.0, %v3070
        %v3072 = vpop.f32.mrb[0].mxu0
        %3073 = vdwg.mxu0
        %v3075 = vrot.slane %v3071, 1
        %v3076 = vrot.slane %v3071, 2
        %v3077 = vrot.slane %v3071, 3
        %v3078 = vrot.slane %v3071, 4
        %v3079 = vrot.slane %v3071, 5
        %v3080 = vrot.slane %v3071, 6
        %v3081 = vrot.slane %v3071, 7
        %v3090 = vadd.f32 %v2741, %v3071
        %v3091 = vadd.f32 %v2742, %v3075
        %v3092 = vadd.f32 %v2743, %v3076
        %v3093 = vadd.f32 %v2744, %v3077
        %v3094 = vadd.f32 %v2745, %v3078
        %v3095 = vadd.f32 %v2746, %v3079
        %v3096 = vadd.f32 %v2747, %v3080
        %v3097 = vadd.f32 %v2748, %v3081
        %v3098 = vld [vmem:[%s16] sm:$0x1]
        %v3100 = vlaneseq
        %v3101 = vshrl.u32 %v3100, 7
        %v3102 = vsub.s32 0, %v3101
        %v3103 = vrot.slane %v3098, %v3102
        %v3105 = vadd.f32 %v3090, %v3103
        %v3106 = vadd.f32 %v3091, %v3103
        %v3107 = vadd.f32 %v3092, %v3103
        %v3108 = vadd.f32 %v3093, %v3103
        %v3109 = vadd.f32 %v3094, %v3103
        %v3110 = vadd.f32 %v3095, %v3103
        %v3111 = vadd.f32 %v3096, %v3103
        %v3112 = vadd.f32 %v3097, %v3103
        %v3113 = vadd.f32 %v2412, %v3105
        %v3114 = vadd.f32 %v2421, %v3106
        %v3115 = vadd.f32 %v2430, %v3107
        %v3116 = vadd.f32 %v2439, %v3108
        %v3117 = vadd.f32 %v2448, %v3109
        %v3118 = vadd.f32 %v2457, %v3110
        %v3119 = vadd.f32 %v2466, %v3111
        %v3120 = vadd.f32 %v2475, %v3112
        %v3129 = vrot.slane %v3114, 7
        %v3130 = vsel %vm1533, %v3129, %v3113
        %v3131 = vrot.slane %v3115, 6
        %v3132 = vsel %vm1535, %v3131, %v3130
        %v3133 = vrot.slane %v3116, 5
        %v3134 = vsel %vm1537, %v3133, %v3132
        %v3135 = vrot.slane %v3117, 4
        %v3136 = vsel %vm1539, %v3135, %v3134
        %v3137 = vrot.slane %v3118, 3
        %v3138 = vsel %vm1541, %v3137, %v3136
        %v3139 = vrot.slane %v3119, 2
        %v3140 = vsel %vm1543, %v3139, %v3138
        %v3141 = vrot.slane %v3120, 1
        %v3142 = vsel %vm1545, %v3141, %v3140
        %3144 = vst.msk [vmem:[%s679] sm:$0xff] %vm1009, %v3142
        %s3145 = sand.u32 %s408, 1
        %s3146 = scalar_lea.sflag [#allocation4], %s3145
        %s3147 = sand.u32 %s408, 1
        %s3148 = smul.addr %s3147, 8
        %s3149 = scalar_lea.vmem [#allocation17], %s3148
        // Predicated region
        $region125: #{tpu_custom_call.1} parent=87 // pred_check
          %p3150 = pneg %p418
        $region126: #{tpu_custom_call.1} parent=87 // pred_check_branch
          %3152 = sbr.rel (%p3150) target = $region128
        $region127: #{tpu_custom_call.1} parent=87 // pred_region
          %s3154 = ssub.s32 128, 128
          %3155 = vsyncadd %s3146, %s3154
          %s3156 = smul.addr %s38, 128
          %s3157 = scalar_lea.hbm %s17, %s3156
          %s3159 = sshll.u32 %s3149, 4
          %s3160 = int_to_ptr.vmem [resolvable:$true] %s3159
          %3162 = dma.vmem_to_hbm [thread:$0]  %s3160, 128, %s3157, %s3146
        $region128: #{tpu_custom_call.1} parent=87 // pred_fallthru
          _
      $region88: #{tpu_custom_call.1} parent=5 // pred_fallthru
        _
      %p3163 = scmp.le.s32.totalorder 2, %s33
      // Predicated region
      $region129: #{tpu_custom_call.1} parent=5 // pred_check
        %p3164 = pneg %p3163
      $region130: #{tpu_custom_call.1} parent=5 // pred_check_branch
        %3166 = sbr.rel (%p3164) target = $region132
      $region131: #{tpu_custom_call.1} parent=5 // pred_region
        %s3167 = ssub.s32 %s33, 2
        // Predicated region
        $region133: #{tpu_custom_call.1} parent=131 // pred_check
          %p3168 = pneg %p424
        $region134: #{tpu_custom_call.1} parent=131 // pred_check_branch
          %3170 = sbr.rel (%p3168) target = $region136
        $region135: #{tpu_custom_call.1} parent=131 // pred_region
          %s3171 = sand.u32 %s409, 1
          %s3172 = scalar_lea.sflag [#allocation4], %s3171
          %s3173 = sand.u32 %s409, 1
          %s3174 = smul.addr %s3173, 8
          %s3175 = scalar_lea.vmem [#allocation17], %s3174
          %3176 = dma.done %s3172, 128
        $region136: #{tpu_custom_call.1} parent=131 // pred_fallthru
          _
      $region132: #{tpu_custom_call.1} parent=5 // pred_fallthru
        _
    $region6: #{tpu_custom_call.1} parent=1 // loop_footer
      %s37 = sadd.s32 1, %s33
    $region7: #{tpu_custom_call.1} parent=1 // loop_footer_branch
      %32 = sbr.rel target = $region3
    $region8: #{tpu_custom_call.1} parent=1 // loop_exit
      _
    %3177 = vsyncpa [#allocation3], 1
    %s3178 = scalar_lea.sflag [#allocation3], 1
    %3179 = vsyncpa %s3178, 1
    %3180 = vsyncpa [#allocation6], 1
    %3181 = vsyncpa [#allocation9], 1
    %3182 = vsyncpa [#allocation12], 1
    %3183 = vsyncpa [#allocation15], 1
    %3184 = vsyncpa [#allocation4], 1
    %s3185 = scalar_lea.sflag [#allocation4], 1
    %3186 = vsyncpa %s3185, 1

</llo_original>
